<compile_context>
chip_gen: v7x
topology: tpu7x:2x2x1
jax: 0.10.0
libtpu: 0.0.40
codegen_flags: <defaults>
</compile_context>

<pallas_src>
import functools
import math

import numpy as np
import jax
import jax.numpy as jnp
from jax.experimental import pallas as pl
from jax.experimental.pallas import tpu as pltpu


# ----------------------------------------------------------------------------
# Fused decoder-stack kernel: one grid step = one (batch tile, layer) pair.
# ----------------------------------------------------------------------------

def _decoder_stack_kernel(x_ref, t_ref, cond_ref,
                          wself_ref, wcross_ref, w1_ref, b1_ref, w2_ref, vec_ref,
                          o_ref, h_scratch, attn_scratch,
                          *, TB, S, Sc, H, D, Dh):
    l = pl.program_id(1)
    n_layer = pl.num_programs(1)
    Mt = TB * S

    # Layer 0: initialize the VMEM-resident activation carry for this batch tile
    # (x already has the positional encoding folded in by the wrapper).
    @pl.when(l == 0)
    def _init():
        h_scratch[...] = x_ref[...]

    w_self = wself_ref[0]       # (4, D, D) bf16: Wq*scale, Wk, Wv, Wo
    w_cross = wcross_ref[0]     # (4, D, D) bf16: Wq2*scale, Wk2, Wv2, Wo2
    vec = vec_ref[0]            # (15, D) f32: packed biases + layernorm params

    def layer_norm(y, g, b, eps=1e-5):
        mu = jnp.mean(y, axis=-1, keepdims=True)
        var = jnp.mean(jnp.square(y - mu), axis=-1, keepdims=True)
        return (y - mu) * jax.lax.rsqrt(var + eps) * g + b

    def mh_attention(q, k, v, Sk):
        # q: (TB*S, D) f32;  k, v: (TB*Sk, D) f32.
        # One batched einsum per head (single batch dim = TB); head outputs are
        # written straight into a VMEM scratch slab (no lane concatenates).
        # 'bqd,bkd->bqk' contracts the last dims, so K is consumed as the MXU's
        # transposed operand without a materialized transpose.
        qb = q.astype(jnp.bfloat16).reshape(TB, S, D)
        kb = k.astype(jnp.bfloat16).reshape(TB, Sk, D)
        vb = v.astype(jnp.bfloat16).reshape(TB, Sk, D)
        for hh in range(H):
            lo, hi = hh * Dh, (hh + 1) * Dh
            s = jnp.einsum('bqd,bkd->bqk', qb[:, :, lo:hi], kb[:, :, lo:hi],
                           preferred_element_type=jnp.float32)      # (TB, S, Sk)
            m = jnp.max(s, axis=-1, keepdims=True)
            e = jnp.exp(s - m)
            p = e * pl.reciprocal(jnp.sum(e, axis=-1, keepdims=True), approx=True)
            attn_scratch[:, :, lo:hi] = jnp.einsum(
                'bqk,bkd->bqd', p.astype(jnp.bfloat16), vb[:, :, lo:hi],
                preferred_element_type=jnp.float32)
        return attn_scratch[...].reshape(Mt, D)

    # Per-layer time-embedding add: (TB, 1, D) broadcast over the sequence axis.
    h = (h_scratch[...].reshape(TB, S, D) + t_ref[...]).reshape(Mt, D)

    # ---------------- self attention ----------------
    hb = h.astype(jnp.bfloat16)
    q = jnp.dot(hb, w_self[0], preferred_element_type=jnp.float32) + vec[0:1]
    k = jnp.dot(hb, w_self[1], preferred_element_type=jnp.float32) + vec[1:2]
    v = jnp.dot(hb, w_self[2], preferred_element_type=jnp.float32) + vec[2:3]
    a = mh_attention(q, k, v, S)
    a = jnp.dot(a.astype(jnp.bfloat16), w_self[3],
                preferred_element_type=jnp.float32) + vec[3:4]
    h = layer_norm(a + h, vec[9:10], vec[10:11])

    # ---------------- cross attention (to condition) ----------------
    hb = h.astype(jnp.bfloat16)
    cb = cond_ref[...].astype(jnp.bfloat16)
    q2 = jnp.dot(hb, w_cross[0], preferred_element_type=jnp.float32) + vec[4:5]
    k2 = jnp.dot(cb, w_cross[1], preferred_element_type=jnp.float32) + vec[5:6]
    v2 = jnp.dot(cb, w_cross[2], preferred_element_type=jnp.float32) + vec[6:7]
    a2 = mh_attention(q2, k2, v2, Sc)
    a2 = jnp.dot(a2.astype(jnp.bfloat16), w_cross[3],
                 preferred_element_type=jnp.float32) + vec[7:8]
    h = layer_norm(a2 + h, vec[11:12], vec[12:13])

    # ---------------- position-wise feed forward ----------------
    hb = h.astype(jnp.bfloat16)
    f = jnp.maximum(
        jnp.dot(hb, w1_ref[0], preferred_element_type=jnp.float32) + b1_ref[0],
        0.0)
    f = jnp.dot(f.astype(jnp.bfloat16), w2_ref[0],
                preferred_element_type=jnp.float32) + vec[8:9]
    h = layer_norm(f + h, vec[13:14], vec[14:15])

    # Carry to the next layer; only the final layer writes HBM.
    @pl.when(l < n_layer - 1)
    def _carry():
        h_scratch[...] = h

    @pl.when(l == n_layer - 1)
    def _final():
        o_ref[...] = h


# ----------------------------------------------------------------------------
# Wrapper: one pallas_call for the whole forward
# ----------------------------------------------------------------------------

def transformer_decoder_forward(params, x, t_emb, condition, n_head, batch_tile=1):
    B, S, D = x.shape
    _, Sc, _ = condition.shape
    L, _, Di = params["w1"].shape
    n_node = params["pos_table"].shape[1]
    assert S <= n_node, f"sequence length {S} exceeds pos_table length {n_node}"
    assert D % n_head == 0
    Dh = D // n_head

    TB = batch_tile
    if (B % TB != 0) or ((TB * S) % 8 != 0) or ((TB * Sc) % 8 != 0):
        TB = B                      # fall back: blocks equal the full arrays
    n_bt = B // TB
    Mt = TB * S

    # Positional-encoding add folded into the input slab; t passed as (B, 1, D)
    # and broadcast in-kernel (one fewer resident (M, D) buffer + DMA).
    x2 = (x + params["pos_table"][:, :S, :]).astype(jnp.float32).reshape(B * S, D)
    t3 = t_emb.astype(jnp.float32).reshape(B, 1, D)
    c2 = condition.astype(jnp.float32).reshape(B * Sc, D)

    kernel = functools.partial(_decoder_stack_kernel,
                               TB=TB, S=S, Sc=Sc, H=n_head, D=D, Dh=Dh)

    # Explicit VMEM budget: resident activation blocks + carry/assembly scratch
    # + ~double-buffered per-layer weight set (bf16).  Scoped defaults (16/32
    # MiB) are too small once shapes grow; cap well under physical VMEM.
    w_keys = ("w_self", "w_cross", "w1", "b1", "w2", "vec")
    per_layer_w = sum(int(np.prod(params[k].shape[1:])) * params[k].dtype.itemsize
                      for k in w_keys)
    act_bytes = 4 * (3 * Mt * D + TB * Sc * D + TB * S * D + TB * D)
    vmem_limit = int(min(max(3 * per_layer_w + 2 * act_bytes, 32 << 20), 100 << 20))

    out2 = pl.pallas_call(
        kernel,
        out_shape=jax.ShapeDtypeStruct((B * S, D), jnp.float32),
        grid=(n_bt, L),
        in_specs=[
            pl.BlockSpec((Mt, D), lambda b, l: (b, 0)),                # x + pos_enc
            pl.BlockSpec((TB, 1, D), lambda b, l: (b, 0, 0)),          # t embedding
            pl.BlockSpec((TB * Sc, D), lambda b, l: (b, 0)),           # condition
            pl.BlockSpec((1, 4, D, D), lambda b, l: (l, 0, 0, 0)),     # self-attn W
            pl.BlockSpec((1, 4, D, D), lambda b, l: (l, 0, 0, 0)),     # cross-attn W
            pl.BlockSpec((1, D, Di), lambda b, l: (l, 0, 0)),          # FFN w1
            pl.BlockSpec((1, 1, Di), lambda b, l: (l, 0, 0)),          # FFN b1
            pl.BlockSpec((1, Di, D), lambda b, l: (l, 0, 0)),          # FFN w2
            pl.BlockSpec((1, 15, D), lambda b, l: (l, 0, 0)),          # biases + LN
        ],
        out_specs=pl.BlockSpec((Mt, D), lambda b, l: (b, 0)),
        scratch_shapes=[pltpu.VMEM((Mt, D), jnp.float32),       # layer-to-layer carry
                        pltpu.VMEM((TB, S, D), jnp.float32)],   # head-output slab
        compiler_params=pltpu.CompilerParams(
            dimension_semantics=("parallel", "arbitrary"),
            vmem_limit_bytes=vmem_limit),
    )(x2, t3, c2,
      params["w_self"], params["w_cross"],
      params["w1"], params["b1"], params["w2"], params["vec"])

    return out2.reshape(B, S, D)


# ----------------------------------------------------------------------------
# Deterministic parameter construction (stacked across layers)
# ----------------------------------------------------------------------------

def sinusoid_encoding_table(n_boundary, d_hid):
    pos = np.arange(n_boundary)[:, None].astype(np.float64)
    hid = np.arange(d_hid)[None, :]
    angle = pos / np.power(10000.0, 2 * (hid // 2) / d_hid)
    table = np.array(angle)
    table[:, 0::2] = np.sin(table[:, 0::2])
    table[:, 1::2] = np.cos(table[:, 1::2])
    return jnp.asarray(table[None, :, :], dtype=jnp.float32)   # (1, n_boundary, d_hid)


def init_params(key, d_model, d_inner, n_layer, n_head, codebook_dim, cluster_count):
    D, Di, L = d_model, d_inner, n_layer
    n_node = codebook_dim * cluster_count
    w_scale = 0.02
    attn_scale = 1.0 / math.sqrt(D // n_head)   # folded into Wq / bq

    ks = jax.random.split(key, 10)

    def w(k, fi, fo):
        return w_scale * jax.random.normal(k, (L, fi, fo), jnp.float32)

    wq, wk, wv, wo = (w(ks[i], D, D) for i in range(4))
    wq2, wk2, wv2, wo2 = (w(ks[i], D, D) for i in range(4, 8))
    w1, w2 = w(ks[8], D, Di), w(ks[9], Di, D)

    zD = jnp.zeros((L, 1, D), jnp.float32)
    oD = jnp.ones((L, 1, D), jnp.float32)
    # Packed (L, 15, D) bias/LN slab — one DMA per layer.  Rows:
    # [bq*scale, bk, bv, bo, bq2*scale, bk2, bv2, bo2, b2,
    #  ln1_g, ln1_b, ln2_g, ln2_b, ln3_g, ln3_b]
    vec = jnp.concatenate([zD] * 9 + [oD, zD, oD, zD, oD, zD], axis=1)

    return {
        "pos_table": sinusoid_encoding_table(n_node, D),
        # Q/K/V/O stacked on a leading axis (no lane-concatenated fused
        # projection -> no sub-128-lane splits of MXU output); bf16 weights
        # halve the per-layer DMA and double-buffered VMEM footprint.
        "w_self": jnp.stack([wq * attn_scale, wk, wv, wo], axis=1).astype(jnp.bfloat16),
        "w_cross": jnp.stack([wq2 * attn_scale, wk2, wv2, wo2], axis=1).astype(jnp.bfloat16),
        "w1": w1.astype(jnp.bfloat16),
        "b1": jnp.zeros((L, 1, Di), jnp.float32),
        "w2": w2.astype(jnp.bfloat16),
        "vec": vec,
    }


# ----------------------------------------------------------------------------
# Main
# ----------------------------------------------------------------------------

if __name__ == "__main__":
    # Small config consistent with the module's __init__ signature.
    d_model = 32
    d_inner = 64
    n_layer = 2
    n_head = 4
    dropout = 0.1            # identity in eval mode
    codebook_size = 16       # not used in forward
    codebook_dim = 4
    cluster_count = 2        # -> n_node = 8 positions in the sinusoid table

    B = 2
    S = codebook_dim * cluster_count     # 8 tokens
    S_cond = 8

    key = jax.random.PRNGKey(0)
    k_x, k_t, k_c, k_p = jax.random.split(key, 4)

    x = jax.random.normal(k_x, (B, S, d_model), jnp.float32)
    t_emb = jax.random.normal(k_t, (B, d_model), jnp.float32)          # timestep embedding
    condition = jax.random.normal(k_c, (B, S_cond, d_model), jnp.float32)

    params = init_params(k_p, d_model, d_inner, n_layer, n_head,
                         codebook_dim, cluster_count)

    out = transformer_decoder_forward(params, x, t_emb, condition, n_head,
                                      batch_tile=1)
    out = jax.block_until_ready(out)

    assert out.shape == (B, S, d_model), out.shape
    assert bool(jnp.all(jnp.isfinite(out)))
    print("KERNEL_OK")
</pallas_src>

<mosaic_0001>
module attributes {stable_mosaic.version = 11 : i64} {
  func.func @_decoder_stack_kernel(%arg0: i32, %arg1: i32, %arg2: memref<8x32xf32, #tpu.memory_space<vmem>>, %arg3: memref<1x1x32xf32, #tpu.memory_space<vmem>>, %arg4: memref<8x32xf32, #tpu.memory_space<vmem>>, %arg5: memref<1x4x32x32xbf16, #tpu.memory_space<vmem>>, %arg6: memref<1x4x32x32xbf16, #tpu.memory_space<vmem>>, %arg7: memref<1x32x64xbf16, #tpu.memory_space<vmem>>, %arg8: memref<1x1x64xf32, #tpu.memory_space<vmem>>, %arg9: memref<1x64x32xbf16, #tpu.memory_space<vmem>>, %arg10: memref<1x15x32xf32, #tpu.memory_space<vmem>>, %arg11: memref<8x32xf32, #tpu.memory_space<vmem>>, %arg12: memref<8x32xf32, #tpu.memory_space<vmem>>, %arg13: memref<1x8x32xf32, #tpu.memory_space<vmem>>) attributes {dimension_semantics = [#tpu.dimension_semantics<parallel>, #tpu.dimension_semantics<arbitrary>], iteration_bounds = array<i64: 2, 2>, scalar_prefetch = 0 : i64, scratch_operands = 2 : i64, tpu.core_type = #tpu.core_type<tc>, window_params = [{transform_indices = @transform_0, window_bounds = array<i64: 8, 32>}, {transform_indices = @transform_1, window_bounds = array<i64: 1, 1, 32>}, {transform_indices = @transform_2, window_bounds = array<i64: 8, 32>}, {transform_indices = @transform_3, window_bounds = array<i64: 1, 4, 32, 32>}, {transform_indices = @transform_4, window_bounds = array<i64: 1, 4, 32, 32>}, {transform_indices = @transform_5, window_bounds = array<i64: 1, 32, 64>}, {transform_indices = @transform_6, window_bounds = array<i64: 1, 1, 64>}, {transform_indices = @transform_7, window_bounds = array<i64: 1, 64, 32>}, {transform_indices = @transform_8, window_bounds = array<i64: 1, 15, 32>}, {transform_indices = @transform_9, window_bounds = array<i64: 8, 32>}]} {
    %c0_i32 = arith.constant 0 : i32
    %0 = arith.cmpi eq, %arg1, %c0_i32 : i32
    %1 = arith.extui %0 : i1 to i32
    %c0_i32_0 = arith.constant 0 : i32
    %2 = arith.cmpi ne, %1, %c0_i32_0 : i32
    scf.if %2 {
      %c0_114 = arith.constant 0 : index
      %c0_115 = arith.constant 0 : index
      %319 = vector.load %arg2[%c0_114, %c0_115] : memref<8x32xf32, #tpu.memory_space<vmem>>, vector<8x32xf32>
      %c0_116 = arith.constant 0 : index
      %c0_117 = arith.constant 0 : index
      %320 = vector.load %arg12[%c0_116, %c0_117] : memref<8x32xf32, #tpu.memory_space<vmem>>, vector<8x32xf32>
      tpu.vector_store %arg12[%c0_116, %c0_117], %319 {strides = array<i32>} : memref<8x32xf32, #tpu.memory_space<vmem>>, vector<8x32xf32>,
    } else {
    }
    %c0 = arith.constant 0 : index
    %c0_1 = arith.constant 0 : index
    %c0_2 = arith.constant 0 : index
    %c0_3 = arith.constant 0 : index
    %3 = vector.load %arg5[%c0, %c0_1, %c0_2, %c0_3] : memref<1x4x32x32xbf16, #tpu.memory_space<vmem>>, vector<1x4x32x32xbf16>
    %4 = vector.shape_cast %3 : vector<1x4x32x32xbf16> to vector<4x32x32xbf16>
    %c0_4 = arith.constant 0 : index
    %c0_5 = arith.constant 0 : index
    %c0_6 = arith.constant 0 : index
    %c0_7 = arith.constant 0 : index
    %5 = vector.load %arg6[%c0_4, %c0_5, %c0_6, %c0_7] : memref<1x4x32x32xbf16, #tpu.memory_space<vmem>>, vector<1x4x32x32xbf16>
    %6 = vector.shape_cast %5 : vector<1x4x32x32xbf16> to vector<4x32x32xbf16>
    %c0_8 = arith.constant 0 : index
    %c0_9 = arith.constant 0 : index
    %c0_10 = arith.constant 0 : index
    %7 = vector.load %arg10[%c0_8, %c0_9, %c0_10] : memref<1x15x32xf32, #tpu.memory_space<vmem>>, vector<1x15x32xf32>
    %8 = vector.shape_cast %7 : vector<1x15x32xf32> to vector<15x32xf32>
    %c0_11 = arith.constant 0 : index
    %c0_12 = arith.constant 0 : index
    %9 = vector.load %arg12[%c0_11, %c0_12] : memref<8x32xf32, #tpu.memory_space<vmem>>, vector<8x32xf32>
    %10 = vector.shape_cast %9 : vector<8x32xf32> to vector<1x8x32xf32>
    %c0_13 = arith.constant 0 : index
    %c0_14 = arith.constant 0 : index
    %c0_15 = arith.constant 0 : index
    %11 = vector.load %arg3[%c0_13, %c0_14, %c0_15] : memref<1x1x32xf32, #tpu.memory_space<vmem>>, vector<1x1x32xf32>
    %12 = vector.broadcast %11 : vector<1x1x32xf32> to vector<1x8x32xf32>
    %13 = arith.addf %10, %12 : vector<1x8x32xf32>
    %14 = vector.shape_cast %13 : vector<1x8x32xf32> to vector<8x32xf32>
    %15 = arith.truncf %14 : vector<8x32xf32> to vector<8x32xbf16>
    %16 = vector.extract_strided_slice %4 {offsets = [0, 0, 0], sizes = [1, 32, 32], strides = [1, 1, 1]} : vector<4x32x32xbf16> to vector<1x32x32xbf16>
    %17 = vector.shape_cast %16 : vector<1x32x32xbf16> to vector<32x32xbf16>
    %cst = arith.constant dense<0.000000e+00> : vector<8x32xf32>
    %18 = tpu.matmul %15, %17, %cst {dimension_numbers = #tpu.dot_dimension_numbers<[1], [0], [0], [1], [0, 0, 1, 1], [], []>} : vector<8x32xbf16>, vector<32x32xbf16>, vector<8x32xf32> -> vector<8x32xf32>
    %19 = vector.extract_strided_slice %8 {offsets = [0, 0], sizes = [1, 32], strides = [1, 1]} : vector<15x32xf32> to vector<1x32xf32>
    %20 = vector.broadcast %19 : vector<1x32xf32> to vector<8x32xf32>
    %21 = arith.addf %18, %20 : vector<8x32xf32>
    %22 = vector.extract_strided_slice %4 {offsets = [1, 0, 0], sizes = [1, 32, 32], strides = [1, 1, 1]} : vector<4x32x32xbf16> to vector<1x32x32xbf16>
    %23 = vector.shape_cast %22 : vector<1x32x32xbf16> to vector<32x32xbf16>
    %cst_16 = arith.constant dense<0.000000e+00> : vector<8x32xf32>
    %24 = tpu.matmul %15, %23, %cst_16 {dimension_numbers = #tpu.dot_dimension_numbers<[1], [0], [0], [1], [0, 0, 1, 1], [], []>} : vector<8x32xbf16>, vector<32x32xbf16>, vector<8x32xf32> -> vector<8x32xf32>
    %25 = vector.extract_strided_slice %8 {offsets = [1, 0], sizes = [1, 32], strides = [1, 1]} : vector<15x32xf32> to vector<1x32xf32>
    %26 = vector.broadcast %25 : vector<1x32xf32> to vector<8x32xf32>
    %27 = arith.addf %24, %26 : vector<8x32xf32>
    %28 = vector.extract_strided_slice %4 {offsets = [2, 0, 0], sizes = [1, 32, 32], strides = [1, 1, 1]} : vector<4x32x32xbf16> to vector<1x32x32xbf16>
    %29 = vector.shape_cast %28 : vector<1x32x32xbf16> to vector<32x32xbf16>
    %cst_17 = arith.constant dense<0.000000e+00> : vector<8x32xf32>
    %30 = tpu.matmul %15, %29, %cst_17 {dimension_numbers = #tpu.dot_dimension_numbers<[1], [0], [0], [1], [0, 0, 1, 1], [], []>} : vector<8x32xbf16>, vector<32x32xbf16>, vector<8x32xf32> -> vector<8x32xf32>
    %31 = vector.extract_strided_slice %8 {offsets = [2, 0], sizes = [1, 32], strides = [1, 1]} : vector<15x32xf32> to vector<1x32xf32>
    %32 = vector.broadcast %31 : vector<1x32xf32> to vector<8x32xf32>
    %33 = arith.addf %30, %32 : vector<8x32xf32>
    %34 = arith.truncf %21 : vector<8x32xf32> to vector<8x32xbf16>
    %35 = vector.shape_cast %34 : vector<8x32xbf16> to vector<1x8x32xbf16>
    %36 = arith.truncf %27 : vector<8x32xf32> to vector<8x32xbf16>
    %37 = vector.shape_cast %36 : vector<8x32xbf16> to vector<1x8x32xbf16>
    %38 = arith.truncf %33 : vector<8x32xf32> to vector<8x32xbf16>
    %39 = vector.shape_cast %38 : vector<8x32xbf16> to vector<1x8x32xbf16>
    %40 = vector.extract_strided_slice %35 {offsets = [0, 0, 0], sizes = [1, 8, 8], strides = [1, 1, 1]} : vector<1x8x32xbf16> to vector<1x8x8xbf16>
    %41 = vector.extract_strided_slice %37 {offsets = [0, 0, 0], sizes = [1, 8, 8], strides = [1, 1, 1]} : vector<1x8x32xbf16> to vector<1x8x8xbf16>
    "tpu.trace_start"() <{level = 10 : i32, message = "bqd,bkd->bqk"}> : () -> ()
    %cst_18 = arith.constant dense<0.000000e+00> : vector<1x8x8xf32>
    %42 = tpu.matmul %40, %41, %cst_18 {dimension_numbers = #tpu.dot_dimension_numbers<[2], [2], [1], [1], [0, 0, 0, 1, 1, 1], [0], [0]>} : vector<1x8x8xbf16>, vector<1x8x8xbf16>, vector<1x8x8xf32> -> vector<1x8x8xf32>
    "tpu.trace_stop"() : () -> ()
    %cst_19 = arith.constant dense<0xFF800000> : vector<1x8xf32>
    %43 = vector.multi_reduction <maximumf>, %42, %cst_19 [2] : vector<1x8x8xf32> to vector<1x8xf32>
    %44 = vector.shape_cast %43 : vector<1x8xf32> to vector<1x8x1xf32>
    %45 = vector.broadcast %44 : vector<1x8x1xf32> to vector<1x8x8xf32>
    %46 = arith.subf %42, %45 : vector<1x8x8xf32>
    %47 = math.exp %46 : vector<1x8x8xf32>
    %cst_20 = arith.constant dense<0.000000e+00> : vector<1x8xf32>
    %48 = vector.multi_reduction <add>, %47, %cst_20 [2] : vector<1x8x8xf32> to vector<1x8xf32>
    %49 = vector.shape_cast %48 : vector<1x8xf32> to vector<1x8x1xf32>
    %50 = tpu.reciprocal %49 {approx = true} : vector<1x8x1xf32> -> vector<1x8x1xf32>
    %51 = vector.broadcast %50 : vector<1x8x1xf32> to vector<1x8x8xf32>
    %52 = arith.mulf %47, %51 : vector<1x8x8xf32>
    %53 = arith.truncf %52 : vector<1x8x8xf32> to vector<1x8x8xbf16>
    %54 = vector.extract_strided_slice %39 {offsets = [0, 0, 0], sizes = [1, 8, 8], strides = [1, 1, 1]} : vector<1x8x32xbf16> to vector<1x8x8xbf16>
    "tpu.trace_start"() <{level = 10 : i32, message = "bqk,bkd->bqd"}> : () -> ()
    %cst_21 = arith.constant dense<0.000000e+00> : vector<1x8x8xf32>
    %55 = tpu.matmul %53, %54, %cst_21 {dimension_numbers = #tpu.dot_dimension_numbers<[2], [1], [1], [2], [0, 0, 0, 1, 1, 2], [0], [0]>} : vector<1x8x8xbf16>, vector<1x8x8xbf16>, vector<1x8x8xf32> -> vector<1x8x8xf32>
    "tpu.trace_stop"() : () -> ()
    %c0_22 = arith.constant 0 : index
    %c0_23 = arith.constant 0 : index
    %c0_24 = arith.constant 0 : index
    %56 = vector.load %arg13[%c0_22, %c0_23, %c0_24] : memref<1x8x32xf32, #tpu.memory_space<vmem>>, vector<1x8x8xf32>
    tpu.vector_store %arg13[%c0_22, %c0_23, %c0_24], %55 {strides = array<i32>} : memref<1x8x32xf32, #tpu.memory_space<vmem>>, vector<1x8x8xf32>,
    %57 = vector.extract_strided_slice %35 {offsets = [0, 0, 8], sizes = [1, 8, 8], strides = [1, 1, 1]} : vector<1x8x32xbf16> to vector<1x8x8xbf16>
    %58 = vector.extract_strided_slice %37 {offsets = [0, 0, 8], sizes = [1, 8, 8], strides = [1, 1, 1]} : vector<1x8x32xbf16> to vector<1x8x8xbf16>
    "tpu.trace_start"() <{level = 10 : i32, message = "bqd,bkd->bqk"}> : () -> ()
    %cst_25 = arith.constant dense<0.000000e+00> : vector<1x8x8xf32>
    %59 = tpu.matmul %57, %58, %cst_25 {dimension_numbers = #tpu.dot_dimension_numbers<[2], [2], [1], [1], [0, 0, 0, 1, 1, 1], [0], [0]>} : vector<1x8x8xbf16>, vector<1x8x8xbf16>, vector<1x8x8xf32> -> vector<1x8x8xf32>
    "tpu.trace_stop"() : () -> ()
    %cst_26 = arith.constant dense<0xFF800000> : vector<1x8xf32>
    %60 = vector.multi_reduction <maximumf>, %59, %cst_26 [2] : vector<1x8x8xf32> to vector<1x8xf32>
    %61 = vector.shape_cast %60 : vector<1x8xf32> to vector<1x8x1xf32>
    %62 = vector.broadcast %61 : vector<1x8x1xf32> to vector<1x8x8xf32>
    %63 = arith.subf %59, %62 : vector<1x8x8xf32>
    %64 = math.exp %63 : vector<1x8x8xf32>
    %cst_27 = arith.constant dense<0.000000e+00> : vector<1x8xf32>
    %65 = vector.multi_reduction <add>, %64, %cst_27 [2] : vector<1x8x8xf32> to vector<1x8xf32>
    %66 = vector.shape_cast %65 : vector<1x8xf32> to vector<1x8x1xf32>
    %67 = tpu.reciprocal %66 {approx = true} : vector<1x8x1xf32> -> vector<1x8x1xf32>
    %68 = vector.broadcast %67 : vector<1x8x1xf32> to vector<1x8x8xf32>
    %69 = arith.mulf %64, %68 : vector<1x8x8xf32>
    %70 = arith.truncf %69 : vector<1x8x8xf32> to vector<1x8x8xbf16>
    %71 = vector.extract_strided_slice %39 {offsets = [0, 0, 8], sizes = [1, 8, 8], strides = [1, 1, 1]} : vector<1x8x32xbf16> to vector<1x8x8xbf16>
    "tpu.trace_start"() <{level = 10 : i32, message = "bqk,bkd->bqd"}> : () -> ()
    %cst_28 = arith.constant dense<0.000000e+00> : vector<1x8x8xf32>
    %72 = tpu.matmul %70, %71, %cst_28 {dimension_numbers = #tpu.dot_dimension_numbers<[2], [1], [1], [2], [0, 0, 0, 1, 1, 2], [0], [0]>} : vector<1x8x8xbf16>, vector<1x8x8xbf16>, vector<1x8x8xf32> -> vector<1x8x8xf32>
    "tpu.trace_stop"() : () -> ()
    %c0_29 = arith.constant 0 : index
    %c0_30 = arith.constant 0 : index
    %c8 = arith.constant 8 : index
    %73 = vector.load %arg13[%c0_29, %c0_30, %c8] : memref<1x8x32xf32, #tpu.memory_space<vmem>>, vector<1x8x8xf32>
    tpu.vector_store %arg13[%c0_29, %c0_30, %c8], %72 {strides = array<i32>} : memref<1x8x32xf32, #tpu.memory_space<vmem>>, vector<1x8x8xf32>,
    %74 = vector.extract_strided_slice %35 {offsets = [0, 0, 16], sizes = [1, 8, 8], strides = [1, 1, 1]} : vector<1x8x32xbf16> to vector<1x8x8xbf16>
    %75 = vector.extract_strided_slice %37 {offsets = [0, 0, 16], sizes = [1, 8, 8], strides = [1, 1, 1]} : vector<1x8x32xbf16> to vector<1x8x8xbf16>
    "tpu.trace_start"() <{level = 10 : i32, message = "bqd,bkd->bqk"}> : () -> ()
    %cst_31 = arith.constant dense<0.000000e+00> : vector<1x8x8xf32>
    %76 = tpu.matmul %74, %75, %cst_31 {dimension_numbers = #tpu.dot_dimension_numbers<[2], [2], [1], [1], [0, 0, 0, 1, 1, 1], [0], [0]>} : vector<1x8x8xbf16>, vector<1x8x8xbf16>, vector<1x8x8xf32> -> vector<1x8x8xf32>
    "tpu.trace_stop"() : () -> ()
    %cst_32 = arith.constant dense<0xFF800000> : vector<1x8xf32>
    %77 = vector.multi_reduction <maximumf>, %76, %cst_32 [2] : vector<1x8x8xf32> to vector<1x8xf32>
    %78 = vector.shape_cast %77 : vector<1x8xf32> to vector<1x8x1xf32>
    %79 = vector.broadcast %78 : vector<1x8x1xf32> to vector<1x8x8xf32>
    %80 = arith.subf %76, %79 : vector<1x8x8xf32>
    %81 = math.exp %80 : vector<1x8x8xf32>
    %cst_33 = arith.constant dense<0.000000e+00> : vector<1x8xf32>
    %82 = vector.multi_reduction <add>, %81, %cst_33 [2] : vector<1x8x8xf32> to vector<1x8xf32>
    %83 = vector.shape_cast %82 : vector<1x8xf32> to vector<1x8x1xf32>
    %84 = tpu.reciprocal %83 {approx = true} : vector<1x8x1xf32> -> vector<1x8x1xf32>
    %85 = vector.broadcast %84 : vector<1x8x1xf32> to vector<1x8x8xf32>
    %86 = arith.mulf %81, %85 : vector<1x8x8xf32>
    %87 = arith.truncf %86 : vector<1x8x8xf32> to vector<1x8x8xbf16>
    %88 = vector.extract_strided_slice %39 {offsets = [0, 0, 16], sizes = [1, 8, 8], strides = [1, 1, 1]} : vector<1x8x32xbf16> to vector<1x8x8xbf16>
    "tpu.trace_start"() <{level = 10 : i32, message = "bqk,bkd->bqd"}> : () -> ()
    %cst_34 = arith.constant dense<0.000000e+00> : vector<1x8x8xf32>
    %89 = tpu.matmul %87, %88, %cst_34 {dimension_numbers = #tpu.dot_dimension_numbers<[2], [1], [1], [2], [0, 0, 0, 1, 1, 2], [0], [0]>} : vector<1x8x8xbf16>, vector<1x8x8xbf16>, vector<1x8x8xf32> -> vector<1x8x8xf32>
    "tpu.trace_stop"() : () -> ()
    %c0_35 = arith.constant 0 : index
    %c0_36 = arith.constant 0 : index
    %c16 = arith.constant 16 : index
    %90 = vector.load %arg13[%c0_35, %c0_36, %c16] : memref<1x8x32xf32, #tpu.memory_space<vmem>>, vector<1x8x8xf32>
    tpu.vector_store %arg13[%c0_35, %c0_36, %c16], %89 {strides = array<i32>} : memref<1x8x32xf32, #tpu.memory_space<vmem>>, vector<1x8x8xf32>,
    %91 = vector.extract_strided_slice %35 {offsets = [0, 0, 24], sizes = [1, 8, 8], strides = [1, 1, 1]} : vector<1x8x32xbf16> to vector<1x8x8xbf16>
    %92 = vector.extract_strided_slice %37 {offsets = [0, 0, 24], sizes = [1, 8, 8], strides = [1, 1, 1]} : vector<1x8x32xbf16> to vector<1x8x8xbf16>
    "tpu.trace_start"() <{level = 10 : i32, message = "bqd,bkd->bqk"}> : () -> ()
    %cst_37 = arith.constant dense<0.000000e+00> : vector<1x8x8xf32>
    %93 = tpu.matmul %91, %92, %cst_37 {dimension_numbers = #tpu.dot_dimension_numbers<[2], [2], [1], [1], [0, 0, 0, 1, 1, 1], [0], [0]>} : vector<1x8x8xbf16>, vector<1x8x8xbf16>, vector<1x8x8xf32> -> vector<1x8x8xf32>
    "tpu.trace_stop"() : () -> ()
    %cst_38 = arith.constant dense<0xFF800000> : vector<1x8xf32>
    %94 = vector.multi_reduction <maximumf>, %93, %cst_38 [2] : vector<1x8x8xf32> to vector<1x8xf32>
    %95 = vector.shape_cast %94 : vector<1x8xf32> to vector<1x8x1xf32>
    %96 = vector.broadcast %95 : vector<1x8x1xf32> to vector<1x8x8xf32>
    %97 = arith.subf %93, %96 : vector<1x8x8xf32>
    %98 = math.exp %97 : vector<1x8x8xf32>
    %cst_39 = arith.constant dense<0.000000e+00> : vector<1x8xf32>
    %99 = vector.multi_reduction <add>, %98, %cst_39 [2] : vector<1x8x8xf32> to vector<1x8xf32>
    %100 = vector.shape_cast %99 : vector<1x8xf32> to vector<1x8x1xf32>
    %101 = tpu.reciprocal %100 {approx = true} : vector<1x8x1xf32> -> vector<1x8x1xf32>
    %102 = vector.broadcast %101 : vector<1x8x1xf32> to vector<1x8x8xf32>
    %103 = arith.mulf %98, %102 : vector<1x8x8xf32>
    %104 = arith.truncf %103 : vector<1x8x8xf32> to vector<1x8x8xbf16>
    %105 = vector.extract_strided_slice %39 {offsets = [0, 0, 24], sizes = [1, 8, 8], strides = [1, 1, 1]} : vector<1x8x32xbf16> to vector<1x8x8xbf16>
    "tpu.trace_start"() <{level = 10 : i32, message = "bqk,bkd->bqd"}> : () -> ()
    %cst_40 = arith.constant dense<0.000000e+00> : vector<1x8x8xf32>
    %106 = tpu.matmul %104, %105, %cst_40 {dimension_numbers = #tpu.dot_dimension_numbers<[2], [1], [1], [2], [0, 0, 0, 1, 1, 2], [0], [0]>} : vector<1x8x8xbf16>, vector<1x8x8xbf16>, vector<1x8x8xf32> -> vector<1x8x8xf32>
    "tpu.trace_stop"() : () -> ()
    %c0_41 = arith.constant 0 : index
    %c0_42 = arith.constant 0 : index
    %c24 = arith.constant 24 : index
    %107 = vector.load %arg13[%c0_41, %c0_42, %c24] : memref<1x8x32xf32, #tpu.memory_space<vmem>>, vector<1x8x8xf32>
    tpu.vector_store %arg13[%c0_41, %c0_42, %c24], %106 {strides = array<i32>} : memref<1x8x32xf32, #tpu.memory_space<vmem>>, vector<1x8x8xf32>,
    %c0_43 = arith.constant 0 : index
    %c0_44 = arith.constant 0 : index
    %c0_45 = arith.constant 0 : index
    %108 = vector.load %arg13[%c0_43, %c0_44, %c0_45] : memref<1x8x32xf32, #tpu.memory_space<vmem>>, vector<1x8x32xf32>
    %109 = vector.shape_cast %108 : vector<1x8x32xf32> to vector<8x32xf32>
    %110 = arith.truncf %109 : vector<8x32xf32> to vector<8x32xbf16>
    %111 = vector.extract_strided_slice %4 {offsets = [3, 0, 0], sizes = [1, 32, 32], strides = [1, 1, 1]} : vector<4x32x32xbf16> to vector<1x32x32xbf16>
    %112 = vector.shape_cast %111 : vector<1x32x32xbf16> to vector<32x32xbf16>
    %cst_46 = arith.constant dense<0.000000e+00> : vector<8x32xf32>
    %113 = tpu.matmul %110, %112, %cst_46 {dimension_numbers = #tpu.dot_dimension_numbers<[1], [0], [0], [1], [0, 0, 1, 1], [], []>} : vector<8x32xbf16>, vector<32x32xbf16>, vector<8x32xf32> -> vector<8x32xf32>
    %114 = vector.extract_strided_slice %8 {offsets = [3, 0], sizes = [1, 32], strides = [1, 1]} : vector<15x32xf32> to vector<1x32xf32>
    %115 = vector.broadcast %114 : vector<1x32xf32> to vector<8x32xf32>
    %116 = arith.addf %113, %115 : vector<8x32xf32>
    %117 = arith.addf %116, %14 : vector<8x32xf32>
    %118 = vector.extract_strided_slice %8 {offsets = [9, 0], sizes = [1, 32], strides = [1, 1]} : vector<15x32xf32> to vector<1x32xf32>
    %119 = vector.extract_strided_slice %8 {offsets = [10, 0], sizes = [1, 32], strides = [1, 1]} : vector<15x32xf32> to vector<1x32xf32>
    %cst_47 = arith.constant dense<0.000000e+00> : vector<8xf32>
    %120 = vector.multi_reduction <add>, %117, %cst_47 [1] : vector<8x32xf32> to vector<8xf32>
    %121 = vector.shape_cast %120 : vector<8xf32> to vector<8x1xf32>
    %cst_48 = arith.constant 3.200000e+01 : f32
    %122 = vector.broadcast %cst_48 : f32 to vector<8x1xf32>
    %123 = arith.divf %121, %122 : vector<8x1xf32>
    %124 = vector.broadcast %123 : vector<8x1xf32> to vector<8x32xf32>
    %125 = arith.subf %117, %124 : vector<8x32xf32>
    %126 = arith.mulf %125, %125 : vector<8x32xf32>
    %cst_49 = arith.constant dense<0.000000e+00> : vector<8xf32>
    %127 = vector.multi_reduction <add>, %126, %cst_49 [1] : vector<8x32xf32> to vector<8xf32>
    %128 = vector.shape_cast %127 : vector<8xf32> to vector<8x1xf32>
    %cst_50 = arith.constant 3.200000e+01 : f32
    %129 = vector.broadcast %cst_50 : f32 to vector<8x1xf32>
    %130 = arith.divf %128, %129 : vector<8x1xf32>
    %131 = vector.broadcast %123 : vector<8x1xf32> to vector<8x32xf32>
    %132 = arith.subf %117, %131 : vector<8x32xf32>
    %cst_51 = arith.constant 9.99999974E-6 : f32
    %133 = vector.broadcast %cst_51 : f32 to vector<8x1xf32>
    %134 = arith.addf %130, %133 : vector<8x1xf32>
    %135 = math.rsqrt %134 : vector<8x1xf32>
    %136 = vector.broadcast %135 : vector<8x1xf32> to vector<8x32xf32>
    %137 = arith.mulf %132, %136 : vector<8x32xf32>
    %138 = vector.broadcast %118 : vector<1x32xf32> to vector<8x32xf32>
    %139 = arith.mulf %137, %138 : vector<8x32xf32>
    %140 = vector.broadcast %119 : vector<1x32xf32> to vector<8x32xf32>
    %141 = arith.addf %139, %140 : vector<8x32xf32>
    %142 = arith.truncf %141 : vector<8x32xf32> to vector<8x32xbf16>
    %c0_52 = arith.constant 0 : index
    %c0_53 = arith.constant 0 : index
    %143 = vector.load %arg4[%c0_52, %c0_53] : memref<8x32xf32, #tpu.memory_space<vmem>>, vector<8x32xf32>
    %144 = arith.truncf %143 : vector<8x32xf32> to vector<8x32xbf16>
    %145 = vector.extract_strided_slice %6 {offsets = [0, 0, 0], sizes = [1, 32, 32], strides = [1, 1, 1]} : vector<4x32x32xbf16> to vector<1x32x32xbf16>
    %146 = vector.shape_cast %145 : vector<1x32x32xbf16> to vector<32x32xbf16>
    %cst_54 = arith.constant dense<0.000000e+00> : vector<8x32xf32>
    %147 = tpu.matmul %142, %146, %cst_54 {dimension_numbers = #tpu.dot_dimension_numbers<[1], [0], [0], [1], [0, 0, 1, 1], [], []>} : vector<8x32xbf16>, vector<32x32xbf16>, vector<8x32xf32> -> vector<8x32xf32>
    %148 = vector.extract_strided_slice %8 {offsets = [4, 0], sizes = [1, 32], strides = [1, 1]} : vector<15x32xf32> to vector<1x32xf32>
    %149 = vector.broadcast %148 : vector<1x32xf32> to vector<8x32xf32>
    %150 = arith.addf %147, %149 : vector<8x32xf32>
    %151 = vector.extract_strided_slice %6 {offsets = [1, 0, 0], sizes = [1, 32, 32], strides = [1, 1, 1]} : vector<4x32x32xbf16> to vector<1x32x32xbf16>
    %152 = vector.shape_cast %151 : vector<1x32x32xbf16> to vector<32x32xbf16>
    %cst_55 = arith.constant dense<0.000000e+00> : vector<8x32xf32>
    %153 = tpu.matmul %144, %152, %cst_55 {dimension_numbers = #tpu.dot_dimension_numbers<[1], [0], [0], [1], [0, 0, 1, 1], [], []>} : vector<8x32xbf16>, vector<32x32xbf16>, vector<8x32xf32> -> vector<8x32xf32>
    %154 = vector.extract_strided_slice %8 {offsets = [5, 0], sizes = [1, 32], strides = [1, 1]} : vector<15x32xf32> to vector<1x32xf32>
    %155 = vector.broadcast %154 : vector<1x32xf32> to vector<8x32xf32>
    %156 = arith.addf %153, %155 : vector<8x32xf32>
    %157 = vector.extract_strided_slice %6 {offsets = [2, 0, 0], sizes = [1, 32, 32], strides = [1, 1, 1]} : vector<4x32x32xbf16> to vector<1x32x32xbf16>
    %158 = vector.shape_cast %157 : vector<1x32x32xbf16> to vector<32x32xbf16>
    %cst_56 = arith.constant dense<0.000000e+00> : vector<8x32xf32>
    %159 = tpu.matmul %144, %158, %cst_56 {dimension_numbers = #tpu.dot_dimension_numbers<[1], [0], [0], [1], [0, 0, 1, 1], [], []>} : vector<8x32xbf16>, vector<32x32xbf16>, vector<8x32xf32> -> vector<8x32xf32>
    %160 = vector.extract_strided_slice %8 {offsets = [6, 0], sizes = [1, 32], strides = [1, 1]} : vector<15x32xf32> to vector<1x32xf32>
    %161 = vector.broadcast %160 : vector<1x32xf32> to vector<8x32xf32>
    %162 = arith.addf %159, %161 : vector<8x32xf32>
    %163 = arith.truncf %150 : vector<8x32xf32> to vector<8x32xbf16>
    %164 = vector.shape_cast %163 : vector<8x32xbf16> to vector<1x8x32xbf16>
    %165 = arith.truncf %156 : vector<8x32xf32> to vector<8x32xbf16>
    %166 = vector.shape_cast %165 : vector<8x32xbf16> to vector<1x8x32xbf16>
    %167 = arith.truncf %162 : vector<8x32xf32> to vector<8x32xbf16>
    %168 = vector.shape_cast %167 : vector<8x32xbf16> to vector<1x8x32xbf16>
    %169 = vector.extract_strided_slice %164 {offsets = [0, 0, 0], sizes = [1, 8, 8], strides = [1, 1, 1]} : vector<1x8x32xbf16> to vector<1x8x8xbf16>
    %170 = vector.extract_strided_slice %166 {offsets = [0, 0, 0], sizes = [1, 8, 8], strides = [1, 1, 1]} : vector<1x8x32xbf16> to vector<1x8x8xbf16>
    "tpu.trace_start"() <{level = 10 : i32, message = "bqd,bkd->bqk"}> : () -> ()
    %cst_57 = arith.constant dense<0.000000e+00> : vector<1x8x8xf32>
    %171 = tpu.matmul %169, %170, %cst_57 {dimension_numbers = #tpu.dot_dimension_numbers<[2], [2], [1], [1], [0, 0, 0, 1, 1, 1], [0], [0]>} : vector<1x8x8xbf16>, vector<1x8x8xbf16>, vector<1x8x8xf32> -> vector<1x8x8xf32>
    "tpu.trace_stop"() : () -> ()
    %cst_58 = arith.constant dense<0xFF800000> : vector<1x8xf32>
    %172 = vector.multi_reduction <maximumf>, %171, %cst_58 [2] : vector<1x8x8xf32> to vector<1x8xf32>
    %173 = vector.shape_cast %172 : vector<1x8xf32> to vector<1x8x1xf32>
    %174 = vector.broadcast %173 : vector<1x8x1xf32> to vector<1x8x8xf32>
    %175 = arith.subf %171, %174 : vector<1x8x8xf32>
    %176 = math.exp %175 : vector<1x8x8xf32>
    %cst_59 = arith.constant dense<0.000000e+00> : vector<1x8xf32>
    %177 = vector.multi_reduction <add>, %176, %cst_59 [2] : vector<1x8x8xf32> to vector<1x8xf32>
    %178 = vector.shape_cast %177 : vector<1x8xf32> to vector<1x8x1xf32>
    %179 = tpu.reciprocal %178 {approx = true} : vector<1x8x1xf32> -> vector<1x8x1xf32>
    %180 = vector.broadcast %179 : vector<1x8x1xf32> to vector<1x8x8xf32>
    %181 = arith.mulf %176, %180 : vector<1x8x8xf32>
    %182 = arith.truncf %181 : vector<1x8x8xf32> to vector<1x8x8xbf16>
    %183 = vector.extract_strided_slice %168 {offsets = [0, 0, 0], sizes = [1, 8, 8], strides = [1, 1, 1]} : vector<1x8x32xbf16> to vector<1x8x8xbf16>
    "tpu.trace_start"() <{level = 10 : i32, message = "bqk,bkd->bqd"}> : () -> ()
    %cst_60 = arith.constant dense<0.000000e+00> : vector<1x8x8xf32>
    %184 = tpu.matmul %182, %183, %cst_60 {dimension_numbers = #tpu.dot_dimension_numbers<[2], [1], [1], [2], [0, 0, 0, 1, 1, 2], [0], [0]>} : vector<1x8x8xbf16>, vector<1x8x8xbf16>, vector<1x8x8xf32> -> vector<1x8x8xf32>
    "tpu.trace_stop"() : () -> ()
    %c0_61 = arith.constant 0 : index
    %c0_62 = arith.constant 0 : index
    %c0_63 = arith.constant 0 : index
    %185 = vector.load %arg13[%c0_61, %c0_62, %c0_63] : memref<1x8x32xf32, #tpu.memory_space<vmem>>, vector<1x8x8xf32>
    tpu.vector_store %arg13[%c0_61, %c0_62, %c0_63], %184 {strides = array<i32>} : memref<1x8x32xf32, #tpu.memory_space<vmem>>, vector<1x8x8xf32>,
    %186 = vector.extract_strided_slice %164 {offsets = [0, 0, 8], sizes = [1, 8, 8], strides = [1, 1, 1]} : vector<1x8x32xbf16> to vector<1x8x8xbf16>
    %187 = vector.extract_strided_slice %166 {offsets = [0, 0, 8], sizes = [1, 8, 8], strides = [1, 1, 1]} : vector<1x8x32xbf16> to vector<1x8x8xbf16>
    "tpu.trace_start"() <{level = 10 : i32, message = "bqd,bkd->bqk"}> : () -> ()
    %cst_64 = arith.constant dense<0.000000e+00> : vector<1x8x8xf32>
    %188 = tpu.matmul %186, %187, %cst_64 {dimension_numbers = #tpu.dot_dimension_numbers<[2], [2], [1], [1], [0, 0, 0, 1, 1, 1], [0], [0]>} : vector<1x8x8xbf16>, vector<1x8x8xbf16>, vector<1x8x8xf32> -> vector<1x8x8xf32>
    "tpu.trace_stop"() : () -> ()
    %cst_65 = arith.constant dense<0xFF800000> : vector<1x8xf32>
    %189 = vector.multi_reduction <maximumf>, %188, %cst_65 [2] : vector<1x8x8xf32> to vector<1x8xf32>
    %190 = vector.shape_cast %189 : vector<1x8xf32> to vector<1x8x1xf32>
    %191 = vector.broadcast %190 : vector<1x8x1xf32> to vector<1x8x8xf32>
    %192 = arith.subf %188, %191 : vector<1x8x8xf32>
    %193 = math.exp %192 : vector<1x8x8xf32>
    %cst_66 = arith.constant dense<0.000000e+00> : vector<1x8xf32>
    %194 = vector.multi_reduction <add>, %193, %cst_66 [2] : vector<1x8x8xf32> to vector<1x8xf32>
    %195 = vector.shape_cast %194 : vector<1x8xf32> to vector<1x8x1xf32>
    %196 = tpu.reciprocal %195 {approx = true} : vector<1x8x1xf32> -> vector<1x8x1xf32>
    %197 = vector.broadcast %196 : vector<1x8x1xf32> to vector<1x8x8xf32>
    %198 = arith.mulf %193, %197 : vector<1x8x8xf32>
    %199 = arith.truncf %198 : vector<1x8x8xf32> to vector<1x8x8xbf16>
    %200 = vector.extract_strided_slice %168 {offsets = [0, 0, 8], sizes = [1, 8, 8], strides = [1, 1, 1]} : vector<1x8x32xbf16> to vector<1x8x8xbf16>
    "tpu.trace_start"() <{level = 10 : i32, message = "bqk,bkd->bqd"}> : () -> ()
    %cst_67 = arith.constant dense<0.000000e+00> : vector<1x8x8xf32>
    %201 = tpu.matmul %199, %200, %cst_67 {dimension_numbers = #tpu.dot_dimension_numbers<[2], [1], [1], [2], [0, 0, 0, 1, 1, 2], [0], [0]>} : vector<1x8x8xbf16>, vector<1x8x8xbf16>, vector<1x8x8xf32> -> vector<1x8x8xf32>
    "tpu.trace_stop"() : () -> ()
    %c0_68 = arith.constant 0 : index
    %c0_69 = arith.constant 0 : index
    %c8_70 = arith.constant 8 : index
    %202 = vector.load %arg13[%c0_68, %c0_69, %c8_70] : memref<1x8x32xf32, #tpu.memory_space<vmem>>, vector<1x8x8xf32>
    tpu.vector_store %arg13[%c0_68, %c0_69, %c8_70], %201 {strides = array<i32>} : memref<1x8x32xf32, #tpu.memory_space<vmem>>, vector<1x8x8xf32>,
    %203 = vector.extract_strided_slice %164 {offsets = [0, 0, 16], sizes = [1, 8, 8], strides = [1, 1, 1]} : vector<1x8x32xbf16> to vector<1x8x8xbf16>
    %204 = vector.extract_strided_slice %166 {offsets = [0, 0, 16], sizes = [1, 8, 8], strides = [1, 1, 1]} : vector<1x8x32xbf16> to vector<1x8x8xbf16>
    "tpu.trace_start"() <{level = 10 : i32, message = "bqd,bkd->bqk"}> : () -> ()
    %cst_71 = arith.constant dense<0.000000e+00> : vector<1x8x8xf32>
    %205 = tpu.matmul %203, %204, %cst_71 {dimension_numbers = #tpu.dot_dimension_numbers<[2], [2], [1], [1], [0, 0, 0, 1, 1, 1], [0], [0]>} : vector<1x8x8xbf16>, vector<1x8x8xbf16>, vector<1x8x8xf32> -> vector<1x8x8xf32>
    "tpu.trace_stop"() : () -> ()
    %cst_72 = arith.constant dense<0xFF800000> : vector<1x8xf32>
    %206 = vector.multi_reduction <maximumf>, %205, %cst_72 [2] : vector<1x8x8xf32> to vector<1x8xf32>
    %207 = vector.shape_cast %206 : vector<1x8xf32> to vector<1x8x1xf32>
    %208 = vector.broadcast %207 : vector<1x8x1xf32> to vector<1x8x8xf32>
    %209 = arith.subf %205, %208 : vector<1x8x8xf32>
    %210 = math.exp %209 : vector<1x8x8xf32>
    %cst_73 = arith.constant dense<0.000000e+00> : vector<1x8xf32>
    %211 = vector.multi_reduction <add>, %210, %cst_73 [2] : vector<1x8x8xf32> to vector<1x8xf32>
    %212 = vector.shape_cast %211 : vector<1x8xf32> to vector<1x8x1xf32>
    %213 = tpu.reciprocal %212 {approx = true} : vector<1x8x1xf32> -> vector<1x8x1xf32>
    %214 = vector.broadcast %213 : vector<1x8x1xf32> to vector<1x8x8xf32>
    %215 = arith.mulf %210, %214 : vector<1x8x8xf32>
    %216 = arith.truncf %215 : vector<1x8x8xf32> to vector<1x8x8xbf16>
    %217 = vector.extract_strided_slice %168 {offsets = [0, 0, 16], sizes = [1, 8, 8], strides = [1, 1, 1]} : vector<1x8x32xbf16> to vector<1x8x8xbf16>
    "tpu.trace_start"() <{level = 10 : i32, message = "bqk,bkd->bqd"}> : () -> ()
    %cst_74 = arith.constant dense<0.000000e+00> : vector<1x8x8xf32>
    %218 = tpu.matmul %216, %217, %cst_74 {dimension_numbers = #tpu.dot_dimension_numbers<[2], [1], [1], [2], [0, 0, 0, 1, 1, 2], [0], [0]>} : vector<1x8x8xbf16>, vector<1x8x8xbf16>, vector<1x8x8xf32> -> vector<1x8x8xf32>
    "tpu.trace_stop"() : () -> ()
    %c0_75 = arith.constant 0 : index
    %c0_76 = arith.constant 0 : index
    %c16_77 = arith.constant 16 : index
    %219 = vector.load %arg13[%c0_75, %c0_76, %c16_77] : memref<1x8x32xf32, #tpu.memory_space<vmem>>, vector<1x8x8xf32>
    tpu.vector_store %arg13[%c0_75, %c0_76, %c16_77], %218 {strides = array<i32>} : memref<1x8x32xf32, #tpu.memory_space<vmem>>, vector<1x8x8xf32>,
    %220 = vector.extract_strided_slice %164 {offsets = [0, 0, 24], sizes = [1, 8, 8], strides = [1, 1, 1]} : vector<1x8x32xbf16> to vector<1x8x8xbf16>
    %221 = vector.extract_strided_slice %166 {offsets = [0, 0, 24], sizes = [1, 8, 8], strides = [1, 1, 1]} : vector<1x8x32xbf16> to vector<1x8x8xbf16>
    "tpu.trace_start"() <{level = 10 : i32, message = "bqd,bkd->bqk"}> : () -> ()
    %cst_78 = arith.constant dense<0.000000e+00> : vector<1x8x8xf32>
    %222 = tpu.matmul %220, %221, %cst_78 {dimension_numbers = #tpu.dot_dimension_numbers<[2], [2], [1], [1], [0, 0, 0, 1, 1, 1], [0], [0]>} : vector<1x8x8xbf16>, vector<1x8x8xbf16>, vector<1x8x8xf32> -> vector<1x8x8xf32>
    "tpu.trace_stop"() : () -> ()
    %cst_79 = arith.constant dense<0xFF800000> : vector<1x8xf32>
    %223 = vector.multi_reduction <maximumf>, %222, %cst_79 [2] : vector<1x8x8xf32> to vector<1x8xf32>
    %224 = vector.shape_cast %223 : vector<1x8xf32> to vector<1x8x1xf32>
    %225 = vector.broadcast %224 : vector<1x8x1xf32> to vector<1x8x8xf32>
    %226 = arith.subf %222, %225 : vector<1x8x8xf32>
    %227 = math.exp %226 : vector<1x8x8xf32>
    %cst_80 = arith.constant dense<0.000000e+00> : vector<1x8xf32>
    %228 = vector.multi_reduction <add>, %227, %cst_80 [2] : vector<1x8x8xf32> to vector<1x8xf32>
    %229 = vector.shape_cast %228 : vector<1x8xf32> to vector<1x8x1xf32>
    %230 = tpu.reciprocal %229 {approx = true} : vector<1x8x1xf32> -> vector<1x8x1xf32>
    %231 = vector.broadcast %230 : vector<1x8x1xf32> to vector<1x8x8xf32>
    %232 = arith.mulf %227, %231 : vector<1x8x8xf32>
    %233 = arith.truncf %232 : vector<1x8x8xf32> to vector<1x8x8xbf16>
    %234 = vector.extract_strided_slice %168 {offsets = [0, 0, 24], sizes = [1, 8, 8], strides = [1, 1, 1]} : vector<1x8x32xbf16> to vector<1x8x8xbf16>
    "tpu.trace_start"() <{level = 10 : i32, message = "bqk,bkd->bqd"}> : () -> ()
    %cst_81 = arith.constant dense<0.000000e+00> : vector<1x8x8xf32>
    %235 = tpu.matmul %233, %234, %cst_81 {dimension_numbers = #tpu.dot_dimension_numbers<[2], [1], [1], [2], [0, 0, 0, 1, 1, 2], [0], [0]>} : vector<1x8x8xbf16>, vector<1x8x8xbf16>, vector<1x8x8xf32> -> vector<1x8x8xf32>
    "tpu.trace_stop"() : () -> ()
    %c0_82 = arith.constant 0 : index
    %c0_83 = arith.constant 0 : index
    %c24_84 = arith.constant 24 : index
    %236 = vector.load %arg13[%c0_82, %c0_83, %c24_84] : memref<1x8x32xf32, #tpu.memory_space<vmem>>, vector<1x8x8xf32>
    tpu.vector_store %arg13[%c0_82, %c0_83, %c24_84], %235 {strides = array<i32>} : memref<1x8x32xf32, #tpu.memory_space<vmem>>, vector<1x8x8xf32>,
    %c0_85 = arith.constant 0 : index
    %c0_86 = arith.constant 0 : index
    %c0_87 = arith.constant 0 : index
    %237 = vector.load %arg13[%c0_85, %c0_86, %c0_87] : memref<1x8x32xf32, #tpu.memory_space<vmem>>, vector<1x8x32xf32>
    %238 = vector.shape_cast %237 : vector<1x8x32xf32> to vector<8x32xf32>
    %239 = arith.truncf %238 : vector<8x32xf32> to vector<8x32xbf16>
    %240 = vector.extract_strided_slice %6 {offsets = [3, 0, 0], sizes = [1, 32, 32], strides = [1, 1, 1]} : vector<4x32x32xbf16> to vector<1x32x32xbf16>
    %241 = vector.shape_cast %240 : vector<1x32x32xbf16> to vector<32x32xbf16>
    %cst_88 = arith.constant dense<0.000000e+00> : vector<8x32xf32>
    %242 = tpu.matmul %239, %241, %cst_88 {dimension_numbers = #tpu.dot_dimension_numbers<[1], [0], [0], [1], [0, 0, 1, 1], [], []>} : vector<8x32xbf16>, vector<32x32xbf16>, vector<8x32xf32> -> vector<8x32xf32>
    %243 = vector.extract_strided_slice %8 {offsets = [7, 0], sizes = [1, 32], strides = [1, 1]} : vector<15x32xf32> to vector<1x32xf32>
    %244 = vector.broadcast %243 : vector<1x32xf32> to vector<8x32xf32>
    %245 = arith.addf %242, %244 : vector<8x32xf32>
    %246 = arith.addf %245, %141 : vector<8x32xf32>
    %247 = vector.extract_strided_slice %8 {offsets = [11, 0], sizes = [1, 32], strides = [1, 1]} : vector<15x32xf32> to vector<1x32xf32>
    %248 = vector.extract_strided_slice %8 {offsets = [12, 0], sizes = [1, 32], strides = [1, 1]} : vector<15x32xf32> to vector<1x32xf32>
    %cst_89 = arith.constant dense<0.000000e+00> : vector<8xf32>
    %249 = vector.multi_reduction <add>, %246, %cst_89 [1] : vector<8x32xf32> to vector<8xf32>
    %250 = vector.shape_cast %249 : vector<8xf32> to vector<8x1xf32>
    %cst_90 = arith.constant 3.200000e+01 : f32
    %251 = vector.broadcast %cst_90 : f32 to vector<8x1xf32>
    %252 = arith.divf %250, %251 : vector<8x1xf32>
    %253 = vector.broadcast %252 : vector<8x1xf32> to vector<8x32xf32>
    %254 = arith.subf %246, %253 : vector<8x32xf32>
    %255 = arith.mulf %254, %254 : vector<8x32xf32>
    %cst_91 = arith.constant dense<0.000000e+00> : vector<8xf32>
    %256 = vector.multi_reduction <add>, %255, %cst_91 [1] : vector<8x32xf32> to vector<8xf32>
    %257 = vector.shape_cast %256 : vector<8xf32> to vector<8x1xf32>
    %cst_92 = arith.constant 3.200000e+01 : f32
    %258 = vector.broadcast %cst_92 : f32 to vector<8x1xf32>
    %259 = arith.divf %257, %258 : vector<8x1xf32>
    %260 = vector.broadcast %252 : vector<8x1xf32> to vector<8x32xf32>
    %261 = arith.subf %246, %260 : vector<8x32xf32>
    %cst_93 = arith.constant 9.99999974E-6 : f32
    %262 = vector.broadcast %cst_93 : f32 to vector<8x1xf32>
    %263 = arith.addf %259, %262 : vector<8x1xf32>
    %264 = math.rsqrt %263 : vector<8x1xf32>
    %265 = vector.broadcast %264 : vector<8x1xf32> to vector<8x32xf32>
    %266 = arith.mulf %261, %265 : vector<8x32xf32>
    %267 = vector.broadcast %247 : vector<1x32xf32> to vector<8x32xf32>
    %268 = arith.mulf %266, %267 : vector<8x32xf32>
    %269 = vector.broadcast %248 : vector<1x32xf32> to vector<8x32xf32>
    %270 = arith.addf %268, %269 : vector<8x32xf32>
    %271 = arith.truncf %270 : vector<8x32xf32> to vector<8x32xbf16>
    %c0_94 = arith.constant 0 : index
    %c0_95 = arith.constant 0 : index
    %c0_96 = arith.constant 0 : index
    %272 = vector.load %arg7[%c0_94, %c0_95, %c0_96] : memref<1x32x64xbf16, #tpu.memory_space<vmem>>, vector<1x32x64xbf16>
    %273 = vector.shape_cast %272 : vector<1x32x64xbf16> to vector<32x64xbf16>
    %cst_97 = arith.constant dense<0.000000e+00> : vector<8x64xf32>
    %274 = tpu.matmul %271, %273, %cst_97 {dimension_numbers = #tpu.dot_dimension_numbers<[1], [0], [0], [1], [0, 0, 1, 1], [], []>} : vector<8x32xbf16>, vector<32x64xbf16>, vector<8x64xf32> -> vector<8x64xf32>
    %c0_98 = arith.constant 0 : index
    %c0_99 = arith.constant 0 : index
    %c0_100 = arith.constant 0 : index
    %275 = vector.load %arg8[%c0_98, %c0_99, %c0_100] : memref<1x1x64xf32, #tpu.memory_space<vmem>>, vector<1x1x64xf32>
    %276 = vector.shape_cast %275 : vector<1x1x64xf32> to vector<1x64xf32>
    %277 = vector.broadcast %276 : vector<1x64xf32> to vector<8x64xf32>
    %278 = arith.addf %274, %277 : vector<8x64xf32>
    %cst_101 = arith.constant 0.000000e+00 : f32
    %279 = vector.broadcast %cst_101 : f32 to vector<8x64xf32>
    %280 = arith.maximumf %278, %279 : vector<8x64xf32>
    %281 = arith.truncf %280 : vector<8x64xf32> to vector<8x64xbf16>
    %c0_102 = arith.constant 0 : index
    %c0_103 = arith.constant 0 : index
    %c0_104 = arith.constant 0 : index
    %282 = vector.load %arg9[%c0_102, %c0_103, %c0_104] : memref<1x64x32xbf16, #tpu.memory_space<vmem>>, vector<1x64x32xbf16>
    %283 = vector.shape_cast %282 : vector<1x64x32xbf16> to vector<64x32xbf16>
    %cst_105 = arith.constant dense<0.000000e+00> : vector<8x32xf32>
    %284 = tpu.matmul %281, %283, %cst_105 {dimension_numbers = #tpu.dot_dimension_numbers<[1], [0], [0], [1], [0, 0, 1, 1], [], []>} : vector<8x64xbf16>, vector<64x32xbf16>, vector<8x32xf32> -> vector<8x32xf32>
    %285 = vector.extract_strided_slice %8 {offsets = [8, 0], sizes = [1, 32], strides = [1, 1]} : vector<15x32xf32> to vector<1x32xf32>
    %286 = vector.broadcast %285 : vector<1x32xf32> to vector<8x32xf32>
    %287 = arith.addf %284, %286 : vector<8x32xf32>
    %288 = arith.addf %287, %270 : vector<8x32xf32>
    %289 = vector.extract_strided_slice %8 {offsets = [13, 0], sizes = [1, 32], strides = [1, 1]} : vector<15x32xf32> to vector<1x32xf32>
    %290 = vector.extract_strided_slice %8 {offsets = [14, 0], sizes = [1, 32], strides = [1, 1]} : vector<15x32xf32> to vector<1x32xf32>
    %cst_106 = arith.constant dense<0.000000e+00> : vector<8xf32>
    %291 = vector.multi_reduction <add>, %288, %cst_106 [1] : vector<8x32xf32> to vector<8xf32>
    %292 = vector.shape_cast %291 : vector<8xf32> to vector<8x1xf32>
    %cst_107 = arith.constant 3.200000e+01 : f32
    %293 = vector.broadcast %cst_107 : f32 to vector<8x1xf32>
    %294 = arith.divf %292, %293 : vector<8x1xf32>
    %295 = vector.broadcast %294 : vector<8x1xf32> to vector<8x32xf32>
    %296 = arith.subf %288, %295 : vector<8x32xf32>
    %297 = arith.mulf %296, %296 : vector<8x32xf32>
    %cst_108 = arith.constant dense<0.000000e+00> : vector<8xf32>
    %298 = vector.multi_reduction <add>, %297, %cst_108 [1] : vector<8x32xf32> to vector<8xf32>
    %299 = vector.shape_cast %298 : vector<8xf32> to vector<8x1xf32>
    %cst_109 = arith.constant 3.200000e+01 : f32
    %300 = vector.broadcast %cst_109 : f32 to vector<8x1xf32>
    %301 = arith.divf %299, %300 : vector<8x1xf32>
    %302 = vector.broadcast %294 : vector<8x1xf32> to vector<8x32xf32>
    %303 = arith.subf %288, %302 : vector<8x32xf32>
    %cst_110 = arith.constant 9.99999974E-6 : f32
    %304 = vector.broadcast %cst_110 : f32 to vector<8x1xf32>
    %305 = arith.addf %301, %304 : vector<8x1xf32>
    %306 = math.rsqrt %305 : vector<8x1xf32>
    %307 = vector.broadcast %306 : vector<8x1xf32> to vector<8x32xf32>
    %308 = arith.mulf %303, %307 : vector<8x32xf32>
    %309 = vector.broadcast %289 : vector<1x32xf32> to vector<8x32xf32>
    %310 = arith.mulf %308, %309 : vector<8x32xf32>
    %311 = vector.broadcast %290 : vector<1x32xf32> to vector<8x32xf32>
    %312 = arith.addf %310, %311 : vector<8x32xf32>
    %c1_i32 = arith.constant 1 : i32
    %313 = arith.cmpi slt, %arg1, %c1_i32 : i32
    %314 = arith.extui %313 : i1 to i32
    %c0_i32_111 = arith.constant 0 : i32
    %315 = arith.cmpi ne, %314, %c0_i32_111 : i32
    scf.if %315 {
      %c0_114 = arith.constant 0 : index
      %c0_115 = arith.constant 0 : index
      %319 = vector.load %arg12[%c0_114, %c0_115] : memref<8x32xf32, #tpu.memory_space<vmem>>, vector<8x32xf32>
      tpu.vector_store %arg12[%c0_114, %c0_115], %312 {strides = array<i32>} : memref<8x32xf32, #tpu.memory_space<vmem>>, vector<8x32xf32>,
    } else {
    }
    %c1_i32_112 = arith.constant 1 : i32
    %316 = arith.cmpi eq, %arg1, %c1_i32_112 : i32
    %317 = arith.extui %316 : i1 to i32
    %c0_i32_113 = arith.constant 0 : i32
    %318 = arith.cmpi ne, %317, %c0_i32_113 : i32
    scf.if %318 {
      %c0_114 = arith.constant 0 : index
      %c0_115 = arith.constant 0 : index
      %319 = vector.load %arg11[%c0_114, %c0_115] : memref<8x32xf32, #tpu.memory_space<vmem>>, vector<8x32xf32>
      tpu.vector_store %arg11[%c0_114, %c0_115], %312 {strides = array<i32>} : memref<8x32xf32, #tpu.memory_space<vmem>>, vector<8x32xf32>,
    } else {
    }
    return
  }
  func.func @transform_0(%arg0: i32, %arg1: i32) -> (i32, i32) {
    %c0_i32 = arith.constant 0 : i32
    %c0_i32_0 = arith.constant 0 : i32
    return %arg0, %c0_i32 : i32, i32
  }
  func.func @transform_1(%arg0: i32, %arg1: i32) -> (i32, i32, i32) {
    %c0_i32 = arith.constant 0 : i32
    %c0_i32_0 = arith.constant 0 : i32
    %c0_i32_1 = arith.constant 0 : i32
    return %arg0, %c0_i32, %c0_i32_0 : i32, i32, i32
  }
  func.func @transform_2(%arg0: i32, %arg1: i32) -> (i32, i32) {
    %c0_i32 = arith.constant 0 : i32
    %c0_i32_0 = arith.constant 0 : i32
    return %arg0, %c0_i32 : i32, i32
  }
  func.func @transform_3(%arg0: i32, %arg1: i32) -> (i32, i32, i32, i32) {
    %c0_i32 = arith.constant 0 : i32
    %c0_i32_0 = arith.constant 0 : i32
    %c0_i32_1 = arith.constant 0 : i32
    %c0_i32_2 = arith.constant 0 : i32
    return %arg1, %c0_i32, %c0_i32_0, %c0_i32_1 : i32, i32, i32, i32
  }
  func.func @transform_4(%arg0: i32, %arg1: i32) -> (i32, i32, i32, i32) {
    %c0_i32 = arith.constant 0 : i32
    %c0_i32_0 = arith.constant 0 : i32
    %c0_i32_1 = arith.constant 0 : i32
    %c0_i32_2 = arith.constant 0 : i32
    return %arg1, %c0_i32, %c0_i32_0, %c0_i32_1 : i32, i32, i32, i32
  }
  func.func @transform_5(%arg0: i32, %arg1: i32) -> (i32, i32, i32) {
    %c0_i32 = arith.constant 0 : i32
    %c0_i32_0 = arith.constant 0 : i32
    %c0_i32_1 = arith.constant 0 : i32
    return %arg1, %c0_i32, %c0_i32_0 : i32, i32, i32
  }
  func.func @transform_6(%arg0: i32, %arg1: i32) -> (i32, i32, i32) {
    %c0_i32 = arith.constant 0 : i32
    %c0_i32_0 = arith.constant 0 : i32
    %c0_i32_1 = arith.constant 0 : i32
    return %arg1, %c0_i32, %c0_i32_0 : i32, i32, i32
  }
  func.func @transform_7(%arg0: i32, %arg1: i32) -> (i32, i32, i32) {
    %c0_i32 = arith.constant 0 : i32
    %c0_i32_0 = arith.constant 0 : i32
    %c0_i32_1 = arith.constant 0 : i32
    return %arg1, %c0_i32, %c0_i32_0 : i32, i32, i32
  }
  func.func @transform_8(%arg0: i32, %arg1: i32) -> (i32, i32, i32) {
    %c0_i32 = arith.constant 0 : i32
    %c0_i32_0 = arith.constant 0 : i32
    %c0_i32_1 = arith.constant 0 : i32
    return %arg1, %c0_i32, %c0_i32_0 : i32, i32, i32
  }
  func.func @transform_9(%arg0: i32, %arg1: i32) -> (i32, i32) {
    %c0_i32 = arith.constant 0 : i32
    %c0_i32_0 = arith.constant 0 : i32
    return %arg0, %c0_i32 : i32, i32
  }
}

</mosaic_0001>

<llo_original>
// kernel: tpu_custom_call.1
$region0: #{tpu_custom_call.1}
  #allocation0 [shape = 'u32[]', space=smem, size = 0x4, offset = 0x4, fixed_abs, tag = 'smem constant byte address 0x4 - core index']
  #allocation1 [shape = 'u32[144,128]{1,0:T(1,128)}', space=vmem, size = 0x12000, scoped, tag = 'internal scratch']
  #allocation2 [shape = 'f32[8,32]{1,0:T(8,128)}', space=vmem, size = 0x1000, scoped, tag = 'scratch operand']
  #allocation3 [shape = 'f32[1,8,32]{2,1,0:T(8,128)}', space=vmem, size = 0x1000, scoped, tag = 'scratch operand']
  %s0 = inlined_call_operand.hbm [shape: f32[16,32], index: 0, kind: input, shape index: {}]
  %s1 = inlined_call_operand.vmem [shape: f32[2,1,32], index: 1, kind: input, shape index: {}]
  %s2 = inlined_call_operand.hbm [shape: f32[16,32], index: 2, kind: input, shape index: {}]
  %s3 = inlined_call_operand.vmem [shape: bf16[2,4,32,32], index: 3, kind: input, shape index: {}]
  %s4 = inlined_call_operand.hbm [shape: bf16[2,4,32,32], index: 4, kind: input, shape index: {}]
  %s5 = inlined_call_operand.hbm [shape: bf16[2,32,64], index: 5, kind: input, shape index: {}]
  %s6 = inlined_call_operand.vmem [shape: f32[2,1,64], index: 6, kind: input, shape index: {}]
  %s7 = inlined_call_operand.vmem [shape: bf16[2,64,32], index: 7, kind: input, shape index: {}]
  %s8 = inlined_call_operand.vmem [shape: f32[2,15,32], index: 8, kind: input, shape index: {}]
  %s9 = inlined_call_operand.hbm [shape: f32[16,32], index: 9, kind: output, shape index: {}]
  %s10 = sld [smem:[#allocation0]]
  $region97: #{tpu_custom_call.1} parent=0
    _
  %s12 = ssub.s32 1, %s10
  %s13 = scalar_select 0, %s12, %s10
  $region1: #{tpu_custom_call.1} parent=0
    #allocation4 [shape = 'u8[8192]{0}', space=vmem, size = 0x2000, scoped, tag = 'input window, operand 0']
    #allocation5 [shape = 's32[2]{0}', space=sflag, size = 0x8, scoped, tag = 'scoped memory for tpu_custom_call.1']
    #allocation6 [shape = 's32[2]{0}', space=sflag, size = 0x8, scoped, tag = 'scoped memory for tpu_custom_call.1']
    #allocation7 [shape = 'u8[8192]{0}', space=vmem, size = 0x2000, scoped, tag = 'input window, operand 2']
    #allocation8 [shape = 's32[2]{0}', space=sflag, size = 0x8, scoped, tag = 'scoped memory for tpu_custom_call.1']
    #allocation9 [shape = 'u8[65536]{0}', space=vmem, size = 0x10000, scoped, tag = 'input window, operand 4']
    #allocation10 [shape = 'u8[16384]{0}', space=vmem, size = 0x4000, scoped, tag = 'input window, operand 5']
    #allocation11 [shape = 's32[2]{0}', space=sflag, size = 0x8, scoped, tag = 'scoped memory for tpu_custom_call.1']
    #allocation12 [shape = 'u8[8192]{0}', space=vmem, size = 0x2000, scoped, tag = 'output window, operand 0']
    %14 = vsyncpa [#allocation5], 0
    %s15 = scalar_lea.sflag [#allocation5], 1
    %16 = vsyncpa %s15, 0
    %17 = vsyncpa [#allocation8], 0
    %s18 = scalar_lea.sflag [#allocation8], 1
    %19 = vsyncpa %s18, 0
    %20 = vsyncpa [#allocation11], 0
    %s21 = scalar_lea.sflag [#allocation11], 1
    %22 = vsyncpa %s21, 0
    %23 = vsyncpa [#allocation6], 0
    %s24 = scalar_lea.sflag [#allocation6], 1
    %25 = vsyncpa %s24, 0
    loop: start=0, step=1, limit=6
    $region2: #{tpu_custom_call.1} parent=1 // loop_pre_header
      _
    $region3: #{tpu_custom_call.1} parent=1 // loop_header
      %s27 = sphi 0, %s31
      %p28 = scmp.ge.s32.totalorder %s27, 6
      %s34 = sphi 0, %s46
      %s35 = sphi 0, %s42
      %s36 = sphi 0, %s34
      %s37 = sphi 0, %s35
      %s38 = sphi 0, %s36
      %s39 = sphi 0, %s37
      %s49 = sphi 0, %s51
      %s52 = sphi 0, %s49
      %s53 = sphi 0, %s52
      %s69 = sphi 0, %s53
      %s75 = sphi 0, %s77
      %s78 = sphi 0, %s75
      %s79 = sphi 0, %s78
      %s95 = sphi 0, %s79
      %s101 = sphi 0, %s103
      %s104 = sphi 0, %s101
      %s105 = sphi 0, %s104
      %s121 = sphi 0, %s105
      %s127 = sphi 0, %s129
      %s130 = sphi 0, %s127
      %s131 = sphi 0, %s130
      %s147 = sphi 0, %s131
      %s153 = sphi 0, %s155
      %s156 = sphi 0, %s153
      %s157 = sphi 0, %s156
      %s173 = sphi 0, %s157
      %s179 = sphi 0, %s181
      %s182 = sphi 0, %s179
      %s183 = sphi 0, %s182
      %s199 = sphi 0, %s183
      %s205 = sphi 0, %s207
      %s208 = sphi 0, %s205
      %s209 = sphi 0, %s208
      %s225 = sphi 0, %s209
      %s231 = sphi 0, %s233
      %s234 = sphi 0, %s231
      %s235 = sphi 0, %s234
      %s251 = sphi 0, %s235
      %s257 = sphi 0, %s259
      %s260 = sphi 0, %s257
      %s261 = sphi 0, %s260
      %s277 = sphi 0, %s261
      %s283 = sphi 0, %s285
      %s286 = sphi 0, %s283
      %s287 = sphi 0, %s286
      %s303 = sphi 0, %s287
    $region4: #{tpu_custom_call.1} parent=1 // loop_header_branch
      %30 = sbr.rel (%p28) target = $region8
    $region5: #{tpu_custom_call.1} parent=1 // loop_body
      %s32 = ssub.s32 %s27, 1
      %s33 = ssub.s32 %s27, 2
      %s40 = sadd.s32 1, %s35
      %p41 = scmp.ge.s32.totalorder %s40, 2
      %s42 = scalar_select %p41, 0, %s40
      %s43 = sadd.s32 1, %s34
      %s44 = scalar_select %p41, %s43, %s34
      %p45 = scmp.ge.s32.totalorder %s44, 2
      %s46 = scalar_select %p45, 0, %s44
      %s47 = ssub.s32 %s34, %s46
      %p48 = scmp.eq.s32.totalorder %s47, 0
      %s50 = sadd.s32 %s49, 1
      %s51 = scalar_select %p48, %s49, %s50
      %p54 = pneg %p48
      %p55 = scmp.eq.s32.totalorder %s27, 3
      %p56 = por %p54, %p55
      %p57 = scmp.ne.s32.totalorder %s49, %s52
      %p58 = scmp.eq.s32.totalorder %s27, 0
      %p59 = por %p57, %p58
      %p60 = scmp.ne.s32.totalorder %s49, %s52
      %p61 = scmp.eq.s32.totalorder %s32, 3
      %p62 = por %p60, %p61
      %p63 = scmp.ne.s32.totalorder %s52, %s53
      %p64 = scmp.eq.s32.totalorder %s32, 0
      %p65 = por %p63, %p64
      %p66 = scmp.ne.s32.totalorder %s52, %s53
      %p67 = scmp.eq.s32.totalorder %s33, 3
      %p68 = por %p66, %p67
      %p70 = scmp.ne.s32.totalorder %s53, %s69
      %p71 = scmp.eq.s32.totalorder %s33, 0
      %p72 = por %p70, %p71
      %s73 = ssub.s32 %s34, %s46
      %p74 = scmp.eq.s32.totalorder %s73, 0
      %s76 = sadd.s32 %s75, 1
      %s77 = scalar_select %p74, %s75, %s76
      %p80 = pneg %p74
      %p81 = scmp.eq.s32.totalorder %s27, 3
      %p82 = por %p80, %p81
      %p83 = scmp.ne.s32.totalorder %s75, %s78
      %p84 = scmp.eq.s32.totalorder %s27, 0
      %p85 = por %p83, %p84
      %p86 = scmp.ne.s32.totalorder %s75, %s78
      %p87 = scmp.eq.s32.totalorder %s32, 3
      %p88 = por %p86, %p87
      %p89 = scmp.ne.s32.totalorder %s78, %s79
      %p90 = scmp.eq.s32.totalorder %s32, 0
      %p91 = por %p89, %p90
      %p92 = scmp.ne.s32.totalorder %s78, %s79
      %p93 = scmp.eq.s32.totalorder %s33, 3
      %p94 = por %p92, %p93
      %p96 = scmp.ne.s32.totalorder %s79, %s95
      %p97 = scmp.eq.s32.totalorder %s33, 0
      %p98 = por %p96, %p97
      %s99 = ssub.s32 %s34, %s46
      %p100 = scmp.eq.s32.totalorder %s99, 0
      %s102 = sadd.s32 %s101, 1
      %s103 = scalar_select %p100, %s101, %s102
      %p106 = pneg %p100
      %p107 = scmp.eq.s32.totalorder %s27, 3
      %p108 = por %p106, %p107
      %p109 = scmp.ne.s32.totalorder %s101, %s104
      %p110 = scmp.eq.s32.totalorder %s27, 0
      %p111 = por %p109, %p110
      %p112 = scmp.ne.s32.totalorder %s101, %s104
      %p113 = scmp.eq.s32.totalorder %s32, 3
      %p114 = por %p112, %p113
      %p115 = scmp.ne.s32.totalorder %s104, %s105
      %p116 = scmp.eq.s32.totalorder %s32, 0
      %p117 = por %p115, %p116
      %p118 = scmp.ne.s32.totalorder %s104, %s105
      %p119 = scmp.eq.s32.totalorder %s33, 3
      %p120 = por %p118, %p119
      %p122 = scmp.ne.s32.totalorder %s105, %s121
      %p123 = scmp.eq.s32.totalorder %s33, 0
      %p124 = por %p122, %p123
      %s125 = ssub.s32 %s35, %s42
      %p126 = scmp.eq.s32.totalorder %s125, 0
      %s128 = sadd.s32 %s127, 1
      %s129 = scalar_select %p126, %s127, %s128
      %p132 = pneg %p126
      %p133 = scmp.eq.s32.totalorder %s27, 3
      %p134 = por %p132, %p133
      %p135 = scmp.ne.s32.totalorder %s127, %s130
      %p136 = scmp.eq.s32.totalorder %s27, 0
      %p137 = por %p135, %p136
      %p138 = scmp.ne.s32.totalorder %s127, %s130
      %p139 = scmp.eq.s32.totalorder %s32, 3
      %p140 = por %p138, %p139
      %p141 = scmp.ne.s32.totalorder %s130, %s131
      %p142 = scmp.eq.s32.totalorder %s32, 0
      %p143 = por %p141, %p142
      %p144 = scmp.ne.s32.totalorder %s130, %s131
      %p145 = scmp.eq.s32.totalorder %s33, 3
      %p146 = por %p144, %p145
      %p148 = scmp.ne.s32.totalorder %s131, %s147
      %p149 = scmp.eq.s32.totalorder %s33, 0
      %p150 = por %p148, %p149
      %s151 = ssub.s32 %s35, %s42
      %p152 = scmp.eq.s32.totalorder %s151, 0
      %s154 = sadd.s32 %s153, 1
      %s155 = scalar_select %p152, %s153, %s154
      %p158 = pneg %p152
      %p159 = scmp.eq.s32.totalorder %s27, 3
      %p160 = por %p158, %p159
      %p161 = scmp.ne.s32.totalorder %s153, %s156
      %p162 = scmp.eq.s32.totalorder %s27, 0
      %p163 = por %p161, %p162
      %p164 = scmp.ne.s32.totalorder %s153, %s156
      %p165 = scmp.eq.s32.totalorder %s32, 3
      %p166 = por %p164, %p165
      %p167 = scmp.ne.s32.totalorder %s156, %s157
      %p168 = scmp.eq.s32.totalorder %s32, 0
      %p169 = por %p167, %p168
      %p170 = scmp.ne.s32.totalorder %s156, %s157
      %p171 = scmp.eq.s32.totalorder %s33, 3
      %p172 = por %p170, %p171
      %p174 = scmp.ne.s32.totalorder %s157, %s173
      %p175 = scmp.eq.s32.totalorder %s33, 0
      %p176 = por %p174, %p175
      %s177 = ssub.s32 %s35, %s42
      %p178 = scmp.eq.s32.totalorder %s177, 0
      %s180 = sadd.s32 %s179, 1
      %s181 = scalar_select %p178, %s179, %s180
      %p184 = pneg %p178
      %p185 = scmp.eq.s32.totalorder %s27, 3
      %p186 = por %p184, %p185
      %p187 = scmp.ne.s32.totalorder %s179, %s182
      %p188 = scmp.eq.s32.totalorder %s27, 0
      %p189 = por %p187, %p188
      %p190 = scmp.ne.s32.totalorder %s179, %s182
      %p191 = scmp.eq.s32.totalorder %s32, 3
      %p192 = por %p190, %p191
      %p193 = scmp.ne.s32.totalorder %s182, %s183
      %p194 = scmp.eq.s32.totalorder %s32, 0
      %p195 = por %p193, %p194
      %p196 = scmp.ne.s32.totalorder %s182, %s183
      %p197 = scmp.eq.s32.totalorder %s33, 3
      %p198 = por %p196, %p197
      %p200 = scmp.ne.s32.totalorder %s183, %s199
      %p201 = scmp.eq.s32.totalorder %s33, 0
      %p202 = por %p200, %p201
      %s203 = ssub.s32 %s35, %s42
      %p204 = scmp.eq.s32.totalorder %s203, 0
      %s206 = sadd.s32 %s205, 1
      %s207 = scalar_select %p204, %s205, %s206
      %p210 = pneg %p204
      %p211 = scmp.eq.s32.totalorder %s27, 3
      %p212 = por %p210, %p211
      %p213 = scmp.ne.s32.totalorder %s205, %s208
      %p214 = scmp.eq.s32.totalorder %s27, 0
      %p215 = por %p213, %p214
      %p216 = scmp.ne.s32.totalorder %s205, %s208
      %p217 = scmp.eq.s32.totalorder %s32, 3
      %p218 = por %p216, %p217
      %p219 = scmp.ne.s32.totalorder %s208, %s209
      %p220 = scmp.eq.s32.totalorder %s32, 0
      %p221 = por %p219, %p220
      %p222 = scmp.ne.s32.totalorder %s208, %s209
      %p223 = scmp.eq.s32.totalorder %s33, 3
      %p224 = por %p222, %p223
      %p226 = scmp.ne.s32.totalorder %s209, %s225
      %p227 = scmp.eq.s32.totalorder %s33, 0
      %p228 = por %p226, %p227
      %s229 = ssub.s32 %s35, %s42
      %p230 = scmp.eq.s32.totalorder %s229, 0
      %s232 = sadd.s32 %s231, 1
      %s233 = scalar_select %p230, %s231, %s232
      %p236 = pneg %p230
      %p237 = scmp.eq.s32.totalorder %s27, 3
      %p238 = por %p236, %p237
      %p239 = scmp.ne.s32.totalorder %s231, %s234
      %p240 = scmp.eq.s32.totalorder %s27, 0
      %p241 = por %p239, %p240
      %p242 = scmp.ne.s32.totalorder %s231, %s234
      %p243 = scmp.eq.s32.totalorder %s32, 3
      %p244 = por %p242, %p243
      %p245 = scmp.ne.s32.totalorder %s234, %s235
      %p246 = scmp.eq.s32.totalorder %s32, 0
      %p247 = por %p245, %p246
      %p248 = scmp.ne.s32.totalorder %s234, %s235
      %p249 = scmp.eq.s32.totalorder %s33, 3
      %p250 = por %p248, %p249
      %p252 = scmp.ne.s32.totalorder %s235, %s251
      %p253 = scmp.eq.s32.totalorder %s33, 0
      %p254 = por %p252, %p253
      %s255 = ssub.s32 %s35, %s42
      %p256 = scmp.eq.s32.totalorder %s255, 0
      %s258 = sadd.s32 %s257, 1
      %s259 = scalar_select %p256, %s257, %s258
      %p262 = pneg %p256
      %p263 = scmp.eq.s32.totalorder %s27, 3
      %p264 = por %p262, %p263
      %p265 = scmp.ne.s32.totalorder %s257, %s260
      %p266 = scmp.eq.s32.totalorder %s27, 0
      %p267 = por %p265, %p266
      %p268 = scmp.ne.s32.totalorder %s257, %s260
      %p269 = scmp.eq.s32.totalorder %s32, 3
      %p270 = por %p268, %p269
      %p271 = scmp.ne.s32.totalorder %s260, %s261
      %p272 = scmp.eq.s32.totalorder %s32, 0
      %p273 = por %p271, %p272
      %p274 = scmp.ne.s32.totalorder %s260, %s261
      %p275 = scmp.eq.s32.totalorder %s33, 3
      %p276 = por %p274, %p275
      %p278 = scmp.ne.s32.totalorder %s261, %s277
      %p279 = scmp.eq.s32.totalorder %s33, 0
      %p280 = por %p278, %p279
      %s281 = ssub.s32 %s34, %s46
      %p282 = scmp.eq.s32.totalorder %s281, 0
      %s284 = sadd.s32 %s283, 1
      %s285 = scalar_select %p282, %s283, %s284
      %p288 = pneg %p282
      %p289 = scmp.eq.s32.totalorder %s27, 3
      %p290 = por %p288, %p289
      %p291 = scmp.ne.s32.totalorder %s283, %s286
      %p292 = scmp.eq.s32.totalorder %s27, 0
      %p293 = por %p291, %p292
      %p294 = scmp.ne.s32.totalorder %s283, %s286
      %p295 = scmp.eq.s32.totalorder %s32, 3
      %p296 = por %p294, %p295
      %p297 = scmp.ne.s32.totalorder %s286, %s287
      %p298 = scmp.eq.s32.totalorder %s32, 0
      %p299 = por %p297, %p298
      %p300 = scmp.ne.s32.totalorder %s286, %s287
      %p301 = scmp.eq.s32.totalorder %s33, 3
      %p302 = por %p300, %p301
      %p304 = scmp.ne.s32.totalorder %s287, %s303
      %p305 = scmp.eq.s32.totalorder %s33, 0
      %p306 = por %p304, %p305
      %p307 = scmp.le.s32.totalorder 1, %s27
      %p308 = scmp.lt.s32.totalorder %s27, 5
      %p309 = pnand %p307, %p308
      %p310 = pneg %p309
      // Predicated region
      $region9: #{tpu_custom_call.1} parent=5 // pred_check
        _
      $region10: #{tpu_custom_call.1} parent=5 // pred_check_branch
        %312 = sbr.rel (%p309) target = $region12
      $region11: #{tpu_custom_call.1} parent=5 // pred_region
        %s313 = ssub.s32 %s27, 1
      $region12: #{tpu_custom_call.1} parent=5 // pred_fallthru
        _
      %p314 = scmp.lt.s32.totalorder %s27, 4
      // Predicated region
      $region13: #{tpu_custom_call.1} parent=5 // pred_check
        %p315 = pneg %p314
      $region14: #{tpu_custom_call.1} parent=5 // pred_check_branch
        %317 = sbr.rel (%p315) target = $region16
      $region15: #{tpu_custom_call.1} parent=5 // pred_region
        // Predicated region
        $region17: #{tpu_custom_call.1} parent=15 // pred_check
          %p318 = pneg %p59
        $region18: #{tpu_custom_call.1} parent=15 // pred_check_branch
          %320 = sbr.rel (%p318) target = $region20
        $region19: #{tpu_custom_call.1} parent=15 // pred_region
          %s321 = sand.u32 %s49, 1
          %s322 = scalar_lea.sflag [#allocation5], %s321
          %s323 = sand.u32 %s49, 1
          %s324 = smul.addr %s323, 8
          %s325 = scalar_lea.vmem [#allocation4], %s324
          %s327 = ssub.s32 128, 128
          %328 = vsyncadd %s322, %s327
          %s329 = smul.addr %s34, 128
          %s330 = scalar_lea.hbm %s0, %s329
          %s332 = sshll.u32 %s325, 4
          %s333 = int_to_ptr.vmem [resolvable:$true] %s332
          %335 = dma.hbm_to_vmem [thread:$0]  %s330, 128, %s333, %s322
        $region20: #{tpu_custom_call.1} parent=15 // pred_fallthru
          _
        // Predicated region
        $region21: #{tpu_custom_call.1} parent=15 // pred_check
          %p336 = pneg %p85
        $region22: #{tpu_custom_call.1} parent=15 // pred_check_branch
          %338 = sbr.rel (%p336) target = $region24
        $region23: #{tpu_custom_call.1} parent=15 // pred_region
          %p339 = scmp.lt.s32.totalorder %s34, 1
          %s340 = scalar_select %p339, %s34, 1
          %s341 = scalar_lea.vmem %s1, %s340
        $region24: #{tpu_custom_call.1} parent=15 // pred_fallthru
          _
        // Predicated region
        $region25: #{tpu_custom_call.1} parent=15 // pred_check
          %p342 = pneg %p111
        $region26: #{tpu_custom_call.1} parent=15 // pred_check_branch
          %344 = sbr.rel (%p342) target = $region28
        $region27: #{tpu_custom_call.1} parent=15 // pred_region
          %s345 = sand.u32 %s27, 1
          %s346 = scalar_lea.sflag [#allocation8], %s345
          %s347 = sand.u32 %s101, 1
          %s348 = smul.addr %s347, 8
          %s349 = scalar_lea.vmem [#allocation7], %s348
          %s351 = ssub.s32 128, 128
          %352 = vsyncadd %s346, %s351
          %s353 = smul.addr %s34, 128
          %s354 = scalar_lea.hbm %s2, %s353
          %s356 = sshll.u32 %s349, 4
          %s357 = int_to_ptr.vmem [resolvable:$true] %s356
          %359 = dma.hbm_to_vmem [thread:$0]  %s354, 128, %s357, %s346
        $region28: #{tpu_custom_call.1} parent=15 // pred_fallthru
          _
        // Predicated region
        $region29: #{tpu_custom_call.1} parent=15 // pred_check
          %p360 = pneg %p137
        $region30: #{tpu_custom_call.1} parent=15 // pred_check_branch
          %362 = sbr.rel (%p360) target = $region32
        $region31: #{tpu_custom_call.1} parent=15 // pred_region
          %p363 = scmp.lt.s32.totalorder %s35, 1
          %s364 = scalar_select %p363, %s35, 1
          %s365 = smul.addr %s364, 16
          %s366 = smul.addr %s365, 4
          %s367 = scalar_lea.vmem %s3, %s366
        $region32: #{tpu_custom_call.1} parent=15 // pred_fallthru
          _
        // Predicated region
        $region33: #{tpu_custom_call.1} parent=15 // pred_check
          %p368 = pneg %p163
        $region34: #{tpu_custom_call.1} parent=15 // pred_check_branch
          %370 = sbr.rel (%p368) target = $region36
        $region35: #{tpu_custom_call.1} parent=15 // pred_region
          %s371 = sand.u32 %s27, 1
          %s372 = scalar_lea.sflag [#allocation8], %s371
          %s373 = sand.u32 %s153, 1
          %s374 = smul.addr %s373, 64
          %s375 = scalar_lea.vmem [#allocation9], %s374
          %s377 = ssub.s32 1024, 1024
          %378 = vsyncadd %s372, %s377
          %s379 = smul.addr %s35, 16
          %s380 = smul.addr %s379, 64
          %s381 = scalar_lea.hbm %s4, %s380
          %s382 = sshll.u32 %s375, 4
          %s383 = int_to_ptr.vmem [resolvable:$true] %s382
          %388 = dma.hbm_to_vmem [thread:$0]  %s381, 1024, %s383, %s372, 64, 64, 4
        $region36: #{tpu_custom_call.1} parent=15 // pred_fallthru
          _
        // Predicated region
        $region37: #{tpu_custom_call.1} parent=15 // pred_check
          %p389 = pneg %p189
        $region38: #{tpu_custom_call.1} parent=15 // pred_check_branch
          %391 = sbr.rel (%p389) target = $region40
        $region39: #{tpu_custom_call.1} parent=15 // pred_region
          %s392 = sand.u32 %s179, 1
          %s393 = scalar_lea.sflag [#allocation11], %s392
          %s394 = sand.u32 %s179, 1
          %s395 = smul.addr %s394, 16
          %s396 = scalar_lea.vmem [#allocation10], %s395
          %s398 = ssub.s32 256, 256
          %399 = vsyncadd %s393, %s398
          %s400 = smul.addr %s35, 4
          %s401 = smul.addr %s400, 64
          %s402 = scalar_lea.hbm %s5, %s401
          %s403 = sshll.u32 %s396, 4
          %s404 = int_to_ptr.vmem [resolvable:$true] %s403
          %409 = dma.hbm_to_vmem [thread:$0]  %s402, 256, %s404, %s393, 64, 64, 4
        $region40: #{tpu_custom_call.1} parent=15 // pred_fallthru
          _
        // Predicated region
        $region41: #{tpu_custom_call.1} parent=15 // pred_check
          %p410 = pneg %p215
        $region42: #{tpu_custom_call.1} parent=15 // pred_check_branch
          %412 = sbr.rel (%p410) target = $region44
        $region43: #{tpu_custom_call.1} parent=15 // pred_region
          %p413 = scmp.lt.s32.totalorder %s35, 1
          %s414 = scalar_select %p413, %s35, 1
          %s415 = scalar_lea.vmem %s6, %s414
        $region44: #{tpu_custom_call.1} parent=15 // pred_fallthru
          _
        // Predicated region
        $region45: #{tpu_custom_call.1} parent=15 // pred_check
          %p416 = pneg %p241
        $region46: #{tpu_custom_call.1} parent=15 // pred_check_branch
          %418 = sbr.rel (%p416) target = $region48
        $region47: #{tpu_custom_call.1} parent=15 // pred_region
          %p419 = scmp.lt.s32.totalorder %s35, 1
          %s420 = scalar_select %p419, %s35, 1
          %s421 = smul.addr %s420, 8
          %s422 = smul.addr %s421, 4
          %s423 = scalar_lea.vmem %s7, %s422
        $region48: #{tpu_custom_call.1} parent=15 // pred_fallthru
          _
        // Predicated region
        $region49: #{tpu_custom_call.1} parent=15 // pred_check
          %p424 = pneg %p267
        $region50: #{tpu_custom_call.1} parent=15 // pred_check_branch
          %426 = sbr.rel (%p424) target = $region52
        $region51: #{tpu_custom_call.1} parent=15 // pred_region
          %p427 = scmp.lt.s32.totalorder %s35, 1
          %s428 = scalar_select %p427, %s35, 1
          %s429 = smul.addr %s428, 2
          %s430 = smul.addr %s429, 8
          %s431 = scalar_lea.vmem %s8, %s430
        $region52: #{tpu_custom_call.1} parent=15 // pred_fallthru
          _
      $region16: #{tpu_custom_call.1} parent=5 // pred_fallthru
        _
      %p432 = scmp.le.s32.totalorder 1, %s27
      %p433 = scmp.lt.s32.totalorder %s27, 5
      %p434 = pnand %p432, %p433
      %p435 = pneg %p434
      // Predicated region
      $region53: #{tpu_custom_call.1} parent=5 // pred_check
        _
      $region54: #{tpu_custom_call.1} parent=5 // pred_check_branch
        %437 = sbr.rel (%p434) target = $region56
      $region55: #{tpu_custom_call.1} parent=5 // pred_region
        %s438 = ssub.s32 %s27, 1
        %s439 = sand.u32 %s52, 1
        %s440 = scalar_lea.sflag [#allocation5], %s439
        %s441 = sand.u32 %s52, 1
        %s442 = smul.addr %s441, 8
        %s443 = scalar_lea.vmem [#allocation4], %s442
        // Predicated region
        $region57: #{tpu_custom_call.1} parent=55 // pred_check
          %p444 = pneg %p65
        $region58: #{tpu_custom_call.1} parent=55 // pred_check_branch
          %446 = sbr.rel (%p444) target = $region60
        $region59: #{tpu_custom_call.1} parent=55 // pred_region
          %447 = dma.done %s440, 128
        $region60: #{tpu_custom_call.1} parent=55 // pred_fallthru
          _
        %s448 = sand.u32 %s32, 1
        %s449 = scalar_lea.sflag [#allocation8], %s448
        %s450 = sand.u32 %s104, 1
        %s451 = smul.addr %s450, 8
        %s452 = scalar_lea.vmem [#allocation7], %s451
        // Predicated region
        $region61: #{tpu_custom_call.1} parent=55 // pred_check
          %p453 = pneg %p117
        $region62: #{tpu_custom_call.1} parent=55 // pred_check_branch
          %455 = sbr.rel (%p453) target = $region64
        $region63: #{tpu_custom_call.1} parent=55 // pred_region
          %456 = dma.done %s449, 128
        $region64: #{tpu_custom_call.1} parent=55 // pred_fallthru
          _
        %s457 = sand.u32 %s32, 1
        %s458 = scalar_lea.sflag [#allocation8], %s457
        %s459 = sand.u32 %s156, 1
        %s460 = smul.addr %s459, 64
        %s461 = scalar_lea.vmem [#allocation9], %s460
        // Predicated region
        $region65: #{tpu_custom_call.1} parent=55 // pred_check
          %p462 = pneg %p169
        $region66: #{tpu_custom_call.1} parent=55 // pred_check_branch
          %464 = sbr.rel (%p462) target = $region68
        $region67: #{tpu_custom_call.1} parent=55 // pred_region
          %465 = dma.done %s458, 1024
        $region68: #{tpu_custom_call.1} parent=55 // pred_fallthru
          _
        %s466 = sand.u32 %s182, 1
        %s467 = scalar_lea.sflag [#allocation11], %s466
        %s468 = sand.u32 %s182, 1
        %s469 = smul.addr %s468, 16
        %s470 = scalar_lea.vmem [#allocation10], %s469
        // Predicated region
        $region69: #{tpu_custom_call.1} parent=55 // pred_check
          %p471 = pneg %p195
        $region70: #{tpu_custom_call.1} parent=55 // pred_check_branch
          %473 = sbr.rel (%p471) target = $region72
        $region71: #{tpu_custom_call.1} parent=55 // pred_region
          %474 = dma.done %s467, 256
        $region72: #{tpu_custom_call.1} parent=55 // pred_fallthru
          _
        %s475 = sand.u32 %s52, 1
        %s476 = scalar_lea.sflag [#allocation5], %s475
        %s477 = sand.u32 %s52, 1
        %s478 = smul.addr %s477, 8
        %s479 = scalar_lea.vmem [#allocation4], %s478
        %p480 = pneg %p65
        %p481 = pneg %p62
        %p482 = scmp.lt.s32.totalorder %s36, 1
        %s483 = scalar_select %p482, %s36, 1
        %s484 = scalar_lea.vmem %s1, %s483
        %p485 = pneg %p91
        %p486 = pneg %p88
        %s487 = sand.u32 %s32, 1
        %s488 = scalar_lea.sflag [#allocation8], %s487
        %s489 = sand.u32 %s104, 1
        %s490 = smul.addr %s489, 8
        %s491 = scalar_lea.vmem [#allocation7], %s490
        %p492 = pneg %p117
        %p493 = pneg %p114
        %p494 = scmp.lt.s32.totalorder %s37, 1
        %s495 = scalar_select %p494, %s37, 1
        %s496 = smul.addr %s495, 16
        %s497 = smul.addr %s496, 4
        %s498 = scalar_lea.vmem %s3, %s497
        %p499 = pneg %p143
        %p500 = pneg %p140
        %s501 = sand.u32 %s32, 1
        %s502 = scalar_lea.sflag [#allocation8], %s501
        %s503 = sand.u32 %s156, 1
        %s504 = smul.addr %s503, 64
        %s505 = scalar_lea.vmem [#allocation9], %s504
        %p506 = pneg %p169
        %p507 = pneg %p166
        %s508 = sand.u32 %s182, 1
        %s509 = scalar_lea.sflag [#allocation11], %s508
        %s510 = sand.u32 %s182, 1
        %s511 = smul.addr %s510, 16
        %s512 = scalar_lea.vmem [#allocation10], %s511
        %p513 = pneg %p195
        %p514 = pneg %p192
        %p515 = scmp.lt.s32.totalorder %s37, 1
        %s516 = scalar_select %p515, %s37, 1
        %s517 = scalar_lea.vmem %s6, %s516
        %p518 = pneg %p221
        %p519 = pneg %p218
        %p520 = scmp.lt.s32.totalorder %s37, 1
        %s521 = scalar_select %p520, %s37, 1
        %s522 = smul.addr %s521, 8
        %s523 = smul.addr %s522, 4
        %s524 = scalar_lea.vmem %s7, %s523
        %p525 = pneg %p247
        %p526 = pneg %p244
        %p527 = scmp.lt.s32.totalorder %s37, 1
        %s528 = scalar_select %p527, %s37, 1
        %s529 = smul.addr %s528, 2
        %s530 = smul.addr %s529, 8
        %s531 = scalar_lea.vmem %s8, %s530
        %p532 = pneg %p273
        %p533 = pneg %p270
        %p534 = pneg %p299
        %p535 = pneg %p296
        %s536 = sand.u32 %s286, 1
        %s537 = scalar_lea.sflag [#allocation6], %s536
        %s538 = sand.u32 %s286, 1
        %s539 = smul.addr %s538, 8
        %s540 = scalar_lea.vmem [#allocation12], %s539
        %p541 = scmp.lt.s32.totalorder %s36, 1
        %s542 = scalar_select %p541, %s36, 1
        %s543 = scalar_lea.vmem %s1, %s542
        %p544 = scmp.lt.s32.totalorder %s37, 1
        %s545 = scalar_select %p544, %s37, 1
        %s546 = smul.addr %s545, 16
        %s547 = smul.addr %s546, 4
        %s548 = scalar_lea.vmem %s3, %s547
        %p549 = scmp.lt.s32.totalorder %s37, 1
        %s550 = scalar_select %p549, %s37, 1
        %s551 = scalar_lea.vmem %s6, %s550
        %p552 = scmp.lt.s32.totalorder %s37, 1
        %s553 = scalar_select %p552, %s37, 1
        %s554 = smul.addr %s553, 8
        %s555 = smul.addr %s554, 4
        %s556 = scalar_lea.vmem %s7, %s555
        %p557 = scmp.lt.s32.totalorder %s37, 1
        %s558 = scalar_select %p557, %s37, 1
        %s559 = smul.addr %s558, 2
        %s560 = smul.addr %s559, 8
        %s561 = scalar_lea.vmem %s8, %s560
        %p563 = scmp.eq.s32.totalorder %s37, 0
        // Predicated region
        $region73: #{tpu_custom_call.1} parent=55 // pred_check
          %p564 = pneg %p563
        $region74: #{tpu_custom_call.1} parent=55 // pred_check_branch
          %566 = sbr.rel (%p564) target = $region76
        $region75: #{tpu_custom_call.1} parent=55 // pred_region
          %v567 = vld [vmem:[%s443] sm:$0xff]
          %vm568 = vcmask 261120
          %569 = vst.msk [vmem:[#allocation2] sm:$0xff] %vm568, %v567
        $region76: #{tpu_custom_call.1} parent=55 // pred_fallthru
          _
        %v570 = vld [vmem:[%s548] sm:$0xf]
        %v571 = vld [vmem:[%s548 + $0x4] sm:$0xf]
        %v572 = vld [vmem:[%s548 + $0x8] sm:$0xf]
        %v573 = vld [vmem:[%s548 + $0xc] sm:$0xf]
        %v574 = vld [vmem:[%s548 + $0x10] sm:$0xf]
        %v575 = vld [vmem:[%s548 + $0x14] sm:$0xf]
        %v576 = vld [vmem:[%s548 + $0x18] sm:$0xf]
        %v577 = vld [vmem:[%s548 + $0x1c] sm:$0xf]
        %v578 = vld [vmem:[%s548 + $0x20] sm:$0xf]
        %v579 = vld [vmem:[%s548 + $0x24] sm:$0xf]
        %v580 = vld [vmem:[%s548 + $0x28] sm:$0xf]
        %v581 = vld [vmem:[%s548 + $0x2c] sm:$0xf]
        %v582 = vld [vmem:[%s548 + $0x30] sm:$0xf]
        %v583 = vld [vmem:[%s548 + $0x34] sm:$0xf]
        %v584 = vld [vmem:[%s548 + $0x38] sm:$0xf]
        %v585 = vld [vmem:[%s548 + $0x3c] sm:$0xf]
        %v586 = vld [vmem:[%s461] sm:$0xf]
        %v587 = vld [vmem:[%s461 + $0x4] sm:$0xf]
        %v588 = vld [vmem:[%s461 + $0x8] sm:$0xf]
        %v589 = vld [vmem:[%s461 + $0xc] sm:$0xf]
        %v590 = vld [vmem:[%s461 + $0x10] sm:$0xf]
        %v591 = vld [vmem:[%s461 + $0x14] sm:$0xf]
        %v592 = vld [vmem:[%s461 + $0x18] sm:$0xf]
        %v593 = vld [vmem:[%s461 + $0x1c] sm:$0xf]
        %v594 = vld [vmem:[%s461 + $0x20] sm:$0xf]
        %v595 = vld [vmem:[%s461 + $0x24] sm:$0xf]
        %v596 = vld [vmem:[%s461 + $0x28] sm:$0xf]
        %v597 = vld [vmem:[%s461 + $0x2c] sm:$0xf]
        %v598 = vld [vmem:[%s461 + $0x30] sm:$0xf]
        %v599 = vld [vmem:[%s461 + $0x34] sm:$0xf]
        %v600 = vld [vmem:[%s461 + $0x38] sm:$0xf]
        %v601 = vld [vmem:[%s461 + $0x3c] sm:$0xf]
        %v602 = vld [vmem:[%s561] sm:$0xff]
        %v603 = vld [vmem:[%s561 + $0x8] sm:$0x7f]
        %v604 = vld [vmem:[#allocation2] sm:$0xff]
        %v605 = vld [vmem:[%s543] sm:$0x1]
        %v607 = vlaneseq
        %v608 = vshrl.u32 %v607, 7
        %v609 = vsub.s32 0, %v608
        %v610 = vrot.slane %v605, %v609
        %v612 = vadd.f32 %v604, %v610
        %v613 = vpack.c.bf16 %v612, %v612
        %v614 = vlaneseq
        %v615 = vshrl.u32 %v614, 7
        %v616 = vsub.s32 0, %v615
        %v617 = vrot.slane %v602, %v616
        %v622 = vunpack.c.l.b16 %v570
        %v623 = vunpack.c.l.b16 %v571
        %v624 = vunpack.c.l.b16 %v572
        %v625 = vunpack.c.l.b16 %v573
        %v626 = vpack.c.b16 %v623, %v622
        %v627 = vpack.c.b16 %v625, %v624
        %vm630 = vcmask 261120
        %v632 = vsel %vm630, %v613, 0
        %634 = vmatprep.subr.bf16.mxu0 0
        %635 = vmatpush1.bf16.msra.mxu0 %v626
        %636 = vmatprep.subr.bf16.mxu0 0
        %637 = vmatpush1.bf16.msra.mxu0 %v627
        %638 = vmatprep.subr.bf16.mxu0 0
        %639 = vmatpush1.bf16.msra.mxu0 0
        %640 = vmatprep.subr.bf16.mxu0 0
        %641 = vmatpush1.bf16.msra.mxu0 0
        %642 = vmatprep.subr.bf16.mxu0 0
        %643 = vmatpush1.bf16.msra.mxu0 0
        %644 = vmatprep.subr.bf16.mxu0 0
        %645 = vmatpush1.bf16.msra.mxu0 0
        %646 = vmatprep.subr.bf16.mxu0 0
        %647 = vmatpush1.bf16.msra.mxu0 0
        %648 = vmatprep.subr.bf16.mxu0 0
        %649 = vmatpush1.bf16.msra.mxu0 0
        %650 = vmatprep.subr.bf16.mxu0 0
        %651 = vmatpush1.bf16.msra.mxu0 0
        %652 = vmatprep.subr.bf16.mxu0 0
        %653 = vmatpush1.bf16.msra.mxu0 0
        %654 = vmatprep.subr.bf16.mxu0 0
        %655 = vmatpush1.bf16.msra.mxu0 0
        %656 = vmatprep.subr.bf16.mxu0 0
        %657 = vmatpush1.bf16.msra.mxu0 0
        %658 = vmatprep.subr.bf16.mxu0 0
        %659 = vmatpush1.bf16.msra.mxu0 0
        %660 = vmatprep.subr.bf16.mxu0 0
        %661 = vmatpush1.bf16.msra.mxu0 0
        %662 = vmatprep.subr.bf16.mxu0 0
        %663 = vmatpush1.bf16.msra.mxu0 0
        %664 = vmatprep.subr.bf16.mxu0 0
        %665 = vmatpush1.bf16.msra.mxu0 0
        %666 = vmatprep.mubr.bf16.mxu0 0
        %667 = vmatmul.mubr.bf16.gmra.mrb[0].mxu0 %v632
        %v668 = vpop.f32.mrb[0].mxu0
        %v669 = vadd.f32 %v617, %v668
        %v670 = vpop.f32.mrb[0].mxu0
        %v671 = vpop.f32.mrb[0].mxu0
        %v672 = vpop.f32.mrb[0].mxu0
        %673 = vdwg.mxu0
        %v674 = vlaneseq
        %v675 = vshrl.u32 %v674, 7
        %v676 = vsub.s32 1, %v675
        %v677 = vrot.slane %v602, %v676
        %v682 = vunpack.c.l.b16 %v574
        %v683 = vunpack.c.l.b16 %v575
        %v684 = vunpack.c.l.b16 %v576
        %v685 = vunpack.c.l.b16 %v577
        %v686 = vpack.c.b16 %v683, %v682
        %v687 = vpack.c.b16 %v685, %v684
        %690 = vmatprep.subr.bf16.mxu0 0
        %691 = vmatpush1.bf16.msra.mxu0 %v686
        %692 = vmatprep.subr.bf16.mxu0 0
        %693 = vmatpush1.bf16.msra.mxu0 %v687
        %694 = vmatprep.subr.bf16.mxu0 0
        %695 = vmatpush1.bf16.msra.mxu0 0
        %696 = vmatprep.subr.bf16.mxu0 0
        %697 = vmatpush1.bf16.msra.mxu0 0
        %698 = vmatprep.subr.bf16.mxu0 0
        %699 = vmatpush1.bf16.msra.mxu0 0
        %700 = vmatprep.subr.bf16.mxu0 0
        %701 = vmatpush1.bf16.msra.mxu0 0
        %702 = vmatprep.subr.bf16.mxu0 0
        %703 = vmatpush1.bf16.msra.mxu0 0
        %704 = vmatprep.subr.bf16.mxu0 0
        %705 = vmatpush1.bf16.msra.mxu0 0
        %706 = vmatprep.subr.bf16.mxu0 0
        %707 = vmatpush1.bf16.msra.mxu0 0
        %708 = vmatprep.subr.bf16.mxu0 0
        %709 = vmatpush1.bf16.msra.mxu0 0
        %710 = vmatprep.subr.bf16.mxu0 0
        %711 = vmatpush1.bf16.msra.mxu0 0
        %712 = vmatprep.subr.bf16.mxu0 0
        %713 = vmatpush1.bf16.msra.mxu0 0
        %714 = vmatprep.subr.bf16.mxu0 0
        %715 = vmatpush1.bf16.msra.mxu0 0
        %716 = vmatprep.subr.bf16.mxu0 0
        %717 = vmatpush1.bf16.msra.mxu0 0
        %718 = vmatprep.subr.bf16.mxu0 0
        %719 = vmatpush1.bf16.msra.mxu0 0
        %720 = vmatprep.subr.bf16.mxu0 0
        %721 = vmatpush1.bf16.msra.mxu0 0
        %722 = vmatprep.mubr.bf16.mxu0 0
        %723 = vmatmul.mubr.bf16.gmra.mrb[0].mxu0 %v632
        %v724 = vpop.f32.mrb[0].mxu0
        %v725 = vadd.f32 %v677, %v724
        %v726 = vpop.f32.mrb[0].mxu0
        %v727 = vpop.f32.mrb[0].mxu0
        %v728 = vpop.f32.mrb[0].mxu0
        %729 = vdwg.mxu0
        %v730 = vlaneseq
        %v731 = vshrl.u32 %v730, 7
        %v732 = vsub.s32 2, %v731
        %v733 = vrot.slane %v602, %v732
        %v738 = vunpack.c.l.b16 %v578
        %v739 = vunpack.c.l.b16 %v579
        %v740 = vunpack.c.l.b16 %v580
        %v741 = vunpack.c.l.b16 %v581
        %v742 = vpack.c.b16 %v739, %v738
        %v743 = vpack.c.b16 %v741, %v740
        %746 = vmatprep.subr.bf16.mxu0 0
        %747 = vmatpush1.bf16.msra.mxu0 %v742
        %748 = vmatprep.subr.bf16.mxu0 0
        %749 = vmatpush1.bf16.msra.mxu0 %v743
        %750 = vmatprep.subr.bf16.mxu0 0
        %751 = vmatpush1.bf16.msra.mxu0 0
        %752 = vmatprep.subr.bf16.mxu0 0
        %753 = vmatpush1.bf16.msra.mxu0 0
        %754 = vmatprep.subr.bf16.mxu0 0
        %755 = vmatpush1.bf16.msra.mxu0 0
        %756 = vmatprep.subr.bf16.mxu0 0
        %757 = vmatpush1.bf16.msra.mxu0 0
        %758 = vmatprep.subr.bf16.mxu0 0
        %759 = vmatpush1.bf16.msra.mxu0 0
        %760 = vmatprep.subr.bf16.mxu0 0
        %761 = vmatpush1.bf16.msra.mxu0 0
        %762 = vmatprep.subr.bf16.mxu0 0
        %763 = vmatpush1.bf16.msra.mxu0 0
        %764 = vmatprep.subr.bf16.mxu0 0
        %765 = vmatpush1.bf16.msra.mxu0 0
        %766 = vmatprep.subr.bf16.mxu0 0
        %767 = vmatpush1.bf16.msra.mxu0 0
        %768 = vmatprep.subr.bf16.mxu0 0
        %769 = vmatpush1.bf16.msra.mxu0 0
        %770 = vmatprep.subr.bf16.mxu0 0
        %771 = vmatpush1.bf16.msra.mxu0 0
        %772 = vmatprep.subr.bf16.mxu0 0
        %773 = vmatpush1.bf16.msra.mxu0 0
        %774 = vmatprep.subr.bf16.mxu0 0
        %775 = vmatpush1.bf16.msra.mxu0 0
        %776 = vmatprep.subr.bf16.mxu0 0
        %777 = vmatpush1.bf16.msra.mxu0 0
        %778 = vmatprep.mubr.bf16.mxu0 0
        %779 = vmatmul.mubr.bf16.gmra.mrb[0].mxu0 %v632
        %v780 = vpop.f32.mrb[0].mxu0
        %v781 = vadd.f32 %v733, %v780
        %v782 = vpop.f32.mrb[0].mxu0
        %v783 = vpop.f32.mrb[0].mxu0
        %v784 = vpop.f32.mrb[0].mxu0
        %785 = vdwg.mxu0
        %v786 = vpack.c.bf16 %v669, %v669
        %v787 = vpack.c.bf16 %v725, %v725
        %v788 = vpack.c.bf16 %v781, %v781
        %vm789 = vcmask 64512
        %v791 = vsel %vm789, %v786, 0
        %v794 = vsel %vm789, %v787, 0
        %796 = vmatprep.subr.bf16.mxu0 0
        %797 = vmatpush1.bf16.xpose.msra.mxu0 %v794
        %798 = vmatprep.subr.bf16.mxu0 0
        %799 = vmatpush1.bf16.xpose.msra.mxu0 0
        %800 = vmatprep.subr.bf16.mxu0 0
        %801 = vmatpush1.bf16.xpose.msra.mxu0 0
        %802 = vmatprep.subr.bf16.mxu0 0
        %803 = vmatpush1.bf16.xpose.msra.mxu0 0
        %804 = vmatprep.subr.bf16.mxu0 0
        %805 = vmatpush1.bf16.xpose.msra.mxu0 0
        %806 = vmatprep.subr.bf16.mxu0 0
        %807 = vmatpush1.bf16.xpose.msra.mxu0 0
        %808 = vmatprep.subr.bf16.mxu0 0
        %809 = vmatpush1.bf16.xpose.msra.mxu0 0
        %810 = vmatprep.subr.bf16.mxu0 0
        %811 = vmatpush1.bf16.xpose.msra.mxu0 0
        %812 = vmatprep.subr.bf16.mxu0 0
        %813 = vmatpush1.bf16.xpose.msra.mxu0 0
        %814 = vmatprep.subr.bf16.mxu0 0
        %815 = vmatpush1.bf16.xpose.msra.mxu0 0
        %816 = vmatprep.subr.bf16.mxu0 0
        %817 = vmatpush1.bf16.xpose.msra.mxu0 0
        %818 = vmatprep.subr.bf16.mxu0 0
        %819 = vmatpush1.bf16.xpose.msra.mxu0 0
        %820 = vmatprep.subr.bf16.mxu0 0
        %821 = vmatpush1.bf16.xpose.msra.mxu0 0
        %822 = vmatprep.subr.bf16.mxu0 0
        %823 = vmatpush1.bf16.xpose.msra.mxu0 0
        %824 = vmatprep.subr.bf16.mxu0 0
        %825 = vmatpush1.bf16.xpose.msra.mxu0 0
        %826 = vmatprep.subr.bf16.mxu0 0
        %827 = vmatpush1.bf16.xpose.msra.mxu0 0
        %828 = vmatprep.mubr.bf16.mxu0 0
        %829 = vmatmul.mubr.bf16.gmra.mrb[0].mxu0 %v791
        %v830 = vpop.f32.mrb[0].mxu0
        %v831 = vadd.f32 0.0, %v830
        %v832 = vpop.f32.mrb[0].mxu0
        %v833 = vpop.f32.mrb[0].mxu0
        %v834 = vpop.f32.mrb[0].mxu0
        %835 = vdwg.mxu0
        %v836 = vsel %vm789, %v831, -inf
        %837 = vmax.xlane.f32.xlu0 %v836
        %v838 = vpop.xlane.xlu0 %837
        %v839 = vsub.f32 %v831, %v838
        %v840 = vmul.f32 %v839, 1.442695
        %v841 = vpow.pop %v840
        %v842 = vsel %vm789, %v841, 0.0
        %843 = vadd.xlane.f32.xlu0 %v842
        %v844 = vpop.xlane.xlu0 %843
        %v845 = vrcp.pop %v844
        %v846 = vmul.f32 %v841, %v845
        %v847 = vpack.c.bf16 %v846, %v846
        %v849 = vsel %vm789, %v847, 0
        %vm851 = vcmask 1043456
        %v853 = vsel %vm851, %v788, 0
        %855 = vmatprep.subr.bf16.mxu0 0
        %856 = vmatpush1.bf16.msra.mxu0 %v853
        %857 = vmatprep.subr.bf16.mxu0 0
        %858 = vmatpush1.bf16.msra.mxu0 0
        %859 = vmatprep.subr.bf16.mxu0 0
        %860 = vmatpush1.bf16.msra.mxu0 0
        %861 = vmatprep.subr.bf16.mxu0 0
        %862 = vmatpush1.bf16.msra.mxu0 0
        %863 = vmatprep.subr.bf16.mxu0 0
        %864 = vmatpush1.bf16.msra.mxu0 0
        %865 = vmatprep.subr.bf16.mxu0 0
        %866 = vmatpush1.bf16.msra.mxu0 0
        %867 = vmatprep.subr.bf16.mxu0 0
        %868 = vmatpush1.bf16.msra.mxu0 0
        %869 = vmatprep.subr.bf16.mxu0 0
        %870 = vmatpush1.bf16.msra.mxu0 0
        %871 = vmatprep.subr.bf16.mxu0 0
        %872 = vmatpush1.bf16.msra.mxu0 0
        %873 = vmatprep.subr.bf16.mxu0 0
        %874 = vmatpush1.bf16.msra.mxu0 0
        %875 = vmatprep.subr.bf16.mxu0 0
        %876 = vmatpush1.bf16.msra.mxu0 0
        %877 = vmatprep.subr.bf16.mxu0 0
        %878 = vmatpush1.bf16.msra.mxu0 0
        %879 = vmatprep.subr.bf16.mxu0 0
        %880 = vmatpush1.bf16.msra.mxu0 0
        %881 = vmatprep.subr.bf16.mxu0 0
        %882 = vmatpush1.bf16.msra.mxu0 0
        %883 = vmatprep.subr.bf16.mxu0 0
        %884 = vmatpush1.bf16.msra.mxu0 0
        %885 = vmatprep.subr.bf16.mxu0 0
        %886 = vmatpush1.bf16.msra.mxu0 0
        %887 = vmatprep.mubr.bf16.mxu0 0
        %888 = vmatmul.mubr.bf16.gmra.mrb[0].mxu0 %v849
        %v889 = vpop.f32.mrb[0].mxu0
        %v890 = vadd.f32 0.0, %v889
        %v891 = vpop.f32.mrb[0].mxu0
        %v892 = vpop.f32.mrb[0].mxu0
        %v893 = vpop.f32.mrb[0].mxu0
        %894 = vdwg.mxu0
        %895 = vst.msk [vmem:[#allocation3] sm:$0xff] %vm789, %v890
        %897 = vrot.lane.b32.xlu0 %v786, 120
        %v898 = vpop.permute.xlu0 %897
        %900 = vrot.lane.b32.xlu0 %v787, 120
        %v901 = vpop.permute.xlu0 %900
        %v903 = vsel %vm789, %v898, 0
        %v906 = vsel %vm789, %v901, 0
        %908 = vmatprep.subr.bf16.mxu0 0
        %909 = vmatpush1.bf16.xpose.msra.mxu0 %v906
        %910 = vmatprep.subr.bf16.mxu0 0
        %911 = vmatpush1.bf16.xpose.msra.mxu0 0
        %912 = vmatprep.subr.bf16.mxu0 0
        %913 = vmatpush1.bf16.xpose.msra.mxu0 0
        %914 = vmatprep.subr.bf16.mxu0 0
        %915 = vmatpush1.bf16.xpose.msra.mxu0 0
        %916 = vmatprep.subr.bf16.mxu0 0
        %917 = vmatpush1.bf16.xpose.msra.mxu0 0
        %918 = vmatprep.subr.bf16.mxu0 0
        %919 = vmatpush1.bf16.xpose.msra.mxu0 0
        %920 = vmatprep.subr.bf16.mxu0 0
        %921 = vmatpush1.bf16.xpose.msra.mxu0 0
        %922 = vmatprep.subr.bf16.mxu0 0
        %923 = vmatpush1.bf16.xpose.msra.mxu0 0
        %924 = vmatprep.subr.bf16.mxu0 0
        %925 = vmatpush1.bf16.xpose.msra.mxu0 0
        %926 = vmatprep.subr.bf16.mxu0 0
        %927 = vmatpush1.bf16.xpose.msra.mxu0 0
        %928 = vmatprep.subr.bf16.mxu0 0
        %929 = vmatpush1.bf16.xpose.msra.mxu0 0
        %930 = vmatprep.subr.bf16.mxu0 0
        %931 = vmatpush1.bf16.xpose.msra.mxu0 0
        %932 = vmatprep.subr.bf16.mxu0 0
        %933 = vmatpush1.bf16.xpose.msra.mxu0 0
        %934 = vmatprep.subr.bf16.mxu0 0
        %935 = vmatpush1.bf16.xpose.msra.mxu0 0
        %936 = vmatprep.subr.bf16.mxu0 0
        %937 = vmatpush1.bf16.xpose.msra.mxu0 0
        %938 = vmatprep.subr.bf16.mxu0 0
        %939 = vmatpush1.bf16.xpose.msra.mxu0 0
        %940 = vmatprep.mubr.bf16.mxu0 0
        %941 = vmatmul.mubr.bf16.gmra.mrb[0].mxu0 %v903
        %v942 = vpop.f32.mrb[0].mxu0
        %v943 = vadd.f32 0.0, %v942
        %v944 = vpop.f32.mrb[0].mxu0
        %v945 = vpop.f32.mrb[0].mxu0
        %v946 = vpop.f32.mrb[0].mxu0
        %947 = vdwg.mxu0
        %v948 = vsel %vm789, %v943, -inf
        %949 = vmax.xlane.f32.xlu0 %v948
        %v950 = vpop.xlane.xlu0 %949
        %v951 = vsub.f32 %v943, %v950
        %v952 = vmul.f32 %v951, 1.442695
        %v953 = vpow.pop %v952
        %v954 = vsel %vm789, %v953, 0.0
        %955 = vadd.xlane.f32.xlu0 %v954
        %v956 = vpop.xlane.xlu0 %955
        %v957 = vrcp.pop %v956
        %v958 = vmul.f32 %v953, %v957
        %v959 = vpack.c.bf16 %v958, %v958
        %961 = vrot.lane.b32.xlu0 %v788, 120
        %v962 = vpop.permute.xlu0 %961
        %v964 = vsel %vm789, %v959, 0
        %v967 = vsel %vm851, %v962, 0
        %969 = vmatprep.subr.bf16.mxu0 0
        %970 = vmatpush1.bf16.msra.mxu0 %v967
        %971 = vmatprep.subr.bf16.mxu0 0
        %972 = vmatpush1.bf16.msra.mxu0 0
        %973 = vmatprep.subr.bf16.mxu0 0
        %974 = vmatpush1.bf16.msra.mxu0 0
        %975 = vmatprep.subr.bf16.mxu0 0
        %976 = vmatpush1.bf16.msra.mxu0 0
        %977 = vmatprep.subr.bf16.mxu0 0
        %978 = vmatpush1.bf16.msra.mxu0 0
        %979 = vmatprep.subr.bf16.mxu0 0
        %980 = vmatpush1.bf16.msra.mxu0 0
        %981 = vmatprep.subr.bf16.mxu0 0
        %982 = vmatpush1.bf16.msra.mxu0 0
        %983 = vmatprep.subr.bf16.mxu0 0
        %984 = vmatpush1.bf16.msra.mxu0 0
        %985 = vmatprep.subr.bf16.mxu0 0
        %986 = vmatpush1.bf16.msra.mxu0 0
        %987 = vmatprep.subr.bf16.mxu0 0
        %988 = vmatpush1.bf16.msra.mxu0 0
        %989 = vmatprep.subr.bf16.mxu0 0
        %990 = vmatpush1.bf16.msra.mxu0 0
        %991 = vmatprep.subr.bf16.mxu0 0
        %992 = vmatpush1.bf16.msra.mxu0 0
        %993 = vmatprep.subr.bf16.mxu0 0
        %994 = vmatpush1.bf16.msra.mxu0 0
        %995 = vmatprep.subr.bf16.mxu0 0
        %996 = vmatpush1.bf16.msra.mxu0 0
        %997 = vmatprep.subr.bf16.mxu0 0
        %998 = vmatpush1.bf16.msra.mxu0 0
        %999 = vmatprep.subr.bf16.mxu0 0
        %1000 = vmatpush1.bf16.msra.mxu0 0
        %1001 = vmatprep.mubr.bf16.mxu0 0
        %1002 = vmatmul.mubr.bf16.gmra.mrb[0].mxu0 %v964
        %v1003 = vpop.f32.mrb[0].mxu0
        %v1004 = vadd.f32 0.0, %v1003
        %v1005 = vpop.f32.mrb[0].mxu0
        %v1006 = vpop.f32.mrb[0].mxu0
        %v1007 = vpop.f32.mrb[0].mxu0
        %1008 = vdwg.mxu0
        %1010 = vrot.lane.b32.xlu0 %v1004, 8
        %v1011 = vpop.permute.xlu0 %1010
        %vm1013 = vcmask 130112
        %1014 = vst.msk [vmem:[#allocation3] sm:$0xff] %vm1013, %v1011
        %1015 = vrot.lane.b32.xlu0 %v786, 112
        %v1016 = vpop.permute.xlu0 %1015
        %1017 = vrot.lane.b32.xlu0 %v787, 112
        %v1018 = vpop.permute.xlu0 %1017
        %v1020 = vsel %vm789, %v1016, 0
        %v1023 = vsel %vm789, %v1018, 0
        %1025 = vmatprep.subr.bf16.mxu0 0
        %1026 = vmatpush1.bf16.xpose.msra.mxu0 %v1023
        %1027 = vmatprep.subr.bf16.mxu0 0
        %1028 = vmatpush1.bf16.xpose.msra.mxu0 0
        %1029 = vmatprep.subr.bf16.mxu0 0
        %1030 = vmatpush1.bf16.xpose.msra.mxu0 0
        %1031 = vmatprep.subr.bf16.mxu0 0
        %1032 = vmatpush1.bf16.xpose.msra.mxu0 0
        %1033 = vmatprep.subr.bf16.mxu0 0
        %1034 = vmatpush1.bf16.xpose.msra.mxu0 0
        %1035 = vmatprep.subr.bf16.mxu0 0
        %1036 = vmatpush1.bf16.xpose.msra.mxu0 0
        %1037 = vmatprep.subr.bf16.mxu0 0
        %1038 = vmatpush1.bf16.xpose.msra.mxu0 0
        %1039 = vmatprep.subr.bf16.mxu0 0
        %1040 = vmatpush1.bf16.xpose.msra.mxu0 0
        %1041 = vmatprep.subr.bf16.mxu0 0
        %1042 = vmatpush1.bf16.xpose.msra.mxu0 0
        %1043 = vmatprep.subr.bf16.mxu0 0
        %1044 = vmatpush1.bf16.xpose.msra.mxu0 0
        %1045 = vmatprep.subr.bf16.mxu0 0
        %1046 = vmatpush1.bf16.xpose.msra.mxu0 0
        %1047 = vmatprep.subr.bf16.mxu0 0
        %1048 = vmatpush1.bf16.xpose.msra.mxu0 0
        %1049 = vmatprep.subr.bf16.mxu0 0
        %1050 = vmatpush1.bf16.xpose.msra.mxu0 0
        %1051 = vmatprep.subr.bf16.mxu0 0
        %1052 = vmatpush1.bf16.xpose.msra.mxu0 0
        %1053 = vmatprep.subr.bf16.mxu0 0
        %1054 = vmatpush1.bf16.xpose.msra.mxu0 0
        %1055 = vmatprep.subr.bf16.mxu0 0
        %1056 = vmatpush1.bf16.xpose.msra.mxu0 0
        %1057 = vmatprep.mubr.bf16.mxu0 0
        %1058 = vmatmul.mubr.bf16.gmra.mrb[0].mxu0 %v1020
        %v1059 = vpop.f32.mrb[0].mxu0
        %v1060 = vadd.f32 0.0, %v1059
        %v1061 = vpop.f32.mrb[0].mxu0
        %v1062 = vpop.f32.mrb[0].mxu0
        %v1063 = vpop.f32.mrb[0].mxu0
        %1064 = vdwg.mxu0
        %v1065 = vsel %vm789, %v1060, -inf
        %1066 = vmax.xlane.f32.xlu0 %v1065
        %v1067 = vpop.xlane.xlu0 %1066
        %v1068 = vsub.f32 %v1060, %v1067
        %v1069 = vmul.f32 %v1068, 1.442695
        %v1070 = vpow.pop %v1069
        %v1071 = vsel %vm789, %v1070, 0.0
        %1072 = vadd.xlane.f32.xlu0 %v1071
        %v1073 = vpop.xlane.xlu0 %1072
        %v1074 = vrcp.pop %v1073
        %v1075 = vmul.f32 %v1070, %v1074
        %v1076 = vpack.c.bf16 %v1075, %v1075
        %1077 = vrot.lane.b32.xlu0 %v788, 112
        %v1078 = vpop.permute.xlu0 %1077
        %v1080 = vsel %vm789, %v1076, 0
        %v1083 = vsel %vm851, %v1078, 0
        %1085 = vmatprep.subr.bf16.mxu0 0
        %1086 = vmatpush1.bf16.msra.mxu0 %v1083
        %1087 = vmatprep.subr.bf16.mxu0 0
        %1088 = vmatpush1.bf16.msra.mxu0 0
        %1089 = vmatprep.subr.bf16.mxu0 0
        %1090 = vmatpush1.bf16.msra.mxu0 0
        %1091 = vmatprep.subr.bf16.mxu0 0
        %1092 = vmatpush1.bf16.msra.mxu0 0
        %1093 = vmatprep.subr.bf16.mxu0 0
        %1094 = vmatpush1.bf16.msra.mxu0 0
        %1095 = vmatprep.subr.bf16.mxu0 0
        %1096 = vmatpush1.bf16.msra.mxu0 0
        %1097 = vmatprep.subr.bf16.mxu0 0
        %1098 = vmatpush1.bf16.msra.mxu0 0
        %1099 = vmatprep.subr.bf16.mxu0 0
        %1100 = vmatpush1.bf16.msra.mxu0 0
        %1101 = vmatprep.subr.bf16.mxu0 0
        %1102 = vmatpush1.bf16.msra.mxu0 0
        %1103 = vmatprep.subr.bf16.mxu0 0
        %1104 = vmatpush1.bf16.msra.mxu0 0
        %1105 = vmatprep.subr.bf16.mxu0 0
        %1106 = vmatpush1.bf16.msra.mxu0 0
        %1107 = vmatprep.subr.bf16.mxu0 0
        %1108 = vmatpush1.bf16.msra.mxu0 0
        %1109 = vmatprep.subr.bf16.mxu0 0
        %1110 = vmatpush1.bf16.msra.mxu0 0
        %1111 = vmatprep.subr.bf16.mxu0 0
        %1112 = vmatpush1.bf16.msra.mxu0 0
        %1113 = vmatprep.subr.bf16.mxu0 0
        %1114 = vmatpush1.bf16.msra.mxu0 0
        %1115 = vmatprep.subr.bf16.mxu0 0
        %1116 = vmatpush1.bf16.msra.mxu0 0
        %1117 = vmatprep.mubr.bf16.mxu0 0
        %1118 = vmatmul.mubr.bf16.gmra.mrb[0].mxu0 %v1080
        %v1119 = vpop.f32.mrb[0].mxu0
        %v1120 = vadd.f32 0.0, %v1119
        %v1121 = vpop.f32.mrb[0].mxu0
        %v1122 = vpop.f32.mrb[0].mxu0
        %v1123 = vpop.f32.mrb[0].mxu0
        %1124 = vdwg.mxu0
        %1126 = vrot.lane.b32.xlu0 %v1120, 16
        %v1127 = vpop.permute.xlu0 %1126
        %vm1129 = vcmask 195712
        %1130 = vst.msk [vmem:[#allocation3] sm:$0xff] %vm1129, %v1127
        %1131 = vrot.lane.b32.xlu0 %v786, 104
        %v1132 = vpop.permute.xlu0 %1131
        %1133 = vrot.lane.b32.xlu0 %v787, 104
        %v1134 = vpop.permute.xlu0 %1133
        %v1136 = vsel %vm789, %v1132, 0
        %v1139 = vsel %vm789, %v1134, 0
        %1141 = vmatprep.subr.bf16.mxu0 0
        %1142 = vmatpush1.bf16.xpose.msra.mxu0 %v1139
        %1143 = vmatprep.subr.bf16.mxu0 0
        %1144 = vmatpush1.bf16.xpose.msra.mxu0 0
        %1145 = vmatprep.subr.bf16.mxu0 0
        %1146 = vmatpush1.bf16.xpose.msra.mxu0 0
        %1147 = vmatprep.subr.bf16.mxu0 0
        %1148 = vmatpush1.bf16.xpose.msra.mxu0 0
        %1149 = vmatprep.subr.bf16.mxu0 0
        %1150 = vmatpush1.bf16.xpose.msra.mxu0 0
        %1151 = vmatprep.subr.bf16.mxu0 0
        %1152 = vmatpush1.bf16.xpose.msra.mxu0 0
        %1153 = vmatprep.subr.bf16.mxu0 0
        %1154 = vmatpush1.bf16.xpose.msra.mxu0 0
        %1155 = vmatprep.subr.bf16.mxu0 0
        %1156 = vmatpush1.bf16.xpose.msra.mxu0 0
        %1157 = vmatprep.subr.bf16.mxu0 0
        %1158 = vmatpush1.bf16.xpose.msra.mxu0 0
        %1159 = vmatprep.subr.bf16.mxu0 0
        %1160 = vmatpush1.bf16.xpose.msra.mxu0 0
        %1161 = vmatprep.subr.bf16.mxu0 0
        %1162 = vmatpush1.bf16.xpose.msra.mxu0 0
        %1163 = vmatprep.subr.bf16.mxu0 0
        %1164 = vmatpush1.bf16.xpose.msra.mxu0 0
        %1165 = vmatprep.subr.bf16.mxu0 0
        %1166 = vmatpush1.bf16.xpose.msra.mxu0 0
        %1167 = vmatprep.subr.bf16.mxu0 0
        %1168 = vmatpush1.bf16.xpose.msra.mxu0 0
        %1169 = vmatprep.subr.bf16.mxu0 0
        %1170 = vmatpush1.bf16.xpose.msra.mxu0 0
        %1171 = vmatprep.subr.bf16.mxu0 0
        %1172 = vmatpush1.bf16.xpose.msra.mxu0 0
        %1173 = vmatprep.mubr.bf16.mxu0 0
        %1174 = vmatmul.mubr.bf16.gmra.mrb[0].mxu0 %v1136
        %v1175 = vpop.f32.mrb[0].mxu0
        %v1176 = vadd.f32 0.0, %v1175
        %v1177 = vpop.f32.mrb[0].mxu0
        %v1178 = vpop.f32.mrb[0].mxu0
        %v1179 = vpop.f32.mrb[0].mxu0
        %1180 = vdwg.mxu0
        %v1181 = vsel %vm789, %v1176, -inf
        %1182 = vmax.xlane.f32.xlu0 %v1181
        %v1183 = vpop.xlane.xlu0 %1182
        %v1184 = vsub.f32 %v1176, %v1183
        %v1185 = vmul.f32 %v1184, 1.442695
        %v1186 = vpow.pop %v1185
        %v1187 = vsel %vm789, %v1186, 0.0
        %1188 = vadd.xlane.f32.xlu0 %v1187
        %v1189 = vpop.xlane.xlu0 %1188
        %v1190 = vrcp.pop %v1189
        %v1191 = vmul.f32 %v1186, %v1190
        %v1192 = vpack.c.bf16 %v1191, %v1191
        %1193 = vrot.lane.b32.xlu0 %v788, 104
        %v1194 = vpop.permute.xlu0 %1193
        %v1196 = vsel %vm789, %v1192, 0
        %v1199 = vsel %vm851, %v1194, 0
        %1201 = vmatprep.subr.bf16.mxu0 0
        %1202 = vmatpush1.bf16.msra.mxu0 %v1199
        %1203 = vmatprep.subr.bf16.mxu0 0
        %1204 = vmatpush1.bf16.msra.mxu0 0
        %1205 = vmatprep.subr.bf16.mxu0 0
        %1206 = vmatpush1.bf16.msra.mxu0 0
        %1207 = vmatprep.subr.bf16.mxu0 0
        %1208 = vmatpush1.bf16.msra.mxu0 0
        %1209 = vmatprep.subr.bf16.mxu0 0
        %1210 = vmatpush1.bf16.msra.mxu0 0
        %1211 = vmatprep.subr.bf16.mxu0 0
        %1212 = vmatpush1.bf16.msra.mxu0 0
        %1213 = vmatprep.subr.bf16.mxu0 0
        %1214 = vmatpush1.bf16.msra.mxu0 0
        %1215 = vmatprep.subr.bf16.mxu0 0
        %1216 = vmatpush1.bf16.msra.mxu0 0
        %1217 = vmatprep.subr.bf16.mxu0 0
        %1218 = vmatpush1.bf16.msra.mxu0 0
        %1219 = vmatprep.subr.bf16.mxu0 0
        %1220 = vmatpush1.bf16.msra.mxu0 0
        %1221 = vmatprep.subr.bf16.mxu0 0
        %1222 = vmatpush1.bf16.msra.mxu0 0
        %1223 = vmatprep.subr.bf16.mxu0 0
        %1224 = vmatpush1.bf16.msra.mxu0 0
        %1225 = vmatprep.subr.bf16.mxu0 0
        %1226 = vmatpush1.bf16.msra.mxu0 0
        %1227 = vmatprep.subr.bf16.mxu0 0
        %1228 = vmatpush1.bf16.msra.mxu0 0
        %1229 = vmatprep.subr.bf16.mxu0 0
        %1230 = vmatpush1.bf16.msra.mxu0 0
        %1231 = vmatprep.subr.bf16.mxu0 0
        %1232 = vmatpush1.bf16.msra.mxu0 0
        %1233 = vmatprep.mubr.bf16.mxu0 0
        %1234 = vmatmul.mubr.bf16.gmra.mrb[0].mxu0 %v1196
        %v1235 = vpop.f32.mrb[0].mxu0
        %v1236 = vadd.f32 0.0, %v1235
        %v1237 = vpop.f32.mrb[0].mxu0
        %v1238 = vpop.f32.mrb[0].mxu0
        %v1239 = vpop.f32.mrb[0].mxu0
        %1240 = vdwg.mxu0
        %1242 = vrot.lane.b32.xlu0 %v1236, 24
        %v1243 = vpop.permute.xlu0 %1242
        %vm1245 = vcmask 261312
        %1246 = vst.msk [vmem:[#allocation3] sm:$0xff] %vm1245, %v1243
        %v1247 = vld [vmem:[#allocation3] sm:$0xff]
        %v1248 = vpack.c.bf16 %v1247, %v1247
        %v1249 = vlaneseq
        %v1250 = vshrl.u32 %v1249, 7
        %v1251 = vsub.s32 3, %v1250
        %v1252 = vrot.slane %v602, %v1251
        %v1257 = vunpack.c.l.b16 %v582
        %v1258 = vunpack.c.l.b16 %v583
        %v1259 = vunpack.c.l.b16 %v584
        %v1260 = vunpack.c.l.b16 %v585
        %v1261 = vpack.c.b16 %v1258, %v1257
        %v1262 = vpack.c.b16 %v1260, %v1259
        %v1266 = vsel %vm630, %v1248, 0
        %1268 = vmatprep.subr.bf16.mxu0 0
        %1269 = vmatpush1.bf16.msra.mxu0 %v1261
        %1270 = vmatprep.subr.bf16.mxu0 0
        %1271 = vmatpush1.bf16.msra.mxu0 %v1262
        %1272 = vmatprep.subr.bf16.mxu0 0
        %1273 = vmatpush1.bf16.msra.mxu0 0
        %1274 = vmatprep.subr.bf16.mxu0 0
        %1275 = vmatpush1.bf16.msra.mxu0 0
        %1276 = vmatprep.subr.bf16.mxu0 0
        %1277 = vmatpush1.bf16.msra.mxu0 0
        %1278 = vmatprep.subr.bf16.mxu0 0
        %1279 = vmatpush1.bf16.msra.mxu0 0
        %1280 = vmatprep.subr.bf16.mxu0 0
        %1281 = vmatpush1.bf16.msra.mxu0 0
        %1282 = vmatprep.subr.bf16.mxu0 0
        %1283 = vmatpush1.bf16.msra.mxu0 0
        %1284 = vmatprep.subr.bf16.mxu0 0
        %1285 = vmatpush1.bf16.msra.mxu0 0
        %1286 = vmatprep.subr.bf16.mxu0 0
        %1287 = vmatpush1.bf16.msra.mxu0 0
        %1288 = vmatprep.subr.bf16.mxu0 0
        %1289 = vmatpush1.bf16.msra.mxu0 0
        %1290 = vmatprep.subr.bf16.mxu0 0
        %1291 = vmatpush1.bf16.msra.mxu0 0
        %1292 = vmatprep.subr.bf16.mxu0 0
        %1293 = vmatpush1.bf16.msra.mxu0 0
        %1294 = vmatprep.subr.bf16.mxu0 0
        %1295 = vmatpush1.bf16.msra.mxu0 0
        %1296 = vmatprep.subr.bf16.mxu0 0
        %1297 = vmatpush1.bf16.msra.mxu0 0
        %1298 = vmatprep.subr.bf16.mxu0 0
        %1299 = vmatpush1.bf16.msra.mxu0 0
        %1300 = vmatprep.mubr.bf16.mxu0 0
        %1301 = vmatmul.mubr.bf16.gmra.mrb[0].mxu0 %v1266
        %v1302 = vpop.f32.mrb[0].mxu0
        %v1303 = vadd.f32 %v1252, %v1302
        %v1304 = vpop.f32.mrb[0].mxu0
        %v1305 = vpop.f32.mrb[0].mxu0
        %v1306 = vpop.f32.mrb[0].mxu0
        %1307 = vdwg.mxu0
        %v1308 = vadd.f32 %v1303, %v612
        %v1309 = vsel %vm630, %v1308, 0.0
        %1310 = vadd.xlane.f32.xlu0 %v1309
        %v1311 = vpop.xlane.xlu0 %1310
        %v1312 = vrcp.pop 32.0
        %v1313 = vmul.f32 %v1311, %v1312
        %v1314 = vsub.f32 %v1308, %v1313
        %v1315 = vmul.f32 %v1314, %v1314
        %v1316 = vsel %vm630, %v1315, 0.0
        %1317 = vadd.xlane.f32.xlu0 %v1316
        %v1318 = vpop.xlane.xlu0 %1317
        %v1319 = vmul.f32 %v1318, %v1312
        %v1320 = vadd.f32 %v1319, 1e-05
        %v1321 = vrsqrt.pop %v1320
        %v1322 = vmul.f32 %v1314, %v1321
        %v1323 = vlaneseq
        %v1324 = vshrl.u32 %v1323, 7
        %v1325 = vsub.s32 1, %v1324
        %v1326 = vrot.slane %v603, %v1325
        %v1327 = vmul.f32 %v1322, %v1326
        %v1328 = vlaneseq
        %v1329 = vshrl.u32 %v1328, 7
        %v1330 = vsub.s32 2, %v1329
        %v1331 = vrot.slane %v603, %v1330
        %v1332 = vadd.f32 %v1327, %v1331
        %v1333 = vpack.c.bf16 %v1332, %v1332
        %v1334 = vld [vmem:[%s452] sm:$0xff]
        %v1335 = vpack.c.bf16 %v1334, %v1334
        %v1336 = vlaneseq
        %v1337 = vshrl.u32 %v1336, 7
        %v1338 = vsub.s32 4, %v1337
        %v1339 = vrot.slane %v602, %v1338
        %v1344 = vunpack.c.l.b16 %v586
        %v1345 = vunpack.c.l.b16 %v587
        %v1346 = vunpack.c.l.b16 %v588
        %v1347 = vunpack.c.l.b16 %v589
        %v1348 = vpack.c.b16 %v1345, %v1344
        %v1349 = vpack.c.b16 %v1347, %v1346
        %v1353 = vsel %vm630, %v1333, 0
        %1355 = vmatprep.subr.bf16.mxu0 0
        %1356 = vmatpush1.bf16.msra.mxu0 %v1348
        %1357 = vmatprep.subr.bf16.mxu0 0
        %1358 = vmatpush1.bf16.msra.mxu0 %v1349
        %1359 = vmatprep.subr.bf16.mxu0 0
        %1360 = vmatpush1.bf16.msra.mxu0 0
        %1361 = vmatprep.subr.bf16.mxu0 0
        %1362 = vmatpush1.bf16.msra.mxu0 0
        %1363 = vmatprep.subr.bf16.mxu0 0
        %1364 = vmatpush1.bf16.msra.mxu0 0
        %1365 = vmatprep.subr.bf16.mxu0 0
        %1366 = vmatpush1.bf16.msra.mxu0 0
        %1367 = vmatprep.subr.bf16.mxu0 0
        %1368 = vmatpush1.bf16.msra.mxu0 0
        %1369 = vmatprep.subr.bf16.mxu0 0
        %1370 = vmatpush1.bf16.msra.mxu0 0
        %1371 = vmatprep.subr.bf16.mxu0 0
        %1372 = vmatpush1.bf16.msra.mxu0 0
        %1373 = vmatprep.subr.bf16.mxu0 0
        %1374 = vmatpush1.bf16.msra.mxu0 0
        %1375 = vmatprep.subr.bf16.mxu0 0
        %1376 = vmatpush1.bf16.msra.mxu0 0
        %1377 = vmatprep.subr.bf16.mxu0 0
        %1378 = vmatpush1.bf16.msra.mxu0 0
        %1379 = vmatprep.subr.bf16.mxu0 0
        %1380 = vmatpush1.bf16.msra.mxu0 0
        %1381 = vmatprep.subr.bf16.mxu0 0
        %1382 = vmatpush1.bf16.msra.mxu0 0
        %1383 = vmatprep.subr.bf16.mxu0 0
        %1384 = vmatpush1.bf16.msra.mxu0 0
        %1385 = vmatprep.subr.bf16.mxu0 0
        %1386 = vmatpush1.bf16.msra.mxu0 0
        %1387 = vmatprep.mubr.bf16.mxu0 0
        %1388 = vmatmul.mubr.bf16.gmra.mrb[0].mxu0 %v1353
        %v1389 = vpop.f32.mrb[0].mxu0
        %v1390 = vadd.f32 %v1339, %v1389
        %v1391 = vpop.f32.mrb[0].mxu0
        %v1392 = vpop.f32.mrb[0].mxu0
        %v1393 = vpop.f32.mrb[0].mxu0
        %1394 = vdwg.mxu0
        %v1395 = vlaneseq
        %v1396 = vshrl.u32 %v1395, 7
        %v1397 = vsub.s32 5, %v1396
        %v1398 = vrot.slane %v602, %v1397
        %v1403 = vunpack.c.l.b16 %v590
        %v1404 = vunpack.c.l.b16 %v591
        %v1405 = vunpack.c.l.b16 %v592
        %v1406 = vunpack.c.l.b16 %v593
        %v1407 = vpack.c.b16 %v1404, %v1403
        %v1408 = vpack.c.b16 %v1406, %v1405
        %v1412 = vsel %vm630, %v1335, 0
        %1414 = vmatprep.subr.bf16.mxu0 0
        %1415 = vmatpush1.bf16.msra.mxu0 %v1407
        %1416 = vmatprep.subr.bf16.mxu0 0
        %1417 = vmatpush1.bf16.msra.mxu0 %v1408
        %1418 = vmatprep.subr.bf16.mxu0 0
        %1419 = vmatpush1.bf16.msra.mxu0 0
        %1420 = vmatprep.subr.bf16.mxu0 0
        %1421 = vmatpush1.bf16.msra.mxu0 0
        %1422 = vmatprep.subr.bf16.mxu0 0
        %1423 = vmatpush1.bf16.msra.mxu0 0
        %1424 = vmatprep.subr.bf16.mxu0 0
        %1425 = vmatpush1.bf16.msra.mxu0 0
        %1426 = vmatprep.subr.bf16.mxu0 0
        %1427 = vmatpush1.bf16.msra.mxu0 0
        %1428 = vmatprep.subr.bf16.mxu0 0
        %1429 = vmatpush1.bf16.msra.mxu0 0
        %1430 = vmatprep.subr.bf16.mxu0 0
        %1431 = vmatpush1.bf16.msra.mxu0 0
        %1432 = vmatprep.subr.bf16.mxu0 0
        %1433 = vmatpush1.bf16.msra.mxu0 0
        %1434 = vmatprep.subr.bf16.mxu0 0
        %1435 = vmatpush1.bf16.msra.mxu0 0
        %1436 = vmatprep.subr.bf16.mxu0 0
        %1437 = vmatpush1.bf16.msra.mxu0 0
        %1438 = vmatprep.subr.bf16.mxu0 0
        %1439 = vmatpush1.bf16.msra.mxu0 0
        %1440 = vmatprep.subr.bf16.mxu0 0
        %1441 = vmatpush1.bf16.msra.mxu0 0
        %1442 = vmatprep.subr.bf16.mxu0 0
        %1443 = vmatpush1.bf16.msra.mxu0 0
        %1444 = vmatprep.subr.bf16.mxu0 0
        %1445 = vmatpush1.bf16.msra.mxu0 0
        %1446 = vmatprep.mubr.bf16.mxu0 0
        %1447 = vmatmul.mubr.bf16.gmra.mrb[0].mxu0 %v1412
        %v1448 = vpop.f32.mrb[0].mxu0
        %v1449 = vadd.f32 %v1398, %v1448
        %v1450 = vpop.f32.mrb[0].mxu0
        %v1451 = vpop.f32.mrb[0].mxu0
        %v1452 = vpop.f32.mrb[0].mxu0
        %1453 = vdwg.mxu0
        %v1454 = vlaneseq
        %v1455 = vshrl.u32 %v1454, 7
        %v1456 = vsub.s32 6, %v1455
        %v1457 = vrot.slane %v602, %v1456
        %v1462 = vunpack.c.l.b16 %v594
        %v1463 = vunpack.c.l.b16 %v595
        %v1464 = vunpack.c.l.b16 %v596
        %v1465 = vunpack.c.l.b16 %v597
        %v1466 = vpack.c.b16 %v1463, %v1462
        %v1467 = vpack.c.b16 %v1465, %v1464
        %1470 = vmatprep.subr.bf16.mxu0 0
        %1471 = vmatpush1.bf16.msra.mxu0 %v1466
        %1472 = vmatprep.subr.bf16.mxu0 0
        %1473 = vmatpush1.bf16.msra.mxu0 %v1467
        %1474 = vmatprep.subr.bf16.mxu0 0
        %1475 = vmatpush1.bf16.msra.mxu0 0
        %1476 = vmatprep.subr.bf16.mxu0 0
        %1477 = vmatpush1.bf16.msra.mxu0 0
        %1478 = vmatprep.subr.bf16.mxu0 0
        %1479 = vmatpush1.bf16.msra.mxu0 0
        %1480 = vmatprep.subr.bf16.mxu0 0
        %1481 = vmatpush1.bf16.msra.mxu0 0
        %1482 = vmatprep.subr.bf16.mxu0 0
        %1483 = vmatpush1.bf16.msra.mxu0 0
        %1484 = vmatprep.subr.bf16.mxu0 0
        %1485 = vmatpush1.bf16.msra.mxu0 0
        %1486 = vmatprep.subr.bf16.mxu0 0
        %1487 = vmatpush1.bf16.msra.mxu0 0
        %1488 = vmatprep.subr.bf16.mxu0 0
        %1489 = vmatpush1.bf16.msra.mxu0 0
        %1490 = vmatprep.subr.bf16.mxu0 0
        %1491 = vmatpush1.bf16.msra.mxu0 0
        %1492 = vmatprep.subr.bf16.mxu0 0
        %1493 = vmatpush1.bf16.msra.mxu0 0
        %1494 = vmatprep.subr.bf16.mxu0 0
        %1495 = vmatpush1.bf16.msra.mxu0 0
        %1496 = vmatprep.subr.bf16.mxu0 0
        %1497 = vmatpush1.bf16.msra.mxu0 0
        %1498 = vmatprep.subr.bf16.mxu0 0
        %1499 = vmatpush1.bf16.msra.mxu0 0
        %1500 = vmatprep.subr.bf16.mxu0 0
        %1501 = vmatpush1.bf16.msra.mxu0 0
        %1502 = vmatprep.mubr.bf16.mxu0 0
        %1503 = vmatmul.mubr.bf16.gmra.mrb[0].mxu0 %v1412
        %v1504 = vpop.f32.mrb[0].mxu0
        %v1505 = vadd.f32 %v1457, %v1504
        %v1506 = vpop.f32.mrb[0].mxu0
        %v1507 = vpop.f32.mrb[0].mxu0
        %v1508 = vpop.f32.mrb[0].mxu0
        %1509 = vdwg.mxu0
        %v1510 = vpack.c.bf16 %v1390, %v1390
        %v1511 = vpack.c.bf16 %v1449, %v1449
        %v1512 = vpack.c.bf16 %v1505, %v1505
        %v1514 = vsel %vm789, %v1510, 0
        %v1517 = vsel %vm789, %v1511, 0
        %1519 = vmatprep.subr.bf16.mxu0 0
        %1520 = vmatpush1.bf16.xpose.msra.mxu0 %v1517
        %1521 = vmatprep.subr.bf16.mxu0 0
        %1522 = vmatpush1.bf16.xpose.msra.mxu0 0
        %1523 = vmatprep.subr.bf16.mxu0 0
        %1524 = vmatpush1.bf16.xpose.msra.mxu0 0
        %1525 = vmatprep.subr.bf16.mxu0 0
        %1526 = vmatpush1.bf16.xpose.msra.mxu0 0
        %1527 = vmatprep.subr.bf16.mxu0 0
        %1528 = vmatpush1.bf16.xpose.msra.mxu0 0
        %1529 = vmatprep.subr.bf16.mxu0 0
        %1530 = vmatpush1.bf16.xpose.msra.mxu0 0
        %1531 = vmatprep.subr.bf16.mxu0 0
        %1532 = vmatpush1.bf16.xpose.msra.mxu0 0
        %1533 = vmatprep.subr.bf16.mxu0 0
        %1534 = vmatpush1.bf16.xpose.msra.mxu0 0
        %1535 = vmatprep.subr.bf16.mxu0 0
        %1536 = vmatpush1.bf16.xpose.msra.mxu0 0
        %1537 = vmatprep.subr.bf16.mxu0 0
        %1538 = vmatpush1.bf16.xpose.msra.mxu0 0
        %1539 = vmatprep.subr.bf16.mxu0 0
        %1540 = vmatpush1.bf16.xpose.msra.mxu0 0
        %1541 = vmatprep.subr.bf16.mxu0 0
        %1542 = vmatpush1.bf16.xpose.msra.mxu0 0
        %1543 = vmatprep.subr.bf16.mxu0 0
        %1544 = vmatpush1.bf16.xpose.msra.mxu0 0
        %1545 = vmatprep.subr.bf16.mxu0 0
        %1546 = vmatpush1.bf16.xpose.msra.mxu0 0
        %1547 = vmatprep.subr.bf16.mxu0 0
        %1548 = vmatpush1.bf16.xpose.msra.mxu0 0
        %1549 = vmatprep.subr.bf16.mxu0 0
        %1550 = vmatpush1.bf16.xpose.msra.mxu0 0
        %1551 = vmatprep.mubr.bf16.mxu0 0
        %1552 = vmatmul.mubr.bf16.gmra.mrb[0].mxu0 %v1514
        %v1553 = vpop.f32.mrb[0].mxu0
        %v1554 = vadd.f32 0.0, %v1553
        %v1555 = vpop.f32.mrb[0].mxu0
        %v1556 = vpop.f32.mrb[0].mxu0
        %v1557 = vpop.f32.mrb[0].mxu0
        %1558 = vdwg.mxu0
        %v1559 = vsel %vm789, %v1554, -inf
        %1560 = vmax.xlane.f32.xlu0 %v1559
        %v1561 = vpop.xlane.xlu0 %1560
        %v1562 = vsub.f32 %v1554, %v1561
        %v1563 = vmul.f32 %v1562, 1.442695
        %v1564 = vpow.pop %v1563
        %v1565 = vsel %vm789, %v1564, 0.0
        %1566 = vadd.xlane.f32.xlu0 %v1565
        %v1567 = vpop.xlane.xlu0 %1566
        %v1568 = vrcp.pop %v1567
        %v1569 = vmul.f32 %v1564, %v1568
        %v1570 = vpack.c.bf16 %v1569, %v1569
        %v1572 = vsel %vm789, %v1570, 0
        %v1575 = vsel %vm851, %v1512, 0
        %1577 = vmatprep.subr.bf16.mxu0 0
        %1578 = vmatpush1.bf16.msra.mxu0 %v1575
        %1579 = vmatprep.subr.bf16.mxu0 0
        %1580 = vmatpush1.bf16.msra.mxu0 0
        %1581 = vmatprep.subr.bf16.mxu0 0
        %1582 = vmatpush1.bf16.msra.mxu0 0
        %1583 = vmatprep.subr.bf16.mxu0 0
        %1584 = vmatpush1.bf16.msra.mxu0 0
        %1585 = vmatprep.subr.bf16.mxu0 0
        %1586 = vmatpush1.bf16.msra.mxu0 0
        %1587 = vmatprep.subr.bf16.mxu0 0
        %1588 = vmatpush1.bf16.msra.mxu0 0
        %1589 = vmatprep.subr.bf16.mxu0 0
        %1590 = vmatpush1.bf16.msra.mxu0 0
        %1591 = vmatprep.subr.bf16.mxu0 0
        %1592 = vmatpush1.bf16.msra.mxu0 0
        %1593 = vmatprep.subr.bf16.mxu0 0
        %1594 = vmatpush1.bf16.msra.mxu0 0
        %1595 = vmatprep.subr.bf16.mxu0 0
        %1596 = vmatpush1.bf16.msra.mxu0 0
        %1597 = vmatprep.subr.bf16.mxu0 0
        %1598 = vmatpush1.bf16.msra.mxu0 0
        %1599 = vmatprep.subr.bf16.mxu0 0
        %1600 = vmatpush1.bf16.msra.mxu0 0
        %1601 = vmatprep.subr.bf16.mxu0 0
        %1602 = vmatpush1.bf16.msra.mxu0 0
        %1603 = vmatprep.subr.bf16.mxu0 0
        %1604 = vmatpush1.bf16.msra.mxu0 0
        %1605 = vmatprep.subr.bf16.mxu0 0
        %1606 = vmatpush1.bf16.msra.mxu0 0
        %1607 = vmatprep.subr.bf16.mxu0 0
        %1608 = vmatpush1.bf16.msra.mxu0 0
        %1609 = vmatprep.mubr.bf16.mxu0 0
        %1610 = vmatmul.mubr.bf16.gmra.mrb[0].mxu0 %v1572
        %v1611 = vpop.f32.mrb[0].mxu0
        %v1612 = vadd.f32 0.0, %v1611
        %v1613 = vpop.f32.mrb[0].mxu0
        %v1614 = vpop.f32.mrb[0].mxu0
        %v1615 = vpop.f32.mrb[0].mxu0
        %1616 = vdwg.mxu0
        %1617 = vst.msk [vmem:[#allocation3] sm:$0xff] %vm789, %v1612
        %1619 = vrot.lane.b32.xlu0 %v1510, 120
        %v1620 = vpop.permute.xlu0 %1619
        %1622 = vrot.lane.b32.xlu0 %v1511, 120
        %v1623 = vpop.permute.xlu0 %1622
        %v1625 = vsel %vm789, %v1620, 0
        %v1628 = vsel %vm789, %v1623, 0
        %1630 = vmatprep.subr.bf16.mxu0 0
        %1631 = vmatpush1.bf16.xpose.msra.mxu0 %v1628
        %1632 = vmatprep.subr.bf16.mxu0 0
        %1633 = vmatpush1.bf16.xpose.msra.mxu0 0
        %1634 = vmatprep.subr.bf16.mxu0 0
        %1635 = vmatpush1.bf16.xpose.msra.mxu0 0
        %1636 = vmatprep.subr.bf16.mxu0 0
        %1637 = vmatpush1.bf16.xpose.msra.mxu0 0
        %1638 = vmatprep.subr.bf16.mxu0 0
        %1639 = vmatpush1.bf16.xpose.msra.mxu0 0
        %1640 = vmatprep.subr.bf16.mxu0 0
        %1641 = vmatpush1.bf16.xpose.msra.mxu0 0
        %1642 = vmatprep.subr.bf16.mxu0 0
        %1643 = vmatpush1.bf16.xpose.msra.mxu0 0
        %1644 = vmatprep.subr.bf16.mxu0 0
        %1645 = vmatpush1.bf16.xpose.msra.mxu0 0
        %1646 = vmatprep.subr.bf16.mxu0 0
        %1647 = vmatpush1.bf16.xpose.msra.mxu0 0
        %1648 = vmatprep.subr.bf16.mxu0 0
        %1649 = vmatpush1.bf16.xpose.msra.mxu0 0
        %1650 = vmatprep.subr.bf16.mxu0 0
        %1651 = vmatpush1.bf16.xpose.msra.mxu0 0
        %1652 = vmatprep.subr.bf16.mxu0 0
        %1653 = vmatpush1.bf16.xpose.msra.mxu0 0
        %1654 = vmatprep.subr.bf16.mxu0 0
        %1655 = vmatpush1.bf16.xpose.msra.mxu0 0
        %1656 = vmatprep.subr.bf16.mxu0 0
        %1657 = vmatpush1.bf16.xpose.msra.mxu0 0
        %1658 = vmatprep.subr.bf16.mxu0 0
        %1659 = vmatpush1.bf16.xpose.msra.mxu0 0
        %1660 = vmatprep.subr.bf16.mxu0 0
        %1661 = vmatpush1.bf16.xpose.msra.mxu0 0
        %1662 = vmatprep.mubr.bf16.mxu0 0
        %1663 = vmatmul.mubr.bf16.gmra.mrb[0].mxu0 %v1625
        %v1664 = vpop.f32.mrb[0].mxu0
        %v1665 = vadd.f32 0.0, %v1664
        %v1666 = vpop.f32.mrb[0].mxu0
        %v1667 = vpop.f32.mrb[0].mxu0
        %v1668 = vpop.f32.mrb[0].mxu0
        %1669 = vdwg.mxu0
        %v1670 = vsel %vm789, %v1665, -inf
        %1671 = vmax.xlane.f32.xlu0 %v1670
        %v1672 = vpop.xlane.xlu0 %1671
        %v1673 = vsub.f32 %v1665, %v1672
        %v1674 = vmul.f32 %v1673, 1.442695
        %v1675 = vpow.pop %v1674
        %v1676 = vsel %vm789, %v1675, 0.0
        %1677 = vadd.xlane.f32.xlu0 %v1676
        %v1678 = vpop.xlane.xlu0 %1677
        %v1679 = vrcp.pop %v1678
        %v1680 = vmul.f32 %v1675, %v1679
        %v1681 = vpack.c.bf16 %v1680, %v1680
        %1683 = vrot.lane.b32.xlu0 %v1512, 120
        %v1684 = vpop.permute.xlu0 %1683
        %v1686 = vsel %vm789, %v1681, 0
        %v1689 = vsel %vm851, %v1684, 0
        %1691 = vmatprep.subr.bf16.mxu0 0
        %1692 = vmatpush1.bf16.msra.mxu0 %v1689
        %1693 = vmatprep.subr.bf16.mxu0 0
        %1694 = vmatpush1.bf16.msra.mxu0 0
        %1695 = vmatprep.subr.bf16.mxu0 0
        %1696 = vmatpush1.bf16.msra.mxu0 0
        %1697 = vmatprep.subr.bf16.mxu0 0
        %1698 = vmatpush1.bf16.msra.mxu0 0
        %1699 = vmatprep.subr.bf16.mxu0 0
        %1700 = vmatpush1.bf16.msra.mxu0 0
        %1701 = vmatprep.subr.bf16.mxu0 0
        %1702 = vmatpush1.bf16.msra.mxu0 0
        %1703 = vmatprep.subr.bf16.mxu0 0
        %1704 = vmatpush1.bf16.msra.mxu0 0
        %1705 = vmatprep.subr.bf16.mxu0 0
        %1706 = vmatpush1.bf16.msra.mxu0 0
        %1707 = vmatprep.subr.bf16.mxu0 0
        %1708 = vmatpush1.bf16.msra.mxu0 0
        %1709 = vmatprep.subr.bf16.mxu0 0
        %1710 = vmatpush1.bf16.msra.mxu0 0
        %1711 = vmatprep.subr.bf16.mxu0 0
        %1712 = vmatpush1.bf16.msra.mxu0 0
        %1713 = vmatprep.subr.bf16.mxu0 0
        %1714 = vmatpush1.bf16.msra.mxu0 0
        %1715 = vmatprep.subr.bf16.mxu0 0
        %1716 = vmatpush1.bf16.msra.mxu0 0
        %1717 = vmatprep.subr.bf16.mxu0 0
        %1718 = vmatpush1.bf16.msra.mxu0 0
        %1719 = vmatprep.subr.bf16.mxu0 0
        %1720 = vmatpush1.bf16.msra.mxu0 0
        %1721 = vmatprep.subr.bf16.mxu0 0
        %1722 = vmatpush1.bf16.msra.mxu0 0
        %1723 = vmatprep.mubr.bf16.mxu0 0
        %1724 = vmatmul.mubr.bf16.gmra.mrb[0].mxu0 %v1686
        %v1725 = vpop.f32.mrb[0].mxu0
        %v1726 = vadd.f32 0.0, %v1725
        %v1727 = vpop.f32.mrb[0].mxu0
        %v1728 = vpop.f32.mrb[0].mxu0
        %v1729 = vpop.f32.mrb[0].mxu0
        %1730 = vdwg.mxu0
        %1732 = vrot.lane.b32.xlu0 %v1726, 8
        %v1733 = vpop.permute.xlu0 %1732
        %1735 = vst.msk [vmem:[#allocation3] sm:$0xff] %vm1013, %v1733
        %1736 = vrot.lane.b32.xlu0 %v1510, 112
        %v1737 = vpop.permute.xlu0 %1736
        %1738 = vrot.lane.b32.xlu0 %v1511, 112
        %v1739 = vpop.permute.xlu0 %1738
        %v1741 = vsel %vm789, %v1737, 0
        %v1744 = vsel %vm789, %v1739, 0
        %1746 = vmatprep.subr.bf16.mxu0 0
        %1747 = vmatpush1.bf16.xpose.msra.mxu0 %v1744
        %1748 = vmatprep.subr.bf16.mxu0 0
        %1749 = vmatpush1.bf16.xpose.msra.mxu0 0
        %1750 = vmatprep.subr.bf16.mxu0 0
        %1751 = vmatpush1.bf16.xpose.msra.mxu0 0
        %1752 = vmatprep.subr.bf16.mxu0 0
        %1753 = vmatpush1.bf16.xpose.msra.mxu0 0
        %1754 = vmatprep.subr.bf16.mxu0 0
        %1755 = vmatpush1.bf16.xpose.msra.mxu0 0
        %1756 = vmatprep.subr.bf16.mxu0 0
        %1757 = vmatpush1.bf16.xpose.msra.mxu0 0
        %1758 = vmatprep.subr.bf16.mxu0 0
        %1759 = vmatpush1.bf16.xpose.msra.mxu0 0
        %1760 = vmatprep.subr.bf16.mxu0 0
        %1761 = vmatpush1.bf16.xpose.msra.mxu0 0
        %1762 = vmatprep.subr.bf16.mxu0 0
        %1763 = vmatpush1.bf16.xpose.msra.mxu0 0
        %1764 = vmatprep.subr.bf16.mxu0 0
        %1765 = vmatpush1.bf16.xpose.msra.mxu0 0
        %1766 = vmatprep.subr.bf16.mxu0 0
        %1767 = vmatpush1.bf16.xpose.msra.mxu0 0
        %1768 = vmatprep.subr.bf16.mxu0 0
        %1769 = vmatpush1.bf16.xpose.msra.mxu0 0
        %1770 = vmatprep.subr.bf16.mxu0 0
        %1771 = vmatpush1.bf16.xpose.msra.mxu0 0
        %1772 = vmatprep.subr.bf16.mxu0 0
        %1773 = vmatpush1.bf16.xpose.msra.mxu0 0
        %1774 = vmatprep.subr.bf16.mxu0 0
        %1775 = vmatpush1.bf16.xpose.msra.mxu0 0
        %1776 = vmatprep.subr.bf16.mxu0 0
        %1777 = vmatpush1.bf16.xpose.msra.mxu0 0
        %1778 = vmatprep.mubr.bf16.mxu0 0
        %1779 = vmatmul.mubr.bf16.gmra.mrb[0].mxu0 %v1741
        %v1780 = vpop.f32.mrb[0].mxu0
        %v1781 = vadd.f32 0.0, %v1780
        %v1782 = vpop.f32.mrb[0].mxu0
        %v1783 = vpop.f32.mrb[0].mxu0
        %v1784 = vpop.f32.mrb[0].mxu0
        %1785 = vdwg.mxu0
        %v1786 = vsel %vm789, %v1781, -inf
        %1787 = vmax.xlane.f32.xlu0 %v1786
        %v1788 = vpop.xlane.xlu0 %1787
        %v1789 = vsub.f32 %v1781, %v1788
        %v1790 = vmul.f32 %v1789, 1.442695
        %v1791 = vpow.pop %v1790
        %v1792 = vsel %vm789, %v1791, 0.0
        %1793 = vadd.xlane.f32.xlu0 %v1792
        %v1794 = vpop.xlane.xlu0 %1793
        %v1795 = vrcp.pop %v1794
        %v1796 = vmul.f32 %v1791, %v1795
        %v1797 = vpack.c.bf16 %v1796, %v1796
        %1798 = vrot.lane.b32.xlu0 %v1512, 112
        %v1799 = vpop.permute.xlu0 %1798
        %v1801 = vsel %vm789, %v1797, 0
        %v1804 = vsel %vm851, %v1799, 0
        %1806 = vmatprep.subr.bf16.mxu0 0
        %1807 = vmatpush1.bf16.msra.mxu0 %v1804
        %1808 = vmatprep.subr.bf16.mxu0 0
        %1809 = vmatpush1.bf16.msra.mxu0 0
        %1810 = vmatprep.subr.bf16.mxu0 0
        %1811 = vmatpush1.bf16.msra.mxu0 0
        %1812 = vmatprep.subr.bf16.mxu0 0
        %1813 = vmatpush1.bf16.msra.mxu0 0
        %1814 = vmatprep.subr.bf16.mxu0 0
        %1815 = vmatpush1.bf16.msra.mxu0 0
        %1816 = vmatprep.subr.bf16.mxu0 0
        %1817 = vmatpush1.bf16.msra.mxu0 0
        %1818 = vmatprep.subr.bf16.mxu0 0
        %1819 = vmatpush1.bf16.msra.mxu0 0
        %1820 = vmatprep.subr.bf16.mxu0 0
        %1821 = vmatpush1.bf16.msra.mxu0 0
        %1822 = vmatprep.subr.bf16.mxu0 0
        %1823 = vmatpush1.bf16.msra.mxu0 0
        %1824 = vmatprep.subr.bf16.mxu0 0
        %1825 = vmatpush1.bf16.msra.mxu0 0
        %1826 = vmatprep.subr.bf16.mxu0 0
        %1827 = vmatpush1.bf16.msra.mxu0 0
        %1828 = vmatprep.subr.bf16.mxu0 0
        %1829 = vmatpush1.bf16.msra.mxu0 0
        %1830 = vmatprep.subr.bf16.mxu0 0
        %1831 = vmatpush1.bf16.msra.mxu0 0
        %1832 = vmatprep.subr.bf16.mxu0 0
        %1833 = vmatpush1.bf16.msra.mxu0 0
        %1834 = vmatprep.subr.bf16.mxu0 0
        %1835 = vmatpush1.bf16.msra.mxu0 0
        %1836 = vmatprep.subr.bf16.mxu0 0
        %1837 = vmatpush1.bf16.msra.mxu0 0
        %1838 = vmatprep.mubr.bf16.mxu0 0
        %1839 = vmatmul.mubr.bf16.gmra.mrb[0].mxu0 %v1801
        %v1840 = vpop.f32.mrb[0].mxu0
        %v1841 = vadd.f32 0.0, %v1840
        %v1842 = vpop.f32.mrb[0].mxu0
        %v1843 = vpop.f32.mrb[0].mxu0
        %v1844 = vpop.f32.mrb[0].mxu0
        %1845 = vdwg.mxu0
        %1847 = vrot.lane.b32.xlu0 %v1841, 16
        %v1848 = vpop.permute.xlu0 %1847
        %1850 = vst.msk [vmem:[#allocation3] sm:$0xff] %vm1129, %v1848
        %1851 = vrot.lane.b32.xlu0 %v1510, 104
        %v1852 = vpop.permute.xlu0 %1851
        %1853 = vrot.lane.b32.xlu0 %v1511, 104
        %v1854 = vpop.permute.xlu0 %1853
        %v1856 = vsel %vm789, %v1852, 0
        %v1859 = vsel %vm789, %v1854, 0
        %1861 = vmatprep.subr.bf16.mxu0 0
        %1862 = vmatpush1.bf16.xpose.msra.mxu0 %v1859
        %1863 = vmatprep.subr.bf16.mxu0 0
        %1864 = vmatpush1.bf16.xpose.msra.mxu0 0
        %1865 = vmatprep.subr.bf16.mxu0 0
        %1866 = vmatpush1.bf16.xpose.msra.mxu0 0
        %1867 = vmatprep.subr.bf16.mxu0 0
        %1868 = vmatpush1.bf16.xpose.msra.mxu0 0
        %1869 = vmatprep.subr.bf16.mxu0 0
        %1870 = vmatpush1.bf16.xpose.msra.mxu0 0
        %1871 = vmatprep.subr.bf16.mxu0 0
        %1872 = vmatpush1.bf16.xpose.msra.mxu0 0
        %1873 = vmatprep.subr.bf16.mxu0 0
        %1874 = vmatpush1.bf16.xpose.msra.mxu0 0
        %1875 = vmatprep.subr.bf16.mxu0 0
        %1876 = vmatpush1.bf16.xpose.msra.mxu0 0
        %1877 = vmatprep.subr.bf16.mxu0 0
        %1878 = vmatpush1.bf16.xpose.msra.mxu0 0
        %1879 = vmatprep.subr.bf16.mxu0 0
        %1880 = vmatpush1.bf16.xpose.msra.mxu0 0
        %1881 = vmatprep.subr.bf16.mxu0 0
        %1882 = vmatpush1.bf16.xpose.msra.mxu0 0
        %1883 = vmatprep.subr.bf16.mxu0 0
        %1884 = vmatpush1.bf16.xpose.msra.mxu0 0
        %1885 = vmatprep.subr.bf16.mxu0 0
        %1886 = vmatpush1.bf16.xpose.msra.mxu0 0
        %1887 = vmatprep.subr.bf16.mxu0 0
        %1888 = vmatpush1.bf16.xpose.msra.mxu0 0
        %1889 = vmatprep.subr.bf16.mxu0 0
        %1890 = vmatpush1.bf16.xpose.msra.mxu0 0
        %1891 = vmatprep.subr.bf16.mxu0 0
        %1892 = vmatpush1.bf16.xpose.msra.mxu0 0
        %1893 = vmatprep.mubr.bf16.mxu0 0
        %1894 = vmatmul.mubr.bf16.gmra.mrb[0].mxu0 %v1856
        %v1895 = vpop.f32.mrb[0].mxu0
        %v1896 = vadd.f32 0.0, %v1895
        %v1897 = vpop.f32.mrb[0].mxu0
        %v1898 = vpop.f32.mrb[0].mxu0
        %v1899 = vpop.f32.mrb[0].mxu0
        %1900 = vdwg.mxu0
        %v1901 = vsel %vm789, %v1896, -inf
        %1902 = vmax.xlane.f32.xlu0 %v1901
        %v1903 = vpop.xlane.xlu0 %1902
        %v1904 = vsub.f32 %v1896, %v1903
        %v1905 = vmul.f32 %v1904, 1.442695
        %v1906 = vpow.pop %v1905
        %v1907 = vsel %vm789, %v1906, 0.0
        %1908 = vadd.xlane.f32.xlu0 %v1907
        %v1909 = vpop.xlane.xlu0 %1908
        %v1910 = vrcp.pop %v1909
        %v1911 = vmul.f32 %v1906, %v1910
        %v1912 = vpack.c.bf16 %v1911, %v1911
        %1913 = vrot.lane.b32.xlu0 %v1512, 104
        %v1914 = vpop.permute.xlu0 %1913
        %v1916 = vsel %vm789, %v1912, 0
        %v1919 = vsel %vm851, %v1914, 0
        %1921 = vmatprep.subr.bf16.mxu0 0
        %1922 = vmatpush1.bf16.msra.mxu0 %v1919
        %1923 = vmatprep.subr.bf16.mxu0 0
        %1924 = vmatpush1.bf16.msra.mxu0 0
        %1925 = vmatprep.subr.bf16.mxu0 0
        %1926 = vmatpush1.bf16.msra.mxu0 0
        %1927 = vmatprep.subr.bf16.mxu0 0
        %1928 = vmatpush1.bf16.msra.mxu0 0
        %1929 = vmatprep.subr.bf16.mxu0 0
        %1930 = vmatpush1.bf16.msra.mxu0 0
        %1931 = vmatprep.subr.bf16.mxu0 0
        %1932 = vmatpush1.bf16.msra.mxu0 0
        %1933 = vmatprep.subr.bf16.mxu0 0
        %1934 = vmatpush1.bf16.msra.mxu0 0
        %1935 = vmatprep.subr.bf16.mxu0 0
        %1936 = vmatpush1.bf16.msra.mxu0 0
        %1937 = vmatprep.subr.bf16.mxu0 0
        %1938 = vmatpush1.bf16.msra.mxu0 0
        %1939 = vmatprep.subr.bf16.mxu0 0
        %1940 = vmatpush1.bf16.msra.mxu0 0
        %1941 = vmatprep.subr.bf16.mxu0 0
        %1942 = vmatpush1.bf16.msra.mxu0 0
        %1943 = vmatprep.subr.bf16.mxu0 0
        %1944 = vmatpush1.bf16.msra.mxu0 0
        %1945 = vmatprep.subr.bf16.mxu0 0
        %1946 = vmatpush1.bf16.msra.mxu0 0
        %1947 = vmatprep.subr.bf16.mxu0 0
        %1948 = vmatpush1.bf16.msra.mxu0 0
        %1949 = vmatprep.subr.bf16.mxu0 0
        %1950 = vmatpush1.bf16.msra.mxu0 0
        %1951 = vmatprep.subr.bf16.mxu0 0
        %1952 = vmatpush1.bf16.msra.mxu0 0
        %1953 = vmatprep.mubr.bf16.mxu0 0
        %1954 = vmatmul.mubr.bf16.gmra.mrb[0].mxu0 %v1916
        %v1955 = vpop.f32.mrb[0].mxu0
        %v1956 = vadd.f32 0.0, %v1955
        %v1957 = vpop.f32.mrb[0].mxu0
        %v1958 = vpop.f32.mrb[0].mxu0
        %v1959 = vpop.f32.mrb[0].mxu0
        %1960 = vdwg.mxu0
        %1962 = vrot.lane.b32.xlu0 %v1956, 24
        %v1963 = vpop.permute.xlu0 %1962
        %1965 = vst.msk [vmem:[#allocation3] sm:$0xff] %vm1245, %v1963
        %v1966 = vld [vmem:[#allocation3] sm:$0xff]
        %v1967 = vpack.c.bf16 %v1966, %v1966
        %v1968 = vlaneseq
        %v1969 = vshrl.u32 %v1968, 7
        %v1970 = vsub.s32 7, %v1969
        %v1971 = vrot.slane %v602, %v1970
        %v1976 = vunpack.c.l.b16 %v598
        %v1977 = vunpack.c.l.b16 %v599
        %v1978 = vunpack.c.l.b16 %v600
        %v1979 = vunpack.c.l.b16 %v601
        %v1980 = vpack.c.b16 %v1977, %v1976
        %v1981 = vpack.c.b16 %v1979, %v1978
        %v1985 = vsel %vm630, %v1967, 0
        %1987 = vmatprep.subr.bf16.mxu0 0
        %1988 = vmatpush1.bf16.msra.mxu0 %v1980
        %1989 = vmatprep.subr.bf16.mxu0 0
        %1990 = vmatpush1.bf16.msra.mxu0 %v1981
        %1991 = vmatprep.subr.bf16.mxu0 0
        %1992 = vmatpush1.bf16.msra.mxu0 0
        %1993 = vmatprep.subr.bf16.mxu0 0
        %1994 = vmatpush1.bf16.msra.mxu0 0
        %1995 = vmatprep.subr.bf16.mxu0 0
        %1996 = vmatpush1.bf16.msra.mxu0 0
        %1997 = vmatprep.subr.bf16.mxu0 0
        %1998 = vmatpush1.bf16.msra.mxu0 0
        %1999 = vmatprep.subr.bf16.mxu0 0
        %2000 = vmatpush1.bf16.msra.mxu0 0
        %2001 = vmatprep.subr.bf16.mxu0 0
        %2002 = vmatpush1.bf16.msra.mxu0 0
        %2003 = vmatprep.subr.bf16.mxu0 0
        %2004 = vmatpush1.bf16.msra.mxu0 0
        %2005 = vmatprep.subr.bf16.mxu0 0
        %2006 = vmatpush1.bf16.msra.mxu0 0
        %2007 = vmatprep.subr.bf16.mxu0 0
        %2008 = vmatpush1.bf16.msra.mxu0 0
        %2009 = vmatprep.subr.bf16.mxu0 0
        %2010 = vmatpush1.bf16.msra.mxu0 0
        %2011 = vmatprep.subr.bf16.mxu0 0
        %2012 = vmatpush1.bf16.msra.mxu0 0
        %2013 = vmatprep.subr.bf16.mxu0 0
        %2014 = vmatpush1.bf16.msra.mxu0 0
        %2015 = vmatprep.subr.bf16.mxu0 0
        %2016 = vmatpush1.bf16.msra.mxu0 0
        %2017 = vmatprep.subr.bf16.mxu0 0
        %2018 = vmatpush1.bf16.msra.mxu0 0
        %2019 = vmatprep.mubr.bf16.mxu0 0
        %2020 = vmatmul.mubr.bf16.gmra.mrb[0].mxu0 %v1985
        %v2021 = vpop.f32.mrb[0].mxu0
        %v2022 = vadd.f32 %v1971, %v2021
        %v2023 = vpop.f32.mrb[0].mxu0
        %v2024 = vpop.f32.mrb[0].mxu0
        %v2025 = vpop.f32.mrb[0].mxu0
        %2026 = vdwg.mxu0
        %v2027 = vadd.f32 %v2022, %v1332
        %v2028 = vsel %vm630, %v2027, 0.0
        %2029 = vadd.xlane.f32.xlu0 %v2028
        %v2030 = vpop.xlane.xlu0 %2029
        %v2031 = vmul.f32 %v2030, %v1312
        %v2032 = vsub.f32 %v2027, %v2031
        %v2033 = vmul.f32 %v2032, %v2032
        %v2034 = vsel %vm630, %v2033, 0.0
        %2035 = vadd.xlane.f32.xlu0 %v2034
        %v2036 = vpop.xlane.xlu0 %2035
        %v2037 = vmul.f32 %v2036, %v1312
        %v2038 = vadd.f32 %v2037, 1e-05
        %v2039 = vrsqrt.pop %v2038
        %v2040 = vmul.f32 %v2032, %v2039
        %v2041 = vlaneseq
        %v2042 = vshrl.u32 %v2041, 7
        %v2043 = vsub.s32 3, %v2042
        %v2044 = vrot.slane %v603, %v2043
        %v2045 = vmul.f32 %v2040, %v2044
        %v2046 = vlaneseq
        %v2047 = vshrl.u32 %v2046, 7
        %v2048 = vsub.s32 4, %v2047
        %v2049 = vrot.slane %v603, %v2048
        %v2050 = vadd.f32 %v2045, %v2049
        %v2051 = vpack.c.bf16 %v2050, %v2050
        %v2052 = vld [vmem:[%s470] sm:$0xf]
        %v2053 = vld [vmem:[%s470 + $0x4] sm:$0xf]
        %v2054 = vld [vmem:[%s470 + $0x8] sm:$0xf]
        %v2055 = vld [vmem:[%s470 + $0xc] sm:$0xf]
        %v2056 = vld [vmem:[%s551] sm:$0x1]
        %v2058 = vlaneseq
        %v2059 = vshrl.u32 %v2058, 7
        %v2060 = vsub.s32 0, %v2059
        %v2061 = vrot.slane %v2056, %v2060
        %v2067 = vunpack.c.l.b16 %v2052
        %v2068 = vunpack.c.l.b16 %v2053
        %v2069 = vunpack.c.l.b16 %v2054
        %v2070 = vunpack.c.l.b16 %v2055
        %v2071 = vpack.c.b16 %v2068, %v2067
        %v2072 = vpack.c.b16 %v2070, %v2069
        %v2076 = vsel %vm630, %v2051, 0
        %2078 = vmatprep.subr.bf16.mxu0 0
        %2079 = vmatpush1.bf16.msra.mxu0 %v2071
        %2080 = vmatprep.subr.bf16.mxu0 0
        %2081 = vmatpush1.bf16.msra.mxu0 %v2072
        %2082 = vmatprep.subr.bf16.mxu0 0
        %2083 = vmatpush1.bf16.msra.mxu0 0
        %2084 = vmatprep.subr.bf16.mxu0 0
        %2085 = vmatpush1.bf16.msra.mxu0 0
        %2086 = vmatprep.subr.bf16.mxu0 0
        %2087 = vmatpush1.bf16.msra.mxu0 0
        %2088 = vmatprep.subr.bf16.mxu0 0
        %2089 = vmatpush1.bf16.msra.mxu0 0
        %2090 = vmatprep.subr.bf16.mxu0 0
        %2091 = vmatpush1.bf16.msra.mxu0 0
        %2092 = vmatprep.subr.bf16.mxu0 0
        %2093 = vmatpush1.bf16.msra.mxu0 0
        %2094 = vmatprep.subr.bf16.mxu0 0
        %2095 = vmatpush1.bf16.msra.mxu0 0
        %2096 = vmatprep.subr.bf16.mxu0 0
        %2097 = vmatpush1.bf16.msra.mxu0 0
        %2098 = vmatprep.subr.bf16.mxu0 0
        %2099 = vmatpush1.bf16.msra.mxu0 0
        %2100 = vmatprep.subr.bf16.mxu0 0
        %2101 = vmatpush1.bf16.msra.mxu0 0
        %2102 = vmatprep.subr.bf16.mxu0 0
        %2103 = vmatpush1.bf16.msra.mxu0 0
        %2104 = vmatprep.subr.bf16.mxu0 0
        %2105 = vmatpush1.bf16.msra.mxu0 0
        %2106 = vmatprep.subr.bf16.mxu0 0
        %2107 = vmatpush1.bf16.msra.mxu0 0
        %2108 = vmatprep.subr.bf16.mxu0 0
        %2109 = vmatpush1.bf16.msra.mxu0 0
        %2110 = vmatprep.mubr.bf16.mxu0 0
        %2111 = vmatmul.mubr.bf16.gmra.mrb[0].mxu0 %v2076
        %v2112 = vpop.f32.mrb[0].mxu0
        %v2113 = vadd.f32 %v2061, %v2112
        %v2114 = vpop.f32.mrb[0].mxu0
        %v2115 = vpop.f32.mrb[0].mxu0
        %v2116 = vpop.f32.mrb[0].mxu0
        %2117 = vdwg.mxu0
        %v2118 = vmax.f32 %v2113, 0.0
        %v2119 = vpack.c.bf16 %v2118, %v2118
        %v2120 = vld [vmem:[%s556] sm:$0xf]
        %v2121 = vld [vmem:[%s556 + $0x4] sm:$0xf]
        %v2122 = vld [vmem:[%s556 + $0x8] sm:$0xf]
        %v2123 = vld [vmem:[%s556 + $0xc] sm:$0xf]
        %v2124 = vld [vmem:[%s556 + $0x10] sm:$0xf]
        %v2125 = vld [vmem:[%s556 + $0x14] sm:$0xf]
        %v2126 = vld [vmem:[%s556 + $0x18] sm:$0xf]
        %v2127 = vld [vmem:[%s556 + $0x1c] sm:$0xf]
        %v2128 = vlaneseq
        %v2129 = vshrl.u32 %v2128, 7
        %v2130 = vsub.s32 0, %v2129
        %v2131 = vrot.slane %v603, %v2130
        %v2140 = vunpack.c.l.b16 %v2120
        %v2141 = vunpack.c.l.b16 %v2121
        %v2142 = vunpack.c.l.b16 %v2122
        %v2143 = vunpack.c.l.b16 %v2123
        %v2144 = vunpack.c.l.b16 %v2124
        %v2145 = vunpack.c.l.b16 %v2125
        %v2146 = vunpack.c.l.b16 %v2126
        %v2147 = vunpack.c.l.b16 %v2127
        %v2148 = vpack.c.b16 %v2141, %v2140
        %v2149 = vpack.c.b16 %v2143, %v2142
        %v2150 = vpack.c.b16 %v2145, %v2144
        %v2151 = vpack.c.b16 %v2147, %v2146
        %vm2156 = vcmask 523264
        %v2158 = vsel %vm2156, %v2119, 0
        %2160 = vmatprep.subr.bf16.mxu0 0
        %2161 = vmatpush1.bf16.msra.mxu0 %v2148
        %2162 = vmatprep.subr.bf16.mxu0 0
        %2163 = vmatpush1.bf16.msra.mxu0 %v2149
        %2164 = vmatprep.subr.bf16.mxu0 0
        %2165 = vmatpush1.bf16.msra.mxu0 %v2150
        %2166 = vmatprep.subr.bf16.mxu0 0
        %2167 = vmatpush1.bf16.msra.mxu0 %v2151
        %2168 = vmatprep.subr.bf16.mxu0 0
        %2169 = vmatpush1.bf16.msra.mxu0 0
        %2170 = vmatprep.subr.bf16.mxu0 0
        %2171 = vmatpush1.bf16.msra.mxu0 0
        %2172 = vmatprep.subr.bf16.mxu0 0
        %2173 = vmatpush1.bf16.msra.mxu0 0
        %2174 = vmatprep.subr.bf16.mxu0 0
        %2175 = vmatpush1.bf16.msra.mxu0 0
        %2176 = vmatprep.subr.bf16.mxu0 0
        %2177 = vmatpush1.bf16.msra.mxu0 0
        %2178 = vmatprep.subr.bf16.mxu0 0
        %2179 = vmatpush1.bf16.msra.mxu0 0
        %2180 = vmatprep.subr.bf16.mxu0 0
        %2181 = vmatpush1.bf16.msra.mxu0 0
        %2182 = vmatprep.subr.bf16.mxu0 0
        %2183 = vmatpush1.bf16.msra.mxu0 0
        %2184 = vmatprep.subr.bf16.mxu0 0
        %2185 = vmatpush1.bf16.msra.mxu0 0
        %2186 = vmatprep.subr.bf16.mxu0 0
        %2187 = vmatpush1.bf16.msra.mxu0 0
        %2188 = vmatprep.subr.bf16.mxu0 0
        %2189 = vmatpush1.bf16.msra.mxu0 0
        %2190 = vmatprep.subr.bf16.mxu0 0
        %2191 = vmatpush1.bf16.msra.mxu0 0
        %2192 = vmatprep.mubr.bf16.mxu0 0
        %2193 = vmatmul.mubr.bf16.gmra.mrb[0].mxu0 %v2158
        %v2194 = vpop.f32.mrb[0].mxu0
        %v2195 = vadd.f32 %v2131, %v2194
        %v2196 = vpop.f32.mrb[0].mxu0
        %v2197 = vpop.f32.mrb[0].mxu0
        %v2198 = vpop.f32.mrb[0].mxu0
        %2199 = vdwg.mxu0
        %v2200 = vadd.f32 %v2195, %v2050
        %v2201 = vsel %vm630, %v2200, 0.0
        %2202 = vadd.xlane.f32.xlu0 %v2201
        %v2203 = vpop.xlane.xlu0 %2202
        %v2204 = vmul.f32 %v2203, %v1312
        %v2205 = vsub.f32 %v2200, %v2204
        %v2206 = vmul.f32 %v2205, %v2205
        %v2207 = vsel %vm630, %v2206, 0.0
        %2208 = vadd.xlane.f32.xlu0 %v2207
        %v2209 = vpop.xlane.xlu0 %2208
        %v2210 = vmul.f32 %v2209, %v1312
        %v2211 = vadd.f32 %v2210, 1e-05
        %v2212 = vrsqrt.pop %v2211
        %v2213 = vmul.f32 %v2205, %v2212
        %v2214 = vlaneseq
        %v2215 = vshrl.u32 %v2214, 7
        %v2216 = vsub.s32 5, %v2215
        %v2217 = vrot.slane %v603, %v2216
        %v2218 = vmul.f32 %v2213, %v2217
        %v2219 = vlaneseq
        %v2220 = vshrl.u32 %v2219, 7
        %v2221 = vsub.s32 6, %v2220
        %v2222 = vrot.slane %v603, %v2221
        %v2223 = vadd.f32 %v2218, %v2222
        %p2224 = scmp.lt.s32.totalorder %s37, 1
        // Predicated region
        $region77: #{tpu_custom_call.1} parent=55 // pred_check
          %p2225 = pneg %p2224
        $region78: #{tpu_custom_call.1} parent=55 // pred_check_branch
          %2227 = sbr.rel (%p2225) target = $region80
        $region79: #{tpu_custom_call.1} parent=55 // pred_region
          %2228 = vst.msk [vmem:[#allocation2] sm:$0xff] %vm630, %v2223
        $region80: #{tpu_custom_call.1} parent=55 // pred_fallthru
          _
        %p2229 = scmp.eq.s32.totalorder %s37, 1
        // Predicated region
        $region81: #{tpu_custom_call.1} parent=55 // pred_check
          %p2230 = pneg %p2229
        $region82: #{tpu_custom_call.1} parent=55 // pred_check_branch
          %2232 = sbr.rel (%p2230) target = $region84
        $region83: #{tpu_custom_call.1} parent=55 // pred_region
          %2233 = vst.msk [vmem:[%s540] sm:$0xff] %vm630, %v2223
        $region84: #{tpu_custom_call.1} parent=55 // pred_fallthru
          _
        %s2234 = sand.u32 %s286, 1
        %s2235 = scalar_lea.sflag [#allocation6], %s2234
        %s2236 = sand.u32 %s286, 1
        %s2237 = smul.addr %s2236, 8
        %s2238 = scalar_lea.vmem [#allocation12], %s2237
        // Predicated region
        $region85: #{tpu_custom_call.1} parent=55 // pred_check
          %p2239 = pneg %p296
        $region86: #{tpu_custom_call.1} parent=55 // pred_check_branch
          %2241 = sbr.rel (%p2239) target = $region88
        $region87: #{tpu_custom_call.1} parent=55 // pred_region
          %s2243 = ssub.s32 128, 128
          %2244 = vsyncadd %s2235, %s2243
          %s2245 = smul.addr %s36, 128
          %s2246 = scalar_lea.hbm %s9, %s2245
          %s2248 = sshll.u32 %s2238, 4
          %s2249 = int_to_ptr.vmem [resolvable:$true] %s2248
          %2251 = dma.vmem_to_hbm [thread:$0]  %s2249, 128, %s2246, %s2235
        $region88: #{tpu_custom_call.1} parent=55 // pred_fallthru
          _
      $region56: #{tpu_custom_call.1} parent=5 // pred_fallthru
        _
      %p2252 = scmp.le.s32.totalorder 2, %s27
      // Predicated region
      $region89: #{tpu_custom_call.1} parent=5 // pred_check
        %p2253 = pneg %p2252
      $region90: #{tpu_custom_call.1} parent=5 // pred_check_branch
        %2255 = sbr.rel (%p2253) target = $region92
      $region91: #{tpu_custom_call.1} parent=5 // pred_region
        %s2256 = ssub.s32 %s27, 2
        // Predicated region
        $region93: #{tpu_custom_call.1} parent=91 // pred_check
          %p2257 = pneg %p302
        $region94: #{tpu_custom_call.1} parent=91 // pred_check_branch
          %2259 = sbr.rel (%p2257) target = $region96
        $region95: #{tpu_custom_call.1} parent=91 // pred_region
          %s2260 = sand.u32 %s287, 1
          %s2261 = scalar_lea.sflag [#allocation6], %s2260
          %s2262 = sand.u32 %s287, 1
          %s2263 = smul.addr %s2262, 8
          %s2264 = scalar_lea.vmem [#allocation12], %s2263
          %2265 = dma.done %s2261, 128
        $region96: #{tpu_custom_call.1} parent=91 // pred_fallthru
          _
      $region92: #{tpu_custom_call.1} parent=5 // pred_fallthru
        _
    $region6: #{tpu_custom_call.1} parent=1 // loop_footer
      %s31 = sadd.s32 1, %s27
    $region7: #{tpu_custom_call.1} parent=1 // loop_footer_branch
      %26 = sbr.rel target = $region3
    $region8: #{tpu_custom_call.1} parent=1 // loop_exit
      _
    %2266 = vsyncpa [#allocation5], 1
    %s2267 = scalar_lea.sflag [#allocation5], 1
    %2268 = vsyncpa %s2267, 1
    %2269 = vsyncpa [#allocation8], 1
    %s2270 = scalar_lea.sflag [#allocation8], 1
    %2271 = vsyncpa %s2270, 1
    %2272 = vsyncpa [#allocation11], 1
    %s2273 = scalar_lea.sflag [#allocation11], 1
    %2274 = vsyncpa %s2273, 1
    %2275 = vsyncpa [#allocation6], 1
    %s2276 = scalar_lea.sflag [#allocation6], 1
    %2277 = vsyncpa %s2276, 1

</llo_original>
